<compile_context>
chip_gen: v7x
topology: tpu7x:2x2x1
jax: 0.10.0
libtpu: 0.0.40
codegen_flags: <defaults>
</compile_context>

<pallas_src>
import functools

import numpy as np
import jax
import jax.numpy as jnp
from jax.experimental import pallas as pl
from jax.experimental.pallas import tpu as pltpu


# ----------------------------------------------------------------------------
# helpers
# ----------------------------------------------------------------------------
def _round_up(x, m):
    return ((x + m - 1) // m) * m


def _pick_cout_tile(np_out, cap=512):
    """Largest multiple of 128 that divides np_out and is <= cap."""
    best = 128
    d = 128
    while d <= min(np_out, cap):
        if np_out % d == 0:
            best = d
        d += 128
    return best


# ----------------------------------------------------------------------------
# Fused conv3x3(stride=1, pad=1) + folded BN + ReLU + global-avg-pool sums.
# Input is the zero-padded image flattened over (H+2, W+2); each of the 9 conv
# taps is then a constant row shift handled by a static slice inside the kernel.
# ----------------------------------------------------------------------------
def _make_conv3x3_kernel(W, Q):
    Wp2 = W + 2

    def kernel(x_ref, w_ref, s_ref, b_ref, m_ref, feat_ref, sum_ref):
        # x_ref:    (1, S_pad, Cin) f32   flattened zero-padded image
        # w_ref:    (9, Cin, TN)    bf16  tap-major conv weights
        # s_ref:    (1, TN)         f32   folded BN scale
        # b_ref:    (1, TN)         f32   folded BN shift
        # m_ref:    (Q, 1)          f32   1.0 at valid output positions else 0.0
        # feat_ref: (1, Q, TN)      bf16  conv+BN+ReLU output (masked)
        # sum_ref:  (1, 1, TN)      f32   per-image channel sums (for avg pool)
        acc = None
        for di in range(3):
            for dj in range(3):
                off = di * Wp2 + dj
                lhs = x_ref[0, off:off + Q, :].astype(jnp.bfloat16)
                part = jnp.dot(lhs, w_ref[di * 3 + dj],
                               preferred_element_type=jnp.float32)
                acc = part if acc is None else acc + part
        y = acc * s_ref[...] + b_ref[...]              # f32 epilogue
        y = jnp.maximum(y, 0.0) * m_ref[...]           # ReLU + zero padded cols
        feat_ref[0] = y.astype(feat_ref.dtype)
        sum_ref[0] = jnp.sum(y, axis=0, keepdims=True)

    return kernel


def conv3x3_bn_relu_pool(x_nhwc, w9, scale, shift, mask, *, H, W, np_out):
    """x_nhwc: (B, H, W, Cin) f32 -> (feat (B, Q, Np) bf16, sums (B, 1, Np) f32)
    with Q = H*(W+2); valid output (h, w) lives at flattened row h*(W+2)+w."""
    B = x_nhwc.shape[0]
    Cin = x_nhwc.shape[3]
    Wp2 = W + 2
    S = (H + 2) * Wp2
    Q = H * Wp2
    S_pad = _round_up(S + 2, 8)      # +2: taps of garbage rows may read past S

    xf = jnp.pad(x_nhwc, ((0, 0), (1, 1), (1, 1), (0, 0))).reshape(B, S, Cin)
    xf = jnp.pad(xf, ((0, 0), (0, S_pad - S), (0, 0)))

    TN = _pick_cout_tile(np_out)
    grid = (B, np_out // TN)

    # Right-sized VMEM budget: double-buffered blocks + accumulator/temporaries.
    blk = (S_pad * Cin * 4 + 9 * Cin * TN * 2 + 2 * TN * 4 + Q * 4
           + Q * TN * 2 + TN * 4)
    est = 2 * blk + Q * TN * 8 + Q * Cin * 8
    vmem_limit = int(min(max(2 * est, 6 << 20), 64 << 20))

    cost = pl.CostEstimate(
        flops=2 * 9 * B * Q * Cin * np_out,
        transcendentals=0,
        bytes_accessed=(B * (np_out // TN) * (S_pad * Cin * 4 + Q * 4)
                        + B * 9 * Cin * np_out * 2
                        + B * Q * np_out * 2 + B * np_out * 4))

    return pl.pallas_call(
        _make_conv3x3_kernel(W, Q),
        out_shape=(jax.ShapeDtypeStruct((B, Q, np_out), jnp.bfloat16),
                   jax.ShapeDtypeStruct((B, 1, np_out), jnp.float32)),
        grid_spec=pltpu.PrefetchScalarGridSpec(
            num_scalar_prefetch=0,
            grid=grid,
            in_specs=[
                pl.BlockSpec((1, S_pad, Cin), lambda b, n: (b, 0, 0)),
                pl.BlockSpec((9, Cin, TN), lambda b, n: (0, 0, n)),
                pl.BlockSpec((1, TN), lambda b, n: (0, n)),
                pl.BlockSpec((1, TN), lambda b, n: (0, n)),
                pl.BlockSpec((Q, 1), lambda b, n: (0, 0)),
            ],
            out_specs=[
                pl.BlockSpec((1, Q, TN), lambda b, n: (b, 0, n)),
                pl.BlockSpec((1, 1, TN), lambda b, n: (b, 0, n)),
            ],
        ),
        compiler_params=pltpu.CompilerParams(
            dimension_semantics=("parallel", "parallel"),
            vmem_limit_bytes=vmem_limit),
        cost_estimate=cost,
    )(xf, w9, scale, shift, mask)


# ----------------------------------------------------------------------------
# Channel-scale kernel: out[b, q, c] = feat[b, q, c] * atten[b, c]   (bf16)
# ----------------------------------------------------------------------------
def _scale_kernel(f_ref, a_ref, o_ref):
    o_ref[...] = f_ref[...] * a_ref[...]      # (1,Q,Np) * (1,1,Np) broadcast


def pallas_channel_scale(feat, atten_b1c):
    """feat: (B, Q, Np) bf16, atten: (B, 1, Np) bf16 -> (B, Q, Np) bf16."""
    B, Q, Np = feat.shape
    est = 2 * (2 * Q * Np * 2 + Np * 2)
    vmem_limit = int(min(max(2 * est, 6 << 20), 64 << 20))
    cost = pl.CostEstimate(flops=B * Q * Np, transcendentals=0,
                           bytes_accessed=2 * B * Q * Np * 2 + B * Np * 2)
    return pl.pallas_call(
        _scale_kernel,
        out_shape=jax.ShapeDtypeStruct((B, Q, Np), jnp.bfloat16),
        grid=(B,),
        in_specs=[pl.BlockSpec((1, Q, Np), lambda b: (b, 0, 0)),
                  pl.BlockSpec((1, 1, Np), lambda b: (b, 0, 0))],
        out_specs=pl.BlockSpec((1, Q, Np), lambda b: (b, 0, 0)),
        compiler_params=pltpu.CompilerParams(
            dimension_semantics=("parallel",),
            vmem_limit_bytes=vmem_limit),
        cost_estimate=cost,
    )(feat, atten_b1c)


# ----------------------------------------------------------------------------
# Parameter construction (weights pre-folded / pre-padded / pre-cast once).
# Static config is returned separately so it never becomes a traced jit arg.
# ----------------------------------------------------------------------------
def make_arm_params(key, in_chan, out_chan, eps=1e-5):
    k1, k2 = jax.random.split(key)
    # conv 3x3, bias-free, kaiming_normal_(a=1) -> std = 1/sqrt(fan_in)
    w = jax.random.normal(k1, (out_chan, in_chan, 3, 3), jnp.float32) \
        / np.sqrt(in_chan * 9)
    Np = _round_up(out_chan, 128)
    # (Cout, Cin, 3, 3) -> (3, 3, Cin, Cout) -> (9, Cin, Cout), pad Cout, bf16.
    w9 = jnp.transpose(w, (2, 3, 1, 0)).reshape(9, in_chan, out_chan)
    w9 = jnp.pad(w9, ((0, 0), (0, 0), (0, Np - out_chan))).astype(jnp.bfloat16)
    # Eval-mode BN folded (gamma=1, beta=0, running_mean=0, running_var=1).
    scale = jnp.full((out_chan,), 1.0 / np.sqrt(1.0 + eps), jnp.float32)
    shift = jnp.zeros((out_chan,), jnp.float32)
    scale = jnp.pad(scale, (0, Np - out_chan)).reshape(1, Np)
    shift = jnp.pad(shift, (0, Np - out_chan)).reshape(1, Np)
    # conv_atten: 1x1 conv, bias-free; bn_atten folded likewise.
    w_att = jax.random.normal(k2, (out_chan, out_chan), jnp.float32) \
        / np.sqrt(out_chan)
    w_att_t = jnp.pad(w_att.T, ((0, Np - out_chan), (0, Np - out_chan)))
    att_scale = jnp.full((Np,), 1.0 / np.sqrt(1.0 + eps), jnp.float32)
    att_shift = jnp.zeros((Np,), jnp.float32)

    params = dict(w9=w9, scale=scale, shift=shift, w_atten=w_att_t,
                  att_scale=att_scale, att_shift=att_shift,
                  w_raw=w, w_att_raw=w_att)
    cfg = dict(in_chan=int(in_chan), out_chan=int(out_chan), np_out=int(Np),
               eps=float(eps))
    return params, cfg


# ----------------------------------------------------------------------------
# Forward pass
# ----------------------------------------------------------------------------
def arm_forward(cfg, params, x_nchw):
    """AttentionRefinementModule: (B, Cin, H, W) f32 -> (B, Cout, H, W) f32."""
    B, _, H, W = x_nchw.shape
    C, Np = cfg["out_chan"], cfg["np_out"]
    Wp2 = W + 2
    Q = H * Wp2

    x_nhwc = jnp.transpose(x_nchw, (0, 2, 3, 1))            # one NCHW->NHWC pass
    col = jnp.arange(Q, dtype=jnp.int32) % Wp2
    mask = (col < W).astype(jnp.float32).reshape(Q, 1)      # valid-column mask

    feat, sums = conv3x3_bn_relu_pool(x_nhwc, params["w9"], params["scale"],
                                      params["shift"], mask,
                                      H=H, W=W, np_out=Np)

    # Tiny (B x C) attention branch stays in XLA: padding B rows to an MXU tile
    # would waste nearly all of the work.
    mean = sums[:, 0, :] * (1.0 / float(H * W))             # (B, Np) f32
    atten = mean @ params["w_atten"]
    atten = jax.nn.sigmoid(atten * params["att_scale"] + params["att_shift"])
    atten = atten.astype(jnp.bfloat16).reshape(B, 1, Np)

    out = pallas_channel_scale(feat, atten)                 # (B, Q, Np) bf16
    out = out.reshape(B, H, Wp2, Np)[:, :, :W, :C]          # drop pad cols/chans
    return jnp.transpose(out, (0, 3, 1, 2)).astype(jnp.float32)   # NCHW f32


# ----------------------------------------------------------------------------
# Pure-JAX reference (loose numerical check of the Pallas path)
# ----------------------------------------------------------------------------
def reference_forward(cfg, params, x_nchw):
    C = cfg["out_chan"]
    x = jnp.transpose(x_nchw, (0, 2, 3, 1))
    xb = x.astype(jnp.bfloat16).astype(jnp.float32)         # match bf16 rounding
    w = params["w_raw"].astype(jnp.bfloat16).astype(jnp.float32)
    w = jnp.transpose(w, (2, 3, 1, 0))                      # OIHW -> HWIO
    y = jax.lax.conv_general_dilated(
        xb, w, window_strides=(1, 1), padding=((1, 1), (1, 1)),
        dimension_numbers=("NHWC", "HWIO", "NHWC"))
    scale = params["scale"][0, :C]
    shift = params["shift"][0, :C]
    feat = jnp.maximum(y * scale + shift, 0.0)
    att = jnp.mean(feat, axis=(1, 2))
    att = jax.nn.sigmoid(att @ params["w_att_raw"].T * params["att_scale"][:C]
                         + params["att_shift"][:C])
    out = feat * att[:, None, None, :]
    return jnp.transpose(out, (0, 3, 1, 2))


# ----------------------------------------------------------------------------
if __name__ == "__main__":
    B, IN_C, OUT_C, H, W = 2, 64, 128, 16, 16

    key = jax.random.PRNGKey(0)
    kp, kx = jax.random.split(key)
    params, cfg = make_arm_params(kp, IN_C, OUT_C)
    x = jax.random.normal(kx, (B, IN_C, H, W), jnp.float32)

    fwd = jax.jit(functools.partial(arm_forward, cfg))
    out = jax.block_until_ready(fwd(params, x))

    assert out.shape == (B, OUT_C, H, W), out.shape
    assert bool(jnp.all(jnp.isfinite(out)))

    ref_fn = jax.jit(functools.partial(reference_forward, cfg))
    ref = jax.block_until_ready(ref_fn(params, x))
    err = float(jnp.max(jnp.abs(out - ref)) / (jnp.max(jnp.abs(ref)) + 1e-6))
    assert err < 0.05, f"relative error too large: {err}"

    print("KERNEL_OK")
</pallas_src>

<mosaic_0001>
module attributes {stable_mosaic.version = 11 : i64} {
  func.func @kernel(%arg0: i32, %arg1: i32, %arg2: memref<1x328x64xf32, #tpu.memory_space<vmem>>, %arg3: memref<9x64x128xbf16, #tpu.memory_space<vmem>>, %arg4: memref<1x128xf32, #tpu.memory_space<vmem>>, %arg5: memref<1x128xf32, #tpu.memory_space<vmem>>, %arg6: memref<288x1xf32, #tpu.memory_space<vmem>>, %arg7: memref<1x288x128xbf16, #tpu.memory_space<vmem>>, %arg8: memref<1x1x128xf32, #tpu.memory_space<vmem>>) attributes {dimension_semantics = [#tpu.dimension_semantics<parallel>, #tpu.dimension_semantics<parallel>], iteration_bounds = array<i64: 2, 1>, scalar_prefetch = 0 : i64, scratch_operands = 0 : i64, tpu.core_type = #tpu.core_type<tc>, window_params = [{transform_indices = @transform_0, window_bounds = array<i64: 1, 328, 64>}, {transform_indices = @transform_1, window_bounds = array<i64: 9, 64, 128>}, {transform_indices = @transform_2, window_bounds = array<i64: 1, 128>}, {transform_indices = @transform_3, window_bounds = array<i64: 1, 128>}, {pipeline_mode = #tpu.pipeline_mode<synchronous>, transform_indices = @transform_4, window_bounds = array<i64: 288, 1>}, {transform_indices = @transform_5, window_bounds = array<i64: 1, 288, 128>}, {transform_indices = @transform_6, window_bounds = array<i64: 1, 1, 128>}]} {
    %c0 = arith.constant 0 : index
    %c0_0 = arith.constant 0 : index
    %c0_1 = arith.constant 0 : index
    %0 = vector.load %arg2[%c0, %c0_0, %c0_1] : memref<1x328x64xf32, #tpu.memory_space<vmem>>, vector<1x288x64xf32>
    %1 = vector.shape_cast %0 : vector<1x288x64xf32> to vector<288x64xf32>
    %2 = arith.truncf %1 : vector<288x64xf32> to vector<288x64xbf16>
    %c0_2 = arith.constant 0 : index
    %c0_3 = arith.constant 0 : index
    %c0_4 = arith.constant 0 : index
    %3 = vector.load %arg3[%c0_2, %c0_3, %c0_4] : memref<9x64x128xbf16, #tpu.memory_space<vmem>>, vector<1x64x128xbf16>
    %4 = vector.shape_cast %3 : vector<1x64x128xbf16> to vector<64x128xbf16>
    %cst = arith.constant dense<0.000000e+00> : vector<288x128xf32>
    %5 = tpu.matmul %2, %4, %cst {dimension_numbers = #tpu.dot_dimension_numbers<[1], [0], [0], [1], [0, 0, 1, 1], [], []>} : vector<288x64xbf16>, vector<64x128xbf16>, vector<288x128xf32> -> vector<288x128xf32>
    %c0_5 = arith.constant 0 : index
    %c1 = arith.constant 1 : index
    %c0_6 = arith.constant 0 : index
    %6 = vector.load %arg2[%c0_5, %c1, %c0_6] : memref<1x328x64xf32, #tpu.memory_space<vmem>>, vector<1x288x64xf32>
    %7 = vector.shape_cast %6 : vector<1x288x64xf32> to vector<288x64xf32>
    %8 = arith.truncf %7 : vector<288x64xf32> to vector<288x64xbf16>
    %c1_7 = arith.constant 1 : index
    %c0_8 = arith.constant 0 : index
    %c0_9 = arith.constant 0 : index
    %9 = vector.load %arg3[%c1_7, %c0_8, %c0_9] : memref<9x64x128xbf16, #tpu.memory_space<vmem>>, vector<1x64x128xbf16>
    %10 = vector.shape_cast %9 : vector<1x64x128xbf16> to vector<64x128xbf16>
    %cst_10 = arith.constant dense<0.000000e+00> : vector<288x128xf32>
    %11 = tpu.matmul %8, %10, %cst_10 {dimension_numbers = #tpu.dot_dimension_numbers<[1], [0], [0], [1], [0, 0, 1, 1], [], []>} : vector<288x64xbf16>, vector<64x128xbf16>, vector<288x128xf32> -> vector<288x128xf32>
    %12 = arith.addf %5, %11 : vector<288x128xf32>
    %c0_11 = arith.constant 0 : index
    %c2 = arith.constant 2 : index
    %c0_12 = arith.constant 0 : index
    %13 = vector.load %arg2[%c0_11, %c2, %c0_12] : memref<1x328x64xf32, #tpu.memory_space<vmem>>, vector<1x288x64xf32>
    %14 = vector.shape_cast %13 : vector<1x288x64xf32> to vector<288x64xf32>
    %15 = arith.truncf %14 : vector<288x64xf32> to vector<288x64xbf16>
    %c2_13 = arith.constant 2 : index
    %c0_14 = arith.constant 0 : index
    %c0_15 = arith.constant 0 : index
    %16 = vector.load %arg3[%c2_13, %c0_14, %c0_15] : memref<9x64x128xbf16, #tpu.memory_space<vmem>>, vector<1x64x128xbf16>
    %17 = vector.shape_cast %16 : vector<1x64x128xbf16> to vector<64x128xbf16>
    %cst_16 = arith.constant dense<0.000000e+00> : vector<288x128xf32>
    %18 = tpu.matmul %15, %17, %cst_16 {dimension_numbers = #tpu.dot_dimension_numbers<[1], [0], [0], [1], [0, 0, 1, 1], [], []>} : vector<288x64xbf16>, vector<64x128xbf16>, vector<288x128xf32> -> vector<288x128xf32>
    %19 = arith.addf %12, %18 : vector<288x128xf32>
    %c0_17 = arith.constant 0 : index
    %c18 = arith.constant 18 : index
    %c0_18 = arith.constant 0 : index
    %20 = vector.load %arg2[%c0_17, %c18, %c0_18] : memref<1x328x64xf32, #tpu.memory_space<vmem>>, vector<1x288x64xf32>
    %21 = vector.shape_cast %20 : vector<1x288x64xf32> to vector<288x64xf32>
    %22 = arith.truncf %21 : vector<288x64xf32> to vector<288x64xbf16>
    %c3 = arith.constant 3 : index
    %c0_19 = arith.constant 0 : index
    %c0_20 = arith.constant 0 : index
    %23 = vector.load %arg3[%c3, %c0_19, %c0_20] : memref<9x64x128xbf16, #tpu.memory_space<vmem>>, vector<1x64x128xbf16>
    %24 = vector.shape_cast %23 : vector<1x64x128xbf16> to vector<64x128xbf16>
    %cst_21 = arith.constant dense<0.000000e+00> : vector<288x128xf32>
    %25 = tpu.matmul %22, %24, %cst_21 {dimension_numbers = #tpu.dot_dimension_numbers<[1], [0], [0], [1], [0, 0, 1, 1], [], []>} : vector<288x64xbf16>, vector<64x128xbf16>, vector<288x128xf32> -> vector<288x128xf32>
    %26 = arith.addf %19, %25 : vector<288x128xf32>
    %c0_22 = arith.constant 0 : index
    %c19 = arith.constant 19 : index
    %c0_23 = arith.constant 0 : index
    %27 = vector.load %arg2[%c0_22, %c19, %c0_23] : memref<1x328x64xf32, #tpu.memory_space<vmem>>, vector<1x288x64xf32>
    %28 = vector.shape_cast %27 : vector<1x288x64xf32> to vector<288x64xf32>
    %29 = arith.truncf %28 : vector<288x64xf32> to vector<288x64xbf16>
    %c4 = arith.constant 4 : index
    %c0_24 = arith.constant 0 : index
    %c0_25 = arith.constant 0 : index
    %30 = vector.load %arg3[%c4, %c0_24, %c0_25] : memref<9x64x128xbf16, #tpu.memory_space<vmem>>, vector<1x64x128xbf16>
    %31 = vector.shape_cast %30 : vector<1x64x128xbf16> to vector<64x128xbf16>
    %cst_26 = arith.constant dense<0.000000e+00> : vector<288x128xf32>
    %32 = tpu.matmul %29, %31, %cst_26 {dimension_numbers = #tpu.dot_dimension_numbers<[1], [0], [0], [1], [0, 0, 1, 1], [], []>} : vector<288x64xbf16>, vector<64x128xbf16>, vector<288x128xf32> -> vector<288x128xf32>
    %33 = arith.addf %26, %32 : vector<288x128xf32>
    %c0_27 = arith.constant 0 : index
    %c20 = arith.constant 20 : index
    %c0_28 = arith.constant 0 : index
    %34 = vector.load %arg2[%c0_27, %c20, %c0_28] : memref<1x328x64xf32, #tpu.memory_space<vmem>>, vector<1x288x64xf32>
    %35 = vector.shape_cast %34 : vector<1x288x64xf32> to vector<288x64xf32>
    %36 = arith.truncf %35 : vector<288x64xf32> to vector<288x64xbf16>
    %c5 = arith.constant 5 : index
    %c0_29 = arith.constant 0 : index
    %c0_30 = arith.constant 0 : index
    %37 = vector.load %arg3[%c5, %c0_29, %c0_30] : memref<9x64x128xbf16, #tpu.memory_space<vmem>>, vector<1x64x128xbf16>
    %38 = vector.shape_cast %37 : vector<1x64x128xbf16> to vector<64x128xbf16>
    %cst_31 = arith.constant dense<0.000000e+00> : vector<288x128xf32>
    %39 = tpu.matmul %36, %38, %cst_31 {dimension_numbers = #tpu.dot_dimension_numbers<[1], [0], [0], [1], [0, 0, 1, 1], [], []>} : vector<288x64xbf16>, vector<64x128xbf16>, vector<288x128xf32> -> vector<288x128xf32>
    %40 = arith.addf %33, %39 : vector<288x128xf32>
    %c0_32 = arith.constant 0 : index
    %c36 = arith.constant 36 : index
    %c0_33 = arith.constant 0 : index
    %41 = vector.load %arg2[%c0_32, %c36, %c0_33] : memref<1x328x64xf32, #tpu.memory_space<vmem>>, vector<1x288x64xf32>
    %42 = vector.shape_cast %41 : vector<1x288x64xf32> to vector<288x64xf32>
    %43 = arith.truncf %42 : vector<288x64xf32> to vector<288x64xbf16>
    %c6 = arith.constant 6 : index
    %c0_34 = arith.constant 0 : index
    %c0_35 = arith.constant 0 : index
    %44 = vector.load %arg3[%c6, %c0_34, %c0_35] : memref<9x64x128xbf16, #tpu.memory_space<vmem>>, vector<1x64x128xbf16>
    %45 = vector.shape_cast %44 : vector<1x64x128xbf16> to vector<64x128xbf16>
    %cst_36 = arith.constant dense<0.000000e+00> : vector<288x128xf32>
    %46 = tpu.matmul %43, %45, %cst_36 {dimension_numbers = #tpu.dot_dimension_numbers<[1], [0], [0], [1], [0, 0, 1, 1], [], []>} : vector<288x64xbf16>, vector<64x128xbf16>, vector<288x128xf32> -> vector<288x128xf32>
    %47 = arith.addf %40, %46 : vector<288x128xf32>
    %c0_37 = arith.constant 0 : index
    %c37 = arith.constant 37 : index
    %c0_38 = arith.constant 0 : index
    %48 = vector.load %arg2[%c0_37, %c37, %c0_38] : memref<1x328x64xf32, #tpu.memory_space<vmem>>, vector<1x288x64xf32>
    %49 = vector.shape_cast %48 : vector<1x288x64xf32> to vector<288x64xf32>
    %50 = arith.truncf %49 : vector<288x64xf32> to vector<288x64xbf16>
    %c7 = arith.constant 7 : index
    %c0_39 = arith.constant 0 : index
    %c0_40 = arith.constant 0 : index
    %51 = vector.load %arg3[%c7, %c0_39, %c0_40] : memref<9x64x128xbf16, #tpu.memory_space<vmem>>, vector<1x64x128xbf16>
    %52 = vector.shape_cast %51 : vector<1x64x128xbf16> to vector<64x128xbf16>
    %cst_41 = arith.constant dense<0.000000e+00> : vector<288x128xf32>
    %53 = tpu.matmul %50, %52, %cst_41 {dimension_numbers = #tpu.dot_dimension_numbers<[1], [0], [0], [1], [0, 0, 1, 1], [], []>} : vector<288x64xbf16>, vector<64x128xbf16>, vector<288x128xf32> -> vector<288x128xf32>
    %54 = arith.addf %47, %53 : vector<288x128xf32>
    %c0_42 = arith.constant 0 : index
    %c38 = arith.constant 38 : index
    %c0_43 = arith.constant 0 : index
    %55 = vector.load %arg2[%c0_42, %c38, %c0_43] : memref<1x328x64xf32, #tpu.memory_space<vmem>>, vector<1x288x64xf32>
    %56 = vector.shape_cast %55 : vector<1x288x64xf32> to vector<288x64xf32>
    %57 = arith.truncf %56 : vector<288x64xf32> to vector<288x64xbf16>
    %c8 = arith.constant 8 : index
    %c0_44 = arith.constant 0 : index
    %c0_45 = arith.constant 0 : index
    %58 = vector.load %arg3[%c8, %c0_44, %c0_45] : memref<9x64x128xbf16, #tpu.memory_space<vmem>>, vector<1x64x128xbf16>
    %59 = vector.shape_cast %58 : vector<1x64x128xbf16> to vector<64x128xbf16>
    %cst_46 = arith.constant dense<0.000000e+00> : vector<288x128xf32>
    %60 = tpu.matmul %57, %59, %cst_46 {dimension_numbers = #tpu.dot_dimension_numbers<[1], [0], [0], [1], [0, 0, 1, 1], [], []>} : vector<288x64xbf16>, vector<64x128xbf16>, vector<288x128xf32> -> vector<288x128xf32>
    %61 = arith.addf %54, %60 : vector<288x128xf32>
    %c0_47 = arith.constant 0 : index
    %c0_48 = arith.constant 0 : index
    %62 = vector.load %arg4[%c0_47, %c0_48] : memref<1x128xf32, #tpu.memory_space<vmem>>, vector<1x128xf32>
    %63 = vector.broadcast %62 : vector<1x128xf32> to vector<288x128xf32>
    %64 = arith.mulf %61, %63 : vector<288x128xf32>
    %c0_49 = arith.constant 0 : index
    %c0_50 = arith.constant 0 : index
    %65 = vector.load %arg5[%c0_49, %c0_50] : memref<1x128xf32, #tpu.memory_space<vmem>>, vector<1x128xf32>
    %66 = vector.broadcast %65 : vector<1x128xf32> to vector<288x128xf32>
    %67 = arith.addf %64, %66 : vector<288x128xf32>
    %cst_51 = arith.constant 0.000000e+00 : f32
    %68 = vector.broadcast %cst_51 : f32 to vector<288x128xf32>
    %69 = arith.maximumf %67, %68 : vector<288x128xf32>
    %c0_52 = arith.constant 0 : index
    %c0_53 = arith.constant 0 : index
    %70 = vector.load %arg6[%c0_52, %c0_53] : memref<288x1xf32, #tpu.memory_space<vmem>>, vector<288x1xf32>
    %71 = vector.broadcast %70 : vector<288x1xf32> to vector<288x128xf32>
    %72 = arith.mulf %69, %71 : vector<288x128xf32>
    %73 = arith.truncf %72 : vector<288x128xf32> to vector<288x128xbf16>
    %c0_54 = arith.constant 0 : index
    %c0_55 = arith.constant 0 : index
    %c0_56 = arith.constant 0 : index
    %74 = vector.load %arg7[%c0_54, %c0_55, %c0_56] : memref<1x288x128xbf16, #tpu.memory_space<vmem>>, vector<1x288x128xbf16>
    %75 = vector.shape_cast %74 : vector<1x288x128xbf16> to vector<288x128xbf16>
    %76 = vector.shape_cast %73 : vector<288x128xbf16> to vector<1x288x128xbf16>
    tpu.vector_store %arg7[%c0_54, %c0_55, %c0_56], %76 {strides = array<i32>} : memref<1x288x128xbf16, #tpu.memory_space<vmem>>, vector<1x288x128xbf16>,
    %cst_57 = arith.constant dense<0.000000e+00> : vector<128xf32>
    %77 = vector.multi_reduction <add>, %72, %cst_57 [0] : vector<288x128xf32> to vector<128xf32>
    %78 = vector.shape_cast %77 : vector<128xf32> to vector<1x128xf32>
    %c0_58 = arith.constant 0 : index
    %c0_59 = arith.constant 0 : index
    %c0_60 = arith.constant 0 : index
    %79 = vector.load %arg8[%c0_58, %c0_59, %c0_60] : memref<1x1x128xf32, #tpu.memory_space<vmem>>, vector<1x1x128xf32>
    %80 = vector.shape_cast %79 : vector<1x1x128xf32> to vector<1x128xf32>
    %81 = vector.shape_cast %78 : vector<1x128xf32> to vector<1x1x128xf32>
    tpu.vector_store %arg8[%c0_58, %c0_59, %c0_60], %81 {strides = array<i32>} : memref<1x1x128xf32, #tpu.memory_space<vmem>>, vector<1x1x128xf32>,
    return
  }
  func.func @transform_0(%arg0: i32, %arg1: i32) -> (i32, i32, i32) {
    %c0_i32 = arith.constant 0 : i32
    %c0_i32_0 = arith.constant 0 : i32
    %c0_i32_1 = arith.constant 0 : i32
    return %arg0, %c0_i32, %c0_i32_0 : i32, i32, i32
  }
  func.func @transform_1(%arg0: i32, %arg1: i32) -> (i32, i32, i32) {
    %c0_i32 = arith.constant 0 : i32
    %c0_i32_0 = arith.constant 0 : i32
    %c0_i32_1 = arith.constant 0 : i32
    return %c0_i32, %c0_i32_0, %arg1 : i32, i32, i32
  }
  func.func @transform_2(%arg0: i32, %arg1: i32) -> (i32, i32) {
    %c0_i32 = arith.constant 0 : i32
    %c0_i32_0 = arith.constant 0 : i32
    return %c0_i32, %arg1 : i32, i32
  }
  func.func @transform_3(%arg0: i32, %arg1: i32) -> (i32, i32) {
    %c0_i32 = arith.constant 0 : i32
    %c0_i32_0 = arith.constant 0 : i32
    return %c0_i32, %arg1 : i32, i32
  }
  func.func @transform_4(%arg0: i32, %arg1: i32) -> (i32, i32) {
    %c0_i32 = arith.constant 0 : i32
    %c0_i32_0 = arith.constant 0 : i32
    %c0_i32_1 = arith.constant 0 : i32
    return %c0_i32, %c0_i32_0 : i32, i32
  }
  func.func @transform_5(%arg0: i32, %arg1: i32) -> (i32, i32, i32) {
    %c0_i32 = arith.constant 0 : i32
    %c0_i32_0 = arith.constant 0 : i32
    return %arg0, %c0_i32, %arg1 : i32, i32, i32
  }
  func.func @transform_6(%arg0: i32, %arg1: i32) -> (i32, i32, i32) {
    %c0_i32 = arith.constant 0 : i32
    %c0_i32_0 = arith.constant 0 : i32
    return %arg0, %c0_i32, %arg1 : i32, i32, i32
  }
}

module attributes {stable_mosaic.version = 11 : i64} {
  func.func @_scale_kernel(%arg0: i32, %arg1: memref<1x288x128xbf16, #tpu.memory_space<vmem>>, %arg2: memref<1x1x128xbf16, #tpu.memory_space<vmem>>, %arg3: memref<1x288x128xbf16, #tpu.memory_space<vmem>>) attributes {dimension_semantics = [#tpu.dimension_semantics<parallel>], iteration_bounds = array<i64: 2>, scalar_prefetch = 0 : i64, scratch_operands = 0 : i64, tpu.core_type = #tpu.core_type<tc>, window_params = [{transform_indices = @transform_0, window_bounds = array<i64: 1, 288, 128>}, {transform_indices = @transform_1, window_bounds = array<i64: 1, 1, 128>}, {transform_indices = @transform_2, window_bounds = array<i64: 1, 288, 128>}]} {
    %c0 = arith.constant 0 : index
    %c0_0 = arith.constant 0 : index
    %c0_1 = arith.constant 0 : index
    %0 = vector.load %arg1[%c0, %c0_0, %c0_1] : memref<1x288x128xbf16, #tpu.memory_space<vmem>>, vector<1x288x128xbf16>
    %c0_2 = arith.constant 0 : index
    %c0_3 = arith.constant 0 : index
    %c0_4 = arith.constant 0 : index
    %1 = vector.load %arg2[%c0_2, %c0_3, %c0_4] : memref<1x1x128xbf16, #tpu.memory_space<vmem>>, vector<1x1x128xbf16>
    %2 = vector.broadcast %1 : vector<1x1x128xbf16> to vector<1x288x128xbf16>
    %3 = arith.mulf %0, %2 : vector<1x288x128xbf16>
    %c0_5 = arith.constant 0 : index
    %c0_6 = arith.constant 0 : index
    %c0_7 = arith.constant 0 : index
    %4 = vector.load %arg3[%c0_5, %c0_6, %c0_7] : memref<1x288x128xbf16, #tpu.memory_space<vmem>>, vector<1x288x128xbf16>
    tpu.vector_store %arg3[%c0_5, %c0_6, %c0_7], %3 {strides = array<i32>} : memref<1x288x128xbf16, #tpu.memory_space<vmem>>, vector<1x288x128xbf16>,
    return
  }
  func.func @transform_0(%arg0: i32) -> (i32, i32, i32) {
    %c0_i32 = arith.constant 0 : i32
    %c0_i32_0 = arith.constant 0 : i32
    %c0_i32_1 = arith.constant 0 : i32
    return %arg0, %c0_i32, %c0_i32_0 : i32, i32, i32
  }
  func.func @transform_1(%arg0: i32) -> (i32, i32, i32) {
    %c0_i32 = arith.constant 0 : i32
    %c0_i32_0 = arith.constant 0 : i32
    %c0_i32_1 = arith.constant 0 : i32
    return %arg0, %c0_i32, %c0_i32_0 : i32, i32, i32
  }
  func.func @transform_2(%arg0: i32) -> (i32, i32, i32) {
    %c0_i32 = arith.constant 0 : i32
    %c0_i32_0 = arith.constant 0 : i32
    %c0_i32_1 = arith.constant 0 : i32
    return %arg0, %c0_i32, %c0_i32_0 : i32, i32, i32
  }
}

</mosaic_0001>

<llo_original>
// kernel: arm_forward.3
$region0: #{arm_forward.3}
  #allocation0 [shape = 'u32[]', space=smem, size = 0x4, offset = 0x4, fixed_abs, tag = 'smem constant byte address 0x4 - core index']
  #allocation1 [shape = 'u32[144,128]{1,0:T(1,128)}', space=vmem, size = 0x12000, scoped, tag = 'internal scratch']
  %s0 = inlined_call_operand.vmem [shape: bf16[2,288,128], index: 0, kind: input, shape index: {}]
  %s1 = inlined_call_operand.vmem [shape: bf16[2,1,128], index: 1, kind: input, shape index: {}]
  %s2 = inlined_call_operand.vmem [shape: bf16[2,288,128], index: 2, kind: output, shape index: {}]
  %s3 = sld [smem:[#allocation0]]
  $region41: #{arm_forward.3} parent=0
    _
  %s5 = ssub.s32 1, %s3
  %s6 = scalar_select 0, %s5, %s3
  loop: start=0, step=1, limit=4
  $region2: #{arm_forward.3} parent=0 // loop_pre_header
    _
  $region3: #{arm_forward.3} parent=0 // loop_header
    %s8 = sphi 0, %s12
    %p9 = scmp.ge.s32.totalorder %s8, 4
    %s18 = sphi 0, %s20
    %s21 = sphi 0, %s18
    %s22 = sphi 0, %s21
    %s38 = sphi 0, %s22
    %s44 = sphi 0, %s46
    %s47 = sphi 0, %s44
    %s48 = sphi 0, %s47
    %s64 = sphi 0, %s48
    %s70 = sphi 0, %s72
    %s73 = sphi 0, %s70
    %s74 = sphi 0, %s73
    %s90 = sphi 0, %s74
  $region4: #{arm_forward.3} parent=0 // loop_header_branch
    %11 = sbr.rel (%p9) target = $region8
  $region5: #{arm_forward.3} parent=0 // loop_body
    %s13 = ssub.s32 %s8, 1
    %s14 = ssub.s32 %s8, 2
    %s15 = sadd.s32 %s8, 1
    %s16 = ssub.s32 %s8, %s15
    %p17 = scmp.eq.s32.totalorder %s16, 0
    %s19 = sadd.s32 %s18, 1
    %s20 = scalar_select %p17, %s18, %s19
    %p23 = pneg %p17
    %p24 = scmp.eq.s32.totalorder %s8, 1
    %p25 = por %p23, %p24
    %p26 = scmp.ne.s32.totalorder %s18, %s21
    %p27 = scmp.eq.s32.totalorder %s8, 0
    %p28 = por %p26, %p27
    %p29 = scmp.ne.s32.totalorder %s18, %s21
    %p30 = scmp.eq.s32.totalorder %s13, 1
    %p31 = por %p29, %p30
    %p32 = scmp.ne.s32.totalorder %s21, %s22
    %p33 = scmp.eq.s32.totalorder %s13, 0
    %p34 = por %p32, %p33
    %p35 = scmp.ne.s32.totalorder %s21, %s22
    %p36 = scmp.eq.s32.totalorder %s14, 1
    %p37 = por %p35, %p36
    %p39 = scmp.ne.s32.totalorder %s22, %s38
    %p40 = scmp.eq.s32.totalorder %s14, 0
    %p41 = por %p39, %p40
    %s42 = ssub.s32 %s8, %s15
    %p43 = scmp.eq.s32.totalorder %s42, 0
    %s45 = sadd.s32 %s44, 1
    %s46 = scalar_select %p43, %s44, %s45
    %p49 = pneg %p43
    %p50 = scmp.eq.s32.totalorder %s8, 1
    %p51 = por %p49, %p50
    %p52 = scmp.ne.s32.totalorder %s44, %s47
    %p53 = scmp.eq.s32.totalorder %s8, 0
    %p54 = por %p52, %p53
    %p55 = scmp.ne.s32.totalorder %s44, %s47
    %p56 = scmp.eq.s32.totalorder %s13, 1
    %p57 = por %p55, %p56
    %p58 = scmp.ne.s32.totalorder %s47, %s48
    %p59 = scmp.eq.s32.totalorder %s13, 0
    %p60 = por %p58, %p59
    %p61 = scmp.ne.s32.totalorder %s47, %s48
    %p62 = scmp.eq.s32.totalorder %s14, 1
    %p63 = por %p61, %p62
    %p65 = scmp.ne.s32.totalorder %s48, %s64
    %p66 = scmp.eq.s32.totalorder %s14, 0
    %p67 = por %p65, %p66
    %s68 = ssub.s32 %s8, %s15
    %p69 = scmp.eq.s32.totalorder %s68, 0
    %s71 = sadd.s32 %s70, 1
    %s72 = scalar_select %p69, %s70, %s71
    %p75 = pneg %p69
    %p76 = scmp.eq.s32.totalorder %s8, 1
    %p77 = por %p75, %p76
    %p78 = scmp.ne.s32.totalorder %s70, %s73
    %p79 = scmp.eq.s32.totalorder %s8, 0
    %p80 = por %p78, %p79
    %p81 = scmp.ne.s32.totalorder %s70, %s73
    %p82 = scmp.eq.s32.totalorder %s13, 1
    %p83 = por %p81, %p82
    %p84 = scmp.ne.s32.totalorder %s73, %s74
    %p85 = scmp.eq.s32.totalorder %s13, 0
    %p86 = por %p84, %p85
    %p87 = scmp.ne.s32.totalorder %s73, %s74
    %p88 = scmp.eq.s32.totalorder %s14, 1
    %p89 = por %p87, %p88
    %p91 = scmp.ne.s32.totalorder %s74, %s90
    %p92 = scmp.eq.s32.totalorder %s14, 0
    %p93 = por %p91, %p92
    %p94 = scmp.le.s32.totalorder 1, %s8
    %p95 = scmp.lt.s32.totalorder %s8, 3
    %p96 = pnand %p94, %p95
    %p97 = pneg %p96
    // Predicated region
    $region9: #{arm_forward.3} parent=5 // pred_check
      _
    $region10: #{arm_forward.3} parent=5 // pred_check_branch
      %99 = sbr.rel (%p96) target = $region12
    $region11: #{arm_forward.3} parent=5 // pred_region
      %s100 = ssub.s32 %s8, 1
    $region12: #{arm_forward.3} parent=5 // pred_fallthru
      _
    %p101 = scmp.lt.s32.totalorder %s8, 2
    // Predicated region
    $region13: #{arm_forward.3} parent=5 // pred_check
      %p102 = pneg %p101
    $region14: #{arm_forward.3} parent=5 // pred_check_branch
      %104 = sbr.rel (%p102) target = $region16
    $region15: #{arm_forward.3} parent=5 // pred_region
      // Predicated region
      $region17: #{arm_forward.3} parent=15 // pred_check
        %p105 = pneg %p28
      $region18: #{arm_forward.3} parent=15 // pred_check_branch
        %107 = sbr.rel (%p105) target = $region20
      $region19: #{arm_forward.3} parent=15 // pred_region
        %p108 = scmp.lt.s32.totalorder %s8, 1
        %s109 = scalar_select %p108, %s8, 1
        %s110 = smul.addr %s109, 36
        %s111 = smul.addr %s110, 4
        %s112 = scalar_lea.vmem %s0, %s111
      $region20: #{arm_forward.3} parent=15 // pred_fallthru
        _
      // Predicated region
      $region21: #{arm_forward.3} parent=15 // pred_check
        %p113 = pneg %p54
      $region22: #{arm_forward.3} parent=15 // pred_check_branch
        %115 = sbr.rel (%p113) target = $region24
      $region23: #{arm_forward.3} parent=15 // pred_region
        %p116 = scmp.lt.s32.totalorder %s8, 1
        %s117 = scalar_select %p116, %s8, 1
        %s118 = scalar_lea.vmem %s1, %s117
      $region24: #{arm_forward.3} parent=15 // pred_fallthru
        _
    $region16: #{arm_forward.3} parent=5 // pred_fallthru
      _
    %p119 = scmp.le.s32.totalorder 1, %s8
    %p120 = scmp.lt.s32.totalorder %s8, 3
    %p121 = pnand %p119, %p120
    %p122 = pneg %p121
    // Predicated region
    $region25: #{arm_forward.3} parent=5 // pred_check
      _
    $region26: #{arm_forward.3} parent=5 // pred_check_branch
      %124 = sbr.rel (%p121) target = $region28
    $region27: #{arm_forward.3} parent=5 // pred_region
      %s125 = ssub.s32 %s8, 1
      %p126 = scmp.lt.s32.totalorder %s13, 1
      %s127 = scalar_select %p126, %s13, 1
      %s128 = smul.addr %s127, 36
      %s129 = smul.addr %s128, 4
      %s130 = scalar_lea.vmem %s0, %s129
      %p131 = pneg %p34
      %p132 = pneg %p31
      %p133 = scmp.lt.s32.totalorder %s13, 1
      %s134 = scalar_select %p133, %s13, 1
      %s135 = scalar_lea.vmem %s1, %s134
      %p136 = pneg %p60
      %p137 = pneg %p57
      %p138 = pneg %p86
      %p139 = pneg %p83
      %p140 = scmp.lt.s32.totalorder %s13, 1
      %s141 = scalar_select %p140, %s13, 1
      %s142 = smul.addr %s141, 36
      %s143 = smul.addr %s142, 4
      %s144 = scalar_lea.vmem %s2, %s143
      %p145 = scmp.lt.s32.totalorder %s13, 1
      %s146 = scalar_select %p145, %s13, 1
      %s147 = smul.addr %s146, 36
      %s148 = smul.addr %s147, 4
      %s149 = scalar_lea.vmem %s0, %s148
      %p150 = scmp.lt.s32.totalorder %s13, 1
      %s151 = scalar_select %p150, %s13, 1
      %s152 = scalar_lea.vmem %s1, %s151
      %p153 = scmp.lt.s32.totalorder %s13, 1
      %s154 = scalar_select %p153, %s13, 1
      %s155 = smul.addr %s154, 36
      %s156 = smul.addr %s155, 4
      %s157 = scalar_lea.vmem %s2, %s156
      %v158 = vld [vmem:[%s149] sm:$0xf]
      %v159 = vld [vmem:[%s149 + $0x4] sm:$0xf]
      %v160 = vld [vmem:[%s149 + $0x8] sm:$0xf]
      %v161 = vld [vmem:[%s149 + $0xc] sm:$0xf]
      %v162 = vld [vmem:[%s149 + $0x10] sm:$0xf]
      %v163 = vld [vmem:[%s149 + $0x14] sm:$0xf]
      %v164 = vld [vmem:[%s149 + $0x18] sm:$0xf]
      %v165 = vld [vmem:[%s149 + $0x1c] sm:$0xf]
      %v166 = vld [vmem:[%s149 + $0x20] sm:$0xf]
      %v167 = vld [vmem:[%s149 + $0x24] sm:$0xf]
      %v168 = vld [vmem:[%s149 + $0x28] sm:$0xf]
      %v169 = vld [vmem:[%s149 + $0x2c] sm:$0xf]
      %v170 = vld [vmem:[%s149 + $0x30] sm:$0xf]
      %v171 = vld [vmem:[%s149 + $0x34] sm:$0xf]
      %v172 = vld [vmem:[%s149 + $0x38] sm:$0xf]
      %v173 = vld [vmem:[%s149 + $0x3c] sm:$0xf]
      %v174 = vld [vmem:[%s149 + $0x40] sm:$0xf]
      %v175 = vld [vmem:[%s149 + $0x44] sm:$0xf]
      %v176 = vld [vmem:[%s149 + $0x48] sm:$0xf]
      %v177 = vld [vmem:[%s149 + $0x4c] sm:$0xf]
      %v178 = vld [vmem:[%s149 + $0x50] sm:$0xf]
      %v179 = vld [vmem:[%s149 + $0x54] sm:$0xf]
      %v180 = vld [vmem:[%s149 + $0x58] sm:$0xf]
      %v181 = vld [vmem:[%s149 + $0x5c] sm:$0xf]
      %v182 = vld [vmem:[%s149 + $0x60] sm:$0xf]
      %v183 = vld [vmem:[%s149 + $0x64] sm:$0xf]
      %v184 = vld [vmem:[%s149 + $0x68] sm:$0xf]
      %v185 = vld [vmem:[%s149 + $0x6c] sm:$0xf]
      %v186 = vld [vmem:[%s149 + $0x70] sm:$0xf]
      %v187 = vld [vmem:[%s149 + $0x74] sm:$0xf]
      %v188 = vld [vmem:[%s149 + $0x78] sm:$0xf]
      %v189 = vld [vmem:[%s149 + $0x7c] sm:$0xf]
      %v190 = vld [vmem:[%s149 + $0x80] sm:$0xf]
      %v191 = vld [vmem:[%s149 + $0x84] sm:$0xf]
      %v192 = vld [vmem:[%s149 + $0x88] sm:$0xf]
      %v193 = vld [vmem:[%s149 + $0x8c] sm:$0xf]
      %v194 = vld [vmem:[%s152] sm:$0x1]
      %v196 = vpack.i.b16 %v194, %v194
      %v198 = vlaneseq
      %v199 = vshrl.u32 %v198, 7
      %v200 = vsub.s32 0, %v199
      %v201 = vrot.slane %v196, %v200
      %v203 = vunpack.c.l.b16 %v201
      %v204 = vpack.c.b16 %v203, %v203
      %v206 = vmul.bf16 %v158, %v204
      %v207 = vmul.bf16 %v159, %v204
      %v208 = vmul.bf16 %v160, %v204
      %v209 = vmul.bf16 %v161, %v204
      %v210 = vmul.bf16 %v162, %v204
      %v211 = vmul.bf16 %v163, %v204
      %v212 = vmul.bf16 %v164, %v204
      %v213 = vmul.bf16 %v165, %v204
      %v214 = vmul.bf16 %v166, %v204
      %v215 = vmul.bf16 %v167, %v204
      %v216 = vmul.bf16 %v168, %v204
      %v217 = vmul.bf16 %v169, %v204
      %v218 = vmul.bf16 %v170, %v204
      %v219 = vmul.bf16 %v171, %v204
      %v220 = vmul.bf16 %v172, %v204
      %v221 = vmul.bf16 %v173, %v204
      %v222 = vmul.bf16 %v174, %v204
      %v223 = vmul.bf16 %v175, %v204
      %v224 = vmul.bf16 %v176, %v204
      %v225 = vmul.bf16 %v177, %v204
      %v226 = vmul.bf16 %v178, %v204
      %v227 = vmul.bf16 %v179, %v204
      %v228 = vmul.bf16 %v180, %v204
      %v229 = vmul.bf16 %v181, %v204
      %v230 = vmul.bf16 %v182, %v204
      %v231 = vmul.bf16 %v183, %v204
      %v232 = vmul.bf16 %v184, %v204
      %v233 = vmul.bf16 %v185, %v204
      %v234 = vmul.bf16 %v186, %v204
      %v235 = vmul.bf16 %v187, %v204
      %v236 = vmul.bf16 %v188, %v204
      %v237 = vmul.bf16 %v189, %v204
      %v238 = vmul.bf16 %v190, %v204
      %v239 = vmul.bf16 %v191, %v204
      %v240 = vmul.bf16 %v192, %v204
      %v241 = vmul.bf16 %v193, %v204
      %242 = vst [vmem:[%s157] sm:$0xf] %v206
      %243 = vst [vmem:[%s157 + $0x4] sm:$0xf] %v207
      %244 = vst [vmem:[%s157 + $0x8] sm:$0xf] %v208
      %245 = vst [vmem:[%s157 + $0xc] sm:$0xf] %v209
      %246 = vst [vmem:[%s157 + $0x10] sm:$0xf] %v210
      %247 = vst [vmem:[%s157 + $0x14] sm:$0xf] %v211
      %248 = vst [vmem:[%s157 + $0x18] sm:$0xf] %v212
      %249 = vst [vmem:[%s157 + $0x1c] sm:$0xf] %v213
      %250 = vst [vmem:[%s157 + $0x20] sm:$0xf] %v214
      %251 = vst [vmem:[%s157 + $0x24] sm:$0xf] %v215
      %252 = vst [vmem:[%s157 + $0x28] sm:$0xf] %v216
      %253 = vst [vmem:[%s157 + $0x2c] sm:$0xf] %v217
      %254 = vst [vmem:[%s157 + $0x30] sm:$0xf] %v218
      %255 = vst [vmem:[%s157 + $0x34] sm:$0xf] %v219
      %256 = vst [vmem:[%s157 + $0x38] sm:$0xf] %v220
      %257 = vst [vmem:[%s157 + $0x3c] sm:$0xf] %v221
      %258 = vst [vmem:[%s157 + $0x40] sm:$0xf] %v222
      %259 = vst [vmem:[%s157 + $0x44] sm:$0xf] %v223
      %260 = vst [vmem:[%s157 + $0x48] sm:$0xf] %v224
      %261 = vst [vmem:[%s157 + $0x4c] sm:$0xf] %v225
      %262 = vst [vmem:[%s157 + $0x50] sm:$0xf] %v226
      %263 = vst [vmem:[%s157 + $0x54] sm:$0xf] %v227
      %264 = vst [vmem:[%s157 + $0x58] sm:$0xf] %v228
      %265 = vst [vmem:[%s157 + $0x5c] sm:$0xf] %v229
      %266 = vst [vmem:[%s157 + $0x60] sm:$0xf] %v230
      %267 = vst [vmem:[%s157 + $0x64] sm:$0xf] %v231
      %268 = vst [vmem:[%s157 + $0x68] sm:$0xf] %v232
      %269 = vst [vmem:[%s157 + $0x6c] sm:$0xf] %v233
      %270 = vst [vmem:[%s157 + $0x70] sm:$0xf] %v234
      %271 = vst [vmem:[%s157 + $0x74] sm:$0xf] %v235
      %272 = vst [vmem:[%s157 + $0x78] sm:$0xf] %v236
      %273 = vst [vmem:[%s157 + $0x7c] sm:$0xf] %v237
      %274 = vst [vmem:[%s157 + $0x80] sm:$0xf] %v238
      %275 = vst [vmem:[%s157 + $0x84] sm:$0xf] %v239
      %276 = vst [vmem:[%s157 + $0x88] sm:$0xf] %v240
      %277 = vst [vmem:[%s157 + $0x8c] sm:$0xf] %v241
      %p278 = scmp.lt.s32.totalorder %s13, 1
      %s279 = scalar_select %p278, %s13, 1
      %s280 = smul.addr %s279, 36
      %s281 = smul.addr %s280, 4
      %s282 = scalar_lea.vmem %s2, %s281
      // Predicated region
      $region29: #{arm_forward.3} parent=27 // pred_check
        %p283 = pneg %p83
      $region30: #{arm_forward.3} parent=27 // pred_check_branch
        %285 = sbr.rel (%p283) target = $region32
      $region31: #{arm_forward.3} parent=27 // pred_region
        _
      $region32: #{arm_forward.3} parent=27 // pred_fallthru
        _
    $region28: #{arm_forward.3} parent=5 // pred_fallthru
      _
    %p286 = scmp.le.s32.totalorder 2, %s8
    // Predicated region
    $region33: #{arm_forward.3} parent=5 // pred_check
      %p287 = pneg %p286
    $region34: #{arm_forward.3} parent=5 // pred_check_branch
      %289 = sbr.rel (%p287) target = $region36
    $region35: #{arm_forward.3} parent=5 // pred_region
      %s290 = ssub.s32 %s8, 2
      // Predicated region
      $region37: #{arm_forward.3} parent=35 // pred_check
        %p291 = pneg %p89
      $region38: #{arm_forward.3} parent=35 // pred_check_branch
        %293 = sbr.rel (%p291) target = $region40
      $region39: #{arm_forward.3} parent=35 // pred_region
        %p294 = scmp.lt.s32.totalorder %s14, 1
        %s295 = scalar_select %p294, %s14, 1
        %s296 = smul.addr %s295, 36
        %s297 = smul.addr %s296, 4
        %s298 = scalar_lea.vmem %s2, %s297
      $region40: #{arm_forward.3} parent=35 // pred_fallthru
        _
    $region36: #{arm_forward.3} parent=5 // pred_fallthru
      _
  $region6: #{arm_forward.3} parent=0 // loop_footer
    %s12 = sadd.s32 1, %s8
  $region7: #{arm_forward.3} parent=0 // loop_footer_branch
    %7 = sbr.rel target = $region3
  $region8: #{arm_forward.3} parent=0 // loop_exit
    _

// kernel: arm_forward.2
$region0: #{arm_forward.2}
  #allocation0 [shape = 'u32[]', space=smem, size = 0x4, offset = 0x4, fixed_abs, tag = 'smem constant byte address 0x4 - core index']
  #allocation1 [shape = 'u32[144,128]{1,0:T(1,128)}', space=vmem, size = 0x12000, scoped, tag = 'internal scratch']
  %s0 = inlined_call_operand.vmem [shape: f32[2,328,64], index: 0, kind: input, shape index: {}]
  %s1 = inlined_call_operand.vmem [shape: bf16[9,64,128], index: 1, kind: input, shape index: {}]
  %s2 = inlined_call_operand.vmem [shape: f32[1,128], index: 2, kind: input, shape index: {}]
  %s3 = inlined_call_operand.vmem [shape: f32[1,128], index: 3, kind: input, shape index: {}]
  %s4 = inlined_call_operand.vmem [shape: f32[288,1], index: 4, kind: input, shape index: {}]
  %s5 = inlined_call_operand.vmem [shape: bf16[2,288,128], index: 5, kind: output, shape index: {0}]
  %s6 = inlined_call_operand.vmem [shape: f32[2,1,128], index: 6, kind: output, shape index: {1}]
  %7 = xla_tuple %s5, %s6
  %s8 = sld [smem:[#allocation0]]
  $region61: #{arm_forward.2} parent=0
    _
  %s10 = ssub.s32 1, %s8
  %s11 = scalar_select 0, %s10, %s8
  loop: start=0, step=1, limit=4
  $region2: #{arm_forward.2} parent=0 // loop_pre_header
    _
  $region3: #{arm_forward.2} parent=0 // loop_header
    %s13 = sphi 0, %s17
    %p14 = scmp.ge.s32.totalorder %s13, 4
    %s20 = sphi 0, %s32
    %s21 = sphi 0, %s28
    %s22 = sphi 0, %s20
    %s23 = sphi 0, %s21
    %s24 = sphi 0, %s22
    %s25 = sphi 0, %s23
    %s35 = sphi 0, %s37
    %s38 = sphi 0, %s35
    %s39 = sphi 0, %s38
    %s55 = sphi 0, %s39
    %s61 = sphi 0, %s63
    %s64 = sphi 0, %s61
    %s65 = sphi 0, %s64
    %s81 = sphi 0, %s65
    %s87 = sphi 0, %s89
    %s90 = sphi 0, %s87
    %s91 = sphi 0, %s90
    %s107 = sphi 0, %s91
    %s113 = sphi 0, %s115
    %s116 = sphi 0, %s113
    %s117 = sphi 0, %s116
    %s133 = sphi 0, %s117
    %s137 = sphi 0, %s137
    %s139 = sphi 0, %s137
    %s140 = sphi 0, %s139
    %s154 = sphi 0, %s140
    %s162 = sphi 0, %s164
    %s165 = sphi 0, %s162
    %s166 = sphi 0, %s165
    %s182 = sphi 0, %s166
    %s190 = sphi 0, %s192
    %s193 = sphi 0, %s190
    %s194 = sphi 0, %s193
    %s210 = sphi 0, %s194
  $region4: #{arm_forward.2} parent=0 // loop_header_branch
    %16 = sbr.rel (%p14) target = $region8
  $region5: #{arm_forward.2} parent=0 // loop_body
    %s18 = ssub.s32 %s13, 1
    %s19 = ssub.s32 %s13, 2
    %s26 = sadd.s32 1, %s21
    %p27 = scmp.ge.s32.totalorder %s26, 1
    %s28 = scalar_select %p27, 0, %s26
    %s29 = sadd.s32 1, %s20
    %s30 = scalar_select %p27, %s29, %s20
    %p31 = scmp.ge.s32.totalorder %s30, 2
    %s32 = scalar_select %p31, 0, %s30
    %s33 = ssub.s32 %s20, %s32
    %p34 = scmp.eq.s32.totalorder %s33, 0
    %s36 = sadd.s32 %s35, 1
    %s37 = scalar_select %p34, %s35, %s36
    %p40 = pneg %p34
    %p41 = scmp.eq.s32.totalorder %s13, 1
    %p42 = por %p40, %p41
    %p43 = scmp.ne.s32.totalorder %s35, %s38
    %p44 = scmp.eq.s32.totalorder %s13, 0
    %p45 = por %p43, %p44
    %p46 = scmp.ne.s32.totalorder %s35, %s38
    %p47 = scmp.eq.s32.totalorder %s18, 1
    %p48 = por %p46, %p47
    %p49 = scmp.ne.s32.totalorder %s38, %s39
    %p50 = scmp.eq.s32.totalorder %s18, 0
    %p51 = por %p49, %p50
    %p52 = scmp.ne.s32.totalorder %s38, %s39
    %p53 = scmp.eq.s32.totalorder %s19, 1
    %p54 = por %p52, %p53
    %p56 = scmp.ne.s32.totalorder %s39, %s55
    %p57 = scmp.eq.s32.totalorder %s19, 0
    %p58 = por %p56, %p57
    %s59 = ssub.s32 %s21, %s28
    %p60 = scmp.eq.s32.totalorder %s59, 0
    %s62 = sadd.s32 %s61, 1
    %s63 = scalar_select %p60, %s61, %s62
    %p66 = pneg %p60
    %p67 = scmp.eq.s32.totalorder %s13, 1
    %p68 = por %p66, %p67
    %p69 = scmp.ne.s32.totalorder %s61, %s64
    %p70 = scmp.eq.s32.totalorder %s13, 0
    %p71 = por %p69, %p70
    %p72 = scmp.ne.s32.totalorder %s61, %s64
    %p73 = scmp.eq.s32.totalorder %s18, 1
    %p74 = por %p72, %p73
    %p75 = scmp.ne.s32.totalorder %s64, %s65
    %p76 = scmp.eq.s32.totalorder %s18, 0
    %p77 = por %p75, %p76
    %p78 = scmp.ne.s32.totalorder %s64, %s65
    %p79 = scmp.eq.s32.totalorder %s19, 1
    %p80 = por %p78, %p79
    %p82 = scmp.ne.s32.totalorder %s65, %s81
    %p83 = scmp.eq.s32.totalorder %s19, 0
    %p84 = por %p82, %p83
    %s85 = ssub.s32 %s21, %s28
    %p86 = scmp.eq.s32.totalorder %s85, 0
    %s88 = sadd.s32 %s87, 1
    %s89 = scalar_select %p86, %s87, %s88
    %p92 = pneg %p86
    %p93 = scmp.eq.s32.totalorder %s13, 1
    %p94 = por %p92, %p93
    %p95 = scmp.ne.s32.totalorder %s87, %s90
    %p96 = scmp.eq.s32.totalorder %s13, 0
    %p97 = por %p95, %p96
    %p98 = scmp.ne.s32.totalorder %s87, %s90
    %p99 = scmp.eq.s32.totalorder %s18, 1
    %p100 = por %p98, %p99
    %p101 = scmp.ne.s32.totalorder %s90, %s91
    %p102 = scmp.eq.s32.totalorder %s18, 0
    %p103 = por %p101, %p102
    %p104 = scmp.ne.s32.totalorder %s90, %s91
    %p105 = scmp.eq.s32.totalorder %s19, 1
    %p106 = por %p104, %p105
    %p108 = scmp.ne.s32.totalorder %s91, %s107
    %p109 = scmp.eq.s32.totalorder %s19, 0
    %p110 = por %p108, %p109
    %s111 = ssub.s32 %s21, %s28
    %p112 = scmp.eq.s32.totalorder %s111, 0
    %s114 = sadd.s32 %s113, 1
    %s115 = scalar_select %p112, %s113, %s114
    %p118 = pneg %p112
    %p119 = scmp.eq.s32.totalorder %s13, 1
    %p120 = por %p118, %p119
    %p121 = scmp.ne.s32.totalorder %s113, %s116
    %p122 = scmp.eq.s32.totalorder %s13, 0
    %p123 = por %p121, %p122
    %p124 = scmp.ne.s32.totalorder %s113, %s116
    %p125 = scmp.eq.s32.totalorder %s18, 1
    %p126 = por %p124, %p125
    %p127 = scmp.ne.s32.totalorder %s116, %s117
    %p128 = scmp.eq.s32.totalorder %s18, 0
    %p129 = por %p127, %p128
    %p130 = scmp.ne.s32.totalorder %s116, %s117
    %p131 = scmp.eq.s32.totalorder %s19, 1
    %p132 = por %p130, %p131
    %p134 = scmp.ne.s32.totalorder %s117, %s133
    %p135 = scmp.eq.s32.totalorder %s19, 0
    %p136 = por %p134, %p135
    %s138 = sadd.s32 %s137, 1
    %p141 = scmp.eq.s32.totalorder %s13, 1
    %p142 = scmp.ne.s32.totalorder %s137, %s139
    %p143 = scmp.eq.s32.totalorder %s13, 0
    %p144 = por %p142, %p143
    %p145 = scmp.ne.s32.totalorder %s137, %s139
    %p146 = scmp.eq.s32.totalorder %s18, 1
    %p147 = por %p145, %p146
    %p148 = scmp.ne.s32.totalorder %s139, %s140
    %p149 = scmp.eq.s32.totalorder %s18, 0
    %p150 = por %p148, %p149
    %p151 = scmp.ne.s32.totalorder %s139, %s140
    %p152 = scmp.eq.s32.totalorder %s19, 1
    %p153 = por %p151, %p152
    %p155 = scmp.ne.s32.totalorder %s140, %s154
    %p156 = scmp.eq.s32.totalorder %s19, 0
    %p157 = por %p155, %p156
    %s158 = ssub.s32 %s20, %s32
    %s159 = ssub.s32 %s21, %s28
    %s160 = sor.u32 %s158, %s159
    %p161 = scmp.eq.s32.totalorder %s160, 0
    %s163 = sadd.s32 %s162, 1
    %s164 = scalar_select %p161, %s162, %s163
    %p167 = pneg %p161
    %p168 = scmp.eq.s32.totalorder %s13, 1
    %p169 = por %p167, %p168
    %p170 = scmp.ne.s32.totalorder %s162, %s165
    %p171 = scmp.eq.s32.totalorder %s13, 0
    %p172 = por %p170, %p171
    %p173 = scmp.ne.s32.totalorder %s162, %s165
    %p174 = scmp.eq.s32.totalorder %s18, 1
    %p175 = por %p173, %p174
    %p176 = scmp.ne.s32.totalorder %s165, %s166
    %p177 = scmp.eq.s32.totalorder %s18, 0
    %p178 = por %p176, %p177
    %p179 = scmp.ne.s32.totalorder %s165, %s166
    %p180 = scmp.eq.s32.totalorder %s19, 1
    %p181 = por %p179, %p180
    %p183 = scmp.ne.s32.totalorder %s166, %s182
    %p184 = scmp.eq.s32.totalorder %s19, 0
    %p185 = por %p183, %p184
    %s186 = ssub.s32 %s20, %s32
    %s187 = ssub.s32 %s21, %s28
    %s188 = sor.u32 %s186, %s187
    %p189 = scmp.eq.s32.totalorder %s188, 0
    %s191 = sadd.s32 %s190, 1
    %s192 = scalar_select %p189, %s190, %s191
    %p195 = pneg %p189
    %p196 = scmp.eq.s32.totalorder %s13, 1
    %p197 = por %p195, %p196
    %p198 = scmp.ne.s32.totalorder %s190, %s193
    %p199 = scmp.eq.s32.totalorder %s13, 0
    %p200 = por %p198, %p199
    %p201 = scmp.ne.s32.totalorder %s190, %s193
    %p202 = scmp.eq.s32.totalorder %s18, 1
    %p203 = por %p201, %p202
    %p204 = scmp.ne.s32.totalorder %s193, %s194
    %p205 = scmp.eq.s32.totalorder %s18, 0
    %p206 = por %p204, %p205
    %p207 = scmp.ne.s32.totalorder %s193, %s194
    %p208 = scmp.eq.s32.totalorder %s19, 1
    %p209 = por %p207, %p208
    %p211 = scmp.ne.s32.totalorder %s194, %s210
    %p212 = scmp.eq.s32.totalorder %s19, 0
    %p213 = por %p211, %p212
    %p214 = scmp.le.s32.totalorder 1, %s13
    %p215 = scmp.lt.s32.totalorder %s13, 3
    %p216 = pnand %p214, %p215
    %p217 = pneg %p216
    // Predicated region
    $region9: #{arm_forward.2} parent=5 // pred_check
      _
    $region10: #{arm_forward.2} parent=5 // pred_check_branch
      %219 = sbr.rel (%p216) target = $region12
    $region11: #{arm_forward.2} parent=5 // pred_region
      %s220 = ssub.s32 %s13, 1
      // Predicated region
      $region13: #{arm_forward.2} parent=11 // pred_check
        %p221 = pneg %p77
      $region14: #{arm_forward.2} parent=11 // pred_check_branch
        %223 = sbr.rel (%p221) target = $region16
      $region15: #{arm_forward.2} parent=11 // pred_region
        %p224 = scmp.lt.s32.totalorder %s23, 0
        %s225 = scalar_select %p224, %s23, 0
        %s226 = smul.addr %s225, 4
        %s227 = scalar_lea.vmem %s1, %s226
      $region16: #{arm_forward.2} parent=11 // pred_fallthru
        _
      // Predicated region
      $region17: #{arm_forward.2} parent=11 // pred_check
        %p228 = pneg %p103
      $region18: #{arm_forward.2} parent=11 // pred_check_branch
        %230 = sbr.rel (%p228) target = $region20
      $region19: #{arm_forward.2} parent=11 // pred_region
        %p231 = scmp.lt.s32.totalorder %s23, 0
        %s232 = scalar_select %p231, %s23, 0
        %s233 = scalar_lea.vmem %s2, %s232
      $region20: #{arm_forward.2} parent=11 // pred_fallthru
        _
      // Predicated region
      $region21: #{arm_forward.2} parent=11 // pred_check
        %p234 = pneg %p129
      $region22: #{arm_forward.2} parent=11 // pred_check_branch
        %236 = sbr.rel (%p234) target = $region24
      $region23: #{arm_forward.2} parent=11 // pred_region
        %p237 = scmp.lt.s32.totalorder %s23, 0
        %s238 = scalar_select %p237, %s23, 0
        %s239 = scalar_lea.vmem %s3, %s238
      $region24: #{arm_forward.2} parent=11 // pred_fallthru
        _
      // Predicated region
      $region25: #{arm_forward.2} parent=11 // pred_check
        %p240 = pneg %p150
      $region26: #{arm_forward.2} parent=11 // pred_check_branch
        %242 = sbr.rel (%p240) target = $region28
      $region27: #{arm_forward.2} parent=11 // pred_region
        _
      $region28: #{arm_forward.2} parent=11 // pred_fallthru
        _
    $region12: #{arm_forward.2} parent=5 // pred_fallthru
      _
    %p243 = scmp.lt.s32.totalorder %s13, 2
    // Predicated region
    $region29: #{arm_forward.2} parent=5 // pred_check
      %p244 = pneg %p243
    $region30: #{arm_forward.2} parent=5 // pred_check_branch
      %246 = sbr.rel (%p244) target = $region32
    $region31: #{arm_forward.2} parent=5 // pred_region
      // Predicated region
      $region33: #{arm_forward.2} parent=31 // pred_check
        %p247 = pneg %p45
      $region34: #{arm_forward.2} parent=31 // pred_check_branch
        %249 = sbr.rel (%p247) target = $region36
      $region35: #{arm_forward.2} parent=31 // pred_region
        %p250 = scmp.lt.s32.totalorder %s20, 1
        %s251 = scalar_select %p250, %s20, 1
        %s252 = smul.addr %s251, 41
        %s253 = smul.addr %s252, 8
        %s254 = scalar_lea.vmem %s0, %s253
      $region36: #{arm_forward.2} parent=31 // pred_fallthru
        _
    $region32: #{arm_forward.2} parent=5 // pred_fallthru
      _
    %p255 = scmp.le.s32.totalorder 1, %s13
    %p256 = scmp.lt.s32.totalorder %s13, 3
    %p257 = pnand %p255, %p256
    %p258 = pneg %p257
    // Predicated region
    $region37: #{arm_forward.2} parent=5 // pred_check
      _
    $region38: #{arm_forward.2} parent=5 // pred_check_branch
      %260 = sbr.rel (%p257) target = $region40
    $region39: #{arm_forward.2} parent=5 // pred_region
      %s261 = ssub.s32 %s13, 1
      %p262 = scmp.lt.s32.totalorder %s22, 1
      %s263 = scalar_select %p262, %s22, 1
      %s264 = smul.addr %s263, 41
      %s265 = smul.addr %s264, 8
      %s266 = scalar_lea.vmem %s0, %s265
      %p267 = pneg %p51
      %p268 = pneg %p48
      %p269 = scmp.lt.s32.totalorder %s23, 0
      %s270 = scalar_select %p269, %s23, 0
      %s271 = smul.addr %s270, 4
      %s272 = scalar_lea.vmem %s1, %s271
      %p273 = pneg %p77
      %p274 = pneg %p74
      %p275 = scmp.lt.s32.totalorder %s23, 0
      %s276 = scalar_select %p275, %s23, 0
      %s277 = scalar_lea.vmem %s2, %s276
      %p278 = pneg %p103
      %p279 = pneg %p100
      %p280 = scmp.lt.s32.totalorder %s23, 0
      %s281 = scalar_select %p280, %s23, 0
      %s282 = scalar_lea.vmem %s3, %s281
      %p283 = pneg %p129
      %p284 = pneg %p126
      %p285 = pneg %p150
      %p286 = pneg %p147
      %p287 = pneg %p178
      %p288 = pneg %p175
      %p289 = scmp.lt.s32.totalorder %s22, 1
      %s290 = scalar_select %p289, %s22, 1
      %p291 = scmp.lt.s32.totalorder %s23, 0
      %s292 = scalar_select %p291, %s23, 0
      %s293 = smul.addr %s290, 36
      %s294 = sadd.s32 %s292, %s293
      %s295 = smul.addr %s294, 4
      %s296 = scalar_lea.vmem %s5, %s295
      %p297 = pneg %p206
      %p298 = pneg %p203
      %p299 = scmp.lt.s32.totalorder %s22, 1
      %s300 = scalar_select %p299, %s22, 1
      %p301 = scmp.lt.s32.totalorder %s23, 0
      %s302 = scalar_select %p301, %s23, 0
      %s303 = sadd.s32 %s302, %s300
      %s304 = scalar_lea.vmem %s6, %s303
      %p305 = scmp.lt.s32.totalorder %s22, 1
      %s306 = scalar_select %p305, %s22, 1
      %s307 = smul.addr %s306, 41
      %s308 = smul.addr %s307, 8
      %s309 = scalar_lea.vmem %s0, %s308
      %p310 = scmp.lt.s32.totalorder %s23, 0
      %s311 = scalar_select %p310, %s23, 0
      %s312 = smul.addr %s311, 4
      %s313 = scalar_lea.vmem %s1, %s312
      %p314 = scmp.lt.s32.totalorder %s23, 0
      %s315 = scalar_select %p314, %s23, 0
      %s316 = scalar_lea.vmem %s2, %s315
      %p317 = scmp.lt.s32.totalorder %s23, 0
      %s318 = scalar_select %p317, %s23, 0
      %s319 = scalar_lea.vmem %s3, %s318
      %p320 = scmp.lt.s32.totalorder %s22, 1
      %s321 = scalar_select %p320, %s22, 1
      %p322 = scmp.lt.s32.totalorder %s23, 0
      %s323 = scalar_select %p322, %s23, 0
      %s324 = smul.addr %s321, 36
      %s325 = sadd.s32 %s323, %s324
      %s326 = smul.addr %s325, 4
      %s327 = scalar_lea.vmem %s5, %s326
      %p328 = scmp.lt.s32.totalorder %s22, 1
      %s329 = scalar_select %p328, %s22, 1
      %p330 = scmp.lt.s32.totalorder %s23, 0
      %s331 = scalar_select %p330, %s23, 0
      %s332 = sadd.s32 %s331, %s329
      %s333 = scalar_lea.vmem %s6, %s332
      %v335 = vld [vmem:[%s309] sm:$0xff]
      %v336 = vld [vmem:[%s309 + $0x8] sm:$0xff]
      %v337 = vld [vmem:[%s309 + $0x10] sm:$0xff]
      %v338 = vld [vmem:[%s309 + $0x18] sm:$0xff]
      %v339 = vld [vmem:[%s309 + $0x20] sm:$0xff]
      %v340 = vld [vmem:[%s309 + $0x28] sm:$0xff]
      %v341 = vld [vmem:[%s309 + $0x30] sm:$0xff]
      %v342 = vld [vmem:[%s309 + $0x38] sm:$0xff]
      %v343 = vld [vmem:[%s309 + $0x40] sm:$0xff]
      %v344 = vld [vmem:[%s309 + $0x48] sm:$0xff]
      %v345 = vld [vmem:[%s309 + $0x50] sm:$0xff]
      %v346 = vld [vmem:[%s309 + $0x58] sm:$0xff]
      %v347 = vld [vmem:[%s309 + $0x60] sm:$0xff]
      %v348 = vld [vmem:[%s309 + $0x68] sm:$0xff]
      %v349 = vld [vmem:[%s309 + $0x70] sm:$0xff]
      %v350 = vld [vmem:[%s309 + $0x78] sm:$0xff]
      %v351 = vld [vmem:[%s309 + $0x80] sm:$0xff]
      %v352 = vld [vmem:[%s309 + $0x88] sm:$0xff]
      %v353 = vld [vmem:[%s309 + $0x90] sm:$0xff]
      %v354 = vld [vmem:[%s309 + $0x98] sm:$0xff]
      %v355 = vld [vmem:[%s309 + $0xa0] sm:$0xff]
      %v356 = vld [vmem:[%s309 + $0xa8] sm:$0xff]
      %v357 = vld [vmem:[%s309 + $0xb0] sm:$0xff]
      %v358 = vld [vmem:[%s309 + $0xb8] sm:$0xff]
      %v359 = vld [vmem:[%s309 + $0xc0] sm:$0xff]
      %v360 = vld [vmem:[%s309 + $0xc8] sm:$0xff]
      %v361 = vld [vmem:[%s309 + $0xd0] sm:$0xff]
      %v362 = vld [vmem:[%s309 + $0xd8] sm:$0xff]
      %v363 = vld [vmem:[%s309 + $0xe0] sm:$0xff]
      %v364 = vld [vmem:[%s309 + $0xe8] sm:$0xff]
      %v365 = vld [vmem:[%s309 + $0xf0] sm:$0xff]
      %v366 = vld [vmem:[%s309 + $0xf8] sm:$0xff]
      %v367 = vld [vmem:[%s309 + $0x100] sm:$0xff]
      %v368 = vld [vmem:[%s309 + $0x108] sm:$0xff]
      %v369 = vld [vmem:[%s309 + $0x110] sm:$0xff]
      %v370 = vld [vmem:[%s309 + $0x118] sm:$0xff]
      %v371 = vpack.c.bf16 %v336, %v335
      %v372 = vpack.c.bf16 %v338, %v337
      %v373 = vpack.c.bf16 %v340, %v339
      %v374 = vpack.c.bf16 %v342, %v341
      %v375 = vpack.c.bf16 %v344, %v343
      %v376 = vpack.c.bf16 %v346, %v345
      %v377 = vpack.c.bf16 %v348, %v347
      %v378 = vpack.c.bf16 %v350, %v349
      %v379 = vpack.c.bf16 %v352, %v351
      %v380 = vpack.c.bf16 %v354, %v353
      %v381 = vpack.c.bf16 %v356, %v355
      %v382 = vpack.c.bf16 %v358, %v357
      %v383 = vpack.c.bf16 %v360, %v359
      %v384 = vpack.c.bf16 %v362, %v361
      %v385 = vpack.c.bf16 %v364, %v363
      %v386 = vpack.c.bf16 %v366, %v365
      %v387 = vpack.c.bf16 %v368, %v367
      %v388 = vpack.c.bf16 %v370, %v369
      %v389 = vld [vmem:[%s313] sm:$0xf]
      %v390 = vld [vmem:[%s313 + $0x4] sm:$0xf]
      %v391 = vld [vmem:[%s313 + $0x8] sm:$0xf]
      %v392 = vld [vmem:[%s313 + $0xc] sm:$0xf]
      %v393 = vld [vmem:[%s313 + $0x10] sm:$0xf]
      %v394 = vld [vmem:[%s313 + $0x14] sm:$0xf]
      %v395 = vld [vmem:[%s313 + $0x18] sm:$0xf]
      %v396 = vld [vmem:[%s313 + $0x1c] sm:$0xf]
      %v397 = vld [vmem:[%s309 + $0x1] sm:$0xff]
      %v398 = vld [vmem:[%s309 + $0x9] sm:$0xff]
      %v399 = vld [vmem:[%s309 + $0x11] sm:$0xff]
      %v400 = vld [vmem:[%s309 + $0x19] sm:$0xff]
      %v401 = vld [vmem:[%s309 + $0x21] sm:$0xff]
      %v402 = vld [vmem:[%s309 + $0x29] sm:$0xff]
      %v403 = vld [vmem:[%s309 + $0x31] sm:$0xff]
      %v404 = vld [vmem:[%s309 + $0x39] sm:$0xff]
      %v405 = vld [vmem:[%s309 + $0x41] sm:$0xff]
      %v406 = vld [vmem:[%s309 + $0x49] sm:$0xff]
      %v407 = vld [vmem:[%s309 + $0x51] sm:$0xff]
      %v408 = vld [vmem:[%s309 + $0x59] sm:$0xff]
      %v409 = vld [vmem:[%s309 + $0x61] sm:$0xff]
      %v410 = vld [vmem:[%s309 + $0x69] sm:$0xff]
      %v411 = vld [vmem:[%s309 + $0x71] sm:$0xff]
      %v412 = vld [vmem:[%s309 + $0x79] sm:$0xff]
      %v413 = vld [vmem:[%s309 + $0x81] sm:$0xff]
      %v414 = vld [vmem:[%s309 + $0x89] sm:$0xff]
      %v415 = vld [vmem:[%s309 + $0x91] sm:$0xff]
      %v416 = vld [vmem:[%s309 + $0x99] sm:$0xff]
      %v417 = vld [vmem:[%s309 + $0xa1] sm:$0xff]
      %v418 = vld [vmem:[%s309 + $0xa9] sm:$0xff]
      %v419 = vld [vmem:[%s309 + $0xb1] sm:$0xff]
      %v420 = vld [vmem:[%s309 + $0xb9] sm:$0xff]
      %v421 = vld [vmem:[%s309 + $0xc1] sm:$0xff]
      %v422 = vld [vmem:[%s309 + $0xc9] sm:$0xff]
      %v423 = vld [vmem:[%s309 + $0xd1] sm:$0xff]
      %v424 = vld [vmem:[%s309 + $0xd9] sm:$0xff]
      %v425 = vld [vmem:[%s309 + $0xe1] sm:$0xff]
      %v426 = vld [vmem:[%s309 + $0xe9] sm:$0xff]
      %v427 = vld [vmem:[%s309 + $0xf1] sm:$0xff]
      %v428 = vld [vmem:[%s309 + $0xf9] sm:$0xff]
      %v429 = vld [vmem:[%s309 + $0x101] sm:$0xff]
      %v430 = vld [vmem:[%s309 + $0x109] sm:$0xff]
      %v431 = vld [vmem:[%s309 + $0x111] sm:$0xff]
      %v432 = vld [vmem:[%s309 + $0x119] sm:$0xff]
      %v433 = vpack.c.bf16 %v398, %v397
      %v434 = vpack.c.bf16 %v400, %v399
      %v435 = vpack.c.bf16 %v402, %v401
      %v436 = vpack.c.bf16 %v404, %v403
      %v437 = vpack.c.bf16 %v406, %v405
      %v438 = vpack.c.bf16 %v408, %v407
      %v439 = vpack.c.bf16 %v410, %v409
      %v440 = vpack.c.bf16 %v412, %v411
      %v441 = vpack.c.bf16 %v414, %v413
      %v442 = vpack.c.bf16 %v416, %v415
      %v443 = vpack.c.bf16 %v418, %v417
      %v444 = vpack.c.bf16 %v420, %v419
      %v445 = vpack.c.bf16 %v422, %v421
      %v446 = vpack.c.bf16 %v424, %v423
      %v447 = vpack.c.bf16 %v426, %v425
      %v448 = vpack.c.bf16 %v428, %v427
      %v449 = vpack.c.bf16 %v430, %v429
      %v450 = vpack.c.bf16 %v432, %v431
      %s451 = scalar_lea.vmem %s313, 32
      %v452 = vld [vmem:[%s451] sm:$0xf]
      %v453 = vld [vmem:[%s451 + $0x4] sm:$0xf]
      %v454 = vld [vmem:[%s451 + $0x8] sm:$0xf]
      %v455 = vld [vmem:[%s451 + $0xc] sm:$0xf]
      %v456 = vld [vmem:[%s451 + $0x10] sm:$0xf]
      %v457 = vld [vmem:[%s451 + $0x14] sm:$0xf]
      %v458 = vld [vmem:[%s451 + $0x18] sm:$0xf]
      %v459 = vld [vmem:[%s451 + $0x1c] sm:$0xf]
      %v468 = vunpack.c.l.b16 %v452
      %v469 = vunpack.c.l.b16 %v453
      %v470 = vunpack.c.l.b16 %v454
      %v471 = vunpack.c.l.b16 %v455
      %v472 = vunpack.c.l.b16 %v456
      %v473 = vunpack.c.l.b16 %v457
      %v474 = vunpack.c.l.b16 %v458
      %v475 = vunpack.c.l.b16 %v459
      %v476 = vpack.c.b16 %v469, %v468
      %v477 = vpack.c.b16 %v471, %v470
      %v478 = vpack.c.b16 %v473, %v472
      %v479 = vpack.c.b16 %v475, %v474
      %vm484 = vcmask 523264
      %v486 = vsel %vm484, %v433, 0
      %v489 = vsel %vm484, %v434, 0
      %v492 = vsel %vm484, %v435, 0
      %v495 = vsel %vm484, %v436, 0
      %v498 = vsel %vm484, %v437, 0
      %v501 = vsel %vm484, %v438, 0
      %v504 = vsel %vm484, %v439, 0
      %v507 = vsel %vm484, %v440, 0
      %v510 = vsel %vm484, %v441, 0
      %v513 = vsel %vm484, %v442, 0
      %v516 = vsel %vm484, %v443, 0
      %v519 = vsel %vm484, %v444, 0
      %v522 = vsel %vm484, %v445, 0
      %v525 = vsel %vm484, %v446, 0
      %v528 = vsel %vm484, %v447, 0
      %v531 = vsel %vm484, %v448, 0
      %v534 = vsel %vm484, %v449, 0
      %v537 = vsel %vm484, %v450, 0
      %539 = vmatprep.subr.bf16.mxu0 0
      %540 = vmatpush1.bf16.msra.mxu0 %v476
      %541 = vmatprep.subr.bf16.mxu0 0
      %542 = vmatpush1.bf16.msra.mxu0 %v477
      %543 = vmatprep.subr.bf16.mxu0 0
      %544 = vmatpush1.bf16.msra.mxu0 %v478
      %545 = vmatprep.subr.bf16.mxu0 0
      %546 = vmatpush1.bf16.msra.mxu0 %v479
      %547 = vmatprep.subr.bf16.mxu0 0
      %548 = vmatpush1.bf16.msra.mxu0 0
      %549 = vmatprep.subr.bf16.mxu0 0
      %550 = vmatpush1.bf16.msra.mxu0 0
      %551 = vmatprep.subr.bf16.mxu0 0
      %552 = vmatpush1.bf16.msra.mxu0 0
      %553 = vmatprep.subr.bf16.mxu0 0
      %554 = vmatpush1.bf16.msra.mxu0 0
      %555 = vmatprep.subr.bf16.mxu0 0
      %556 = vmatpush1.bf16.msra.mxu0 0
      %557 = vmatprep.subr.bf16.mxu0 0
      %558 = vmatpush1.bf16.msra.mxu0 0
      %559 = vmatprep.subr.bf16.mxu0 0
      %560 = vmatpush1.bf16.msra.mxu0 0
      %561 = vmatprep.subr.bf16.mxu0 0
      %562 = vmatpush1.bf16.msra.mxu0 0
      %563 = vmatprep.subr.bf16.mxu0 0
      %564 = vmatpush1.bf16.msra.mxu0 0
      %565 = vmatprep.subr.bf16.mxu0 0
      %566 = vmatpush1.bf16.msra.mxu0 0
      %567 = vmatprep.subr.bf16.mxu0 0
      %568 = vmatpush1.bf16.msra.mxu0 0
      %569 = vmatprep.subr.bf16.mxu0 0
      %570 = vmatpush1.bf16.msra.mxu0 0
      %571 = vmatprep.mubr.bf16.mxu0 0
      %572 = vmatmul.mubr.bf16.gmra.mrb[0].mxu0 %v486
      %v573 = vpop.f32.mrb[0].mxu0
      %v574 = vadd.f32 0.0, %v573
      %v575 = vpop.f32.mrb[0].mxu0
      %v576 = vpop.f32.mrb[0].mxu0
      %v577 = vadd.f32 0.0, %v576
      %v578 = vpop.f32.mrb[0].mxu0
      %579 = vmatprep.mubr.bf16.mxu0 0
      %580 = vmatmul.mubr.bf16.gmra.mrb[0].mxu0 %v489
      %v581 = vpop.f32.mrb[0].mxu0
      %v582 = vadd.f32 0.0, %v581
      %v583 = vpop.f32.mrb[0].mxu0
      %v584 = vpop.f32.mrb[0].mxu0
      %v585 = vadd.f32 0.0, %v584
      %v586 = vpop.f32.mrb[0].mxu0
      %587 = vmatprep.mubr.bf16.mxu0 0
      %588 = vmatmul.mubr.bf16.gmra.mrb[0].mxu0 %v492
      %v589 = vpop.f32.mrb[0].mxu0
      %v590 = vadd.f32 0.0, %v589
      %v591 = vpop.f32.mrb[0].mxu0
      %v592 = vpop.f32.mrb[0].mxu0
      %v593 = vadd.f32 0.0, %v592
      %v594 = vpop.f32.mrb[0].mxu0
      %595 = vmatprep.mubr.bf16.mxu0 0
      %596 = vmatmul.mubr.bf16.gmra.mrb[0].mxu0 %v495
      %v597 = vpop.f32.mrb[0].mxu0
      %v598 = vadd.f32 0.0, %v597
      %v599 = vpop.f32.mrb[0].mxu0
      %v600 = vpop.f32.mrb[0].mxu0
      %v601 = vadd.f32 0.0, %v600
      %v602 = vpop.f32.mrb[0].mxu0
      %603 = vmatprep.mubr.bf16.mxu0 0
      %604 = vmatmul.mubr.bf16.gmra.mrb[0].mxu0 %v498
      %v605 = vpop.f32.mrb[0].mxu0
      %v606 = vadd.f32 0.0, %v605
      %v607 = vpop.f32.mrb[0].mxu0
      %v608 = vpop.f32.mrb[0].mxu0
      %v609 = vadd.f32 0.0, %v608
      %v610 = vpop.f32.mrb[0].mxu0
      %611 = vmatprep.mubr.bf16.mxu0 0
      %612 = vmatmul.mubr.bf16.gmra.mrb[0].mxu0 %v501
      %v613 = vpop.f32.mrb[0].mxu0
      %v614 = vadd.f32 0.0, %v613
      %v615 = vpop.f32.mrb[0].mxu0
      %v616 = vpop.f32.mrb[0].mxu0
      %v617 = vadd.f32 0.0, %v616
      %v618 = vpop.f32.mrb[0].mxu0
      %619 = vmatprep.mubr.bf16.mxu0 0
      %620 = vmatmul.mubr.bf16.gmra.mrb[0].mxu0 %v504
      %v621 = vpop.f32.mrb[0].mxu0
      %v622 = vadd.f32 0.0, %v621
      %v623 = vpop.f32.mrb[0].mxu0
      %v624 = vpop.f32.mrb[0].mxu0
      %v625 = vadd.f32 0.0, %v624
      %v626 = vpop.f32.mrb[0].mxu0
      %627 = vmatprep.mubr.bf16.mxu0 0
      %628 = vmatmul.mubr.bf16.gmra.mrb[0].mxu0 %v507
      %v629 = vpop.f32.mrb[0].mxu0
      %v630 = vadd.f32 0.0, %v629
      %v631 = vpop.f32.mrb[0].mxu0
      %v632 = vpop.f32.mrb[0].mxu0
      %v633 = vadd.f32 0.0, %v632
      %v634 = vpop.f32.mrb[0].mxu0
      %635 = vmatprep.mubr.bf16.mxu0 0
      %636 = vmatmul.mubr.bf16.gmra.mrb[0].mxu0 %v510
      %v637 = vpop.f32.mrb[0].mxu0
      %v638 = vadd.f32 0.0, %v637
      %v639 = vpop.f32.mrb[0].mxu0
      %v640 = vpop.f32.mrb[0].mxu0
      %v641 = vadd.f32 0.0, %v640
      %v642 = vpop.f32.mrb[0].mxu0
      %643 = vmatprep.mubr.bf16.mxu0 0
      %644 = vmatmul.mubr.bf16.gmra.mrb[0].mxu0 %v513
      %v645 = vpop.f32.mrb[0].mxu0
      %v646 = vadd.f32 0.0, %v645
      %v647 = vpop.f32.mrb[0].mxu0
      %v648 = vpop.f32.mrb[0].mxu0
      %v649 = vadd.f32 0.0, %v648
      %v650 = vpop.f32.mrb[0].mxu0
      %651 = vmatprep.mubr.bf16.mxu0 0
      %652 = vmatmul.mubr.bf16.gmra.mrb[0].mxu0 %v516
      %v653 = vpop.f32.mrb[0].mxu0
      %v654 = vadd.f32 0.0, %v653
      %v655 = vpop.f32.mrb[0].mxu0
      %v656 = vpop.f32.mrb[0].mxu0
      %v657 = vadd.f32 0.0, %v656
      %v658 = vpop.f32.mrb[0].mxu0
      %659 = vmatprep.mubr.bf16.mxu0 0
      %660 = vmatmul.mubr.bf16.gmra.mrb[0].mxu0 %v519
      %v661 = vpop.f32.mrb[0].mxu0
      %v662 = vadd.f32 0.0, %v661
      %v663 = vpop.f32.mrb[0].mxu0
      %v664 = vpop.f32.mrb[0].mxu0
      %v665 = vadd.f32 0.0, %v664
      %v666 = vpop.f32.mrb[0].mxu0
      %667 = vmatprep.mubr.bf16.mxu0 0
      %668 = vmatmul.mubr.bf16.gmra.mrb[0].mxu0 %v522
      %v669 = vpop.f32.mrb[0].mxu0
      %v670 = vadd.f32 0.0, %v669
      %v671 = vpop.f32.mrb[0].mxu0
      %v672 = vpop.f32.mrb[0].mxu0
      %v673 = vadd.f32 0.0, %v672
      %v674 = vpop.f32.mrb[0].mxu0
      %675 = vmatprep.mubr.bf16.mxu0 0
      %676 = vmatmul.mubr.bf16.gmra.mrb[0].mxu0 %v525
      %v677 = vpop.f32.mrb[0].mxu0
      %v678 = vadd.f32 0.0, %v677
      %v679 = vpop.f32.mrb[0].mxu0
      %v680 = vpop.f32.mrb[0].mxu0
      %v681 = vadd.f32 0.0, %v680
      %v682 = vpop.f32.mrb[0].mxu0
      %683 = vmatprep.mubr.bf16.mxu0 0
      %684 = vmatmul.mubr.bf16.gmra.mrb[0].mxu0 %v528
      %v685 = vpop.f32.mrb[0].mxu0
      %v686 = vadd.f32 0.0, %v685
      %v687 = vpop.f32.mrb[0].mxu0
      %v688 = vpop.f32.mrb[0].mxu0
      %v689 = vadd.f32 0.0, %v688
      %v690 = vpop.f32.mrb[0].mxu0
      %691 = vmatprep.mubr.bf16.mxu0 0
      %692 = vmatmul.mubr.bf16.gmra.mrb[0].mxu0 %v531
      %v693 = vpop.f32.mrb[0].mxu0
      %v694 = vadd.f32 0.0, %v693
      %v695 = vpop.f32.mrb[0].mxu0
      %v696 = vpop.f32.mrb[0].mxu0
      %v697 = vadd.f32 0.0, %v696
      %v698 = vpop.f32.mrb[0].mxu0
      %699 = vmatprep.mubr.bf16.mxu0 0
      %700 = vmatmul.mubr.bf16.gmra.mrb[0].mxu0 %v534
      %v701 = vpop.f32.mrb[0].mxu0
      %v702 = vadd.f32 0.0, %v701
      %v703 = vpop.f32.mrb[0].mxu0
      %v704 = vpop.f32.mrb[0].mxu0
      %v705 = vadd.f32 0.0, %v704
      %v706 = vpop.f32.mrb[0].mxu0
      %707 = vmatprep.mubr.bf16.mxu0 0
      %708 = vmatmul.mubr.bf16.gmra.mrb[0].mxu0 %v537
      %v709 = vpop.f32.mrb[0].mxu0
      %v710 = vadd.f32 0.0, %v709
      %v711 = vpop.f32.mrb[0].mxu0
      %v712 = vpop.f32.mrb[0].mxu0
      %v713 = vadd.f32 0.0, %v712
      %v714 = vpop.f32.mrb[0].mxu0
      %715 = vdwg.mxu0
      %v724 = vunpack.c.l.b16 %v389
      %v725 = vunpack.c.l.b16 %v390
      %v726 = vunpack.c.l.b16 %v391
      %v727 = vunpack.c.l.b16 %v392
      %v728 = vunpack.c.l.b16 %v393
      %v729 = vunpack.c.l.b16 %v394
      %v730 = vunpack.c.l.b16 %v395
      %v731 = vunpack.c.l.b16 %v396
      %v732 = vpack.c.b16 %v725, %v724
      %v733 = vpack.c.b16 %v727, %v726
      %v734 = vpack.c.b16 %v729, %v728
      %v735 = vpack.c.b16 %v731, %v730
      %v741 = vsel %vm484, %v371, 0
      %v744 = vsel %vm484, %v372, 0
      %v747 = vsel %vm484, %v373, 0
      %v750 = vsel %vm484, %v374, 0
      %v753 = vsel %vm484, %v375, 0
      %v756 = vsel %vm484, %v376, 0
      %v759 = vsel %vm484, %v377, 0
      %v762 = vsel %vm484, %v378, 0
      %v765 = vsel %vm484, %v379, 0
      %v768 = vsel %vm484, %v380, 0
      %v771 = vsel %vm484, %v381, 0
      %v774 = vsel %vm484, %v382, 0
      %v777 = vsel %vm484, %v383, 0
      %v780 = vsel %vm484, %v384, 0
      %v783 = vsel %vm484, %v385, 0
      %v786 = vsel %vm484, %v386, 0
      %v789 = vsel %vm484, %v387, 0
      %v792 = vsel %vm484, %v388, 0
      %794 = vmatprep.subr.bf16.mxu0 0
      %795 = vmatpush1.bf16.msra.mxu0 %v732
      %796 = vmatprep.subr.bf16.mxu0 0
      %797 = vmatpush1.bf16.msra.mxu0 %v733
      %798 = vmatprep.subr.bf16.mxu0 0
      %799 = vmatpush1.bf16.msra.mxu0 %v734
      %800 = vmatprep.subr.bf16.mxu0 0
      %801 = vmatpush1.bf16.msra.mxu0 %v735
      %802 = vmatprep.subr.bf16.mxu0 0
      %803 = vmatpush1.bf16.msra.mxu0 0
      %804 = vmatprep.subr.bf16.mxu0 0
      %805 = vmatpush1.bf16.msra.mxu0 0
      %806 = vmatprep.subr.bf16.mxu0 0
      %807 = vmatpush1.bf16.msra.mxu0 0
      %808 = vmatprep.subr.bf16.mxu0 0
      %809 = vmatpush1.bf16.msra.mxu0 0
      %810 = vmatprep.subr.bf16.mxu0 0
      %811 = vmatpush1.bf16.msra.mxu0 0
      %812 = vmatprep.subr.bf16.mxu0 0
      %813 = vmatpush1.bf16.msra.mxu0 0
      %814 = vmatprep.subr.bf16.mxu0 0
      %815 = vmatpush1.bf16.msra.mxu0 0
      %816 = vmatprep.subr.bf16.mxu0 0
      %817 = vmatpush1.bf16.msra.mxu0 0
      %818 = vmatprep.subr.bf16.mxu0 0
      %819 = vmatpush1.bf16.msra.mxu0 0
      %820 = vmatprep.subr.bf16.mxu0 0
      %821 = vmatpush1.bf16.msra.mxu0 0
      %822 = vmatprep.subr.bf16.mxu0 0
      %823 = vmatpush1.bf16.msra.mxu0 0
      %824 = vmatprep.subr.bf16.mxu0 0
      %825 = vmatpush1.bf16.msra.mxu0 0
      %826 = vmatprep.mubr.bf16.mxu0 0
      %827 = vmatmul.mubr.bf16.gmra.mrb[0].mxu0 %v741
      %v828 = vpop.f32.mrb[0].mxu0
      %v829 = vadd.f32 %v574, %v828
      %v830 = vpop.f32.mrb[0].mxu0
      %v831 = vpop.f32.mrb[0].mxu0
      %v832 = vadd.f32 %v577, %v831
      %v833 = vpop.f32.mrb[0].mxu0
      %834 = vmatprep.mubr.bf16.mxu0 0
      %835 = vmatmul.mubr.bf16.gmra.mrb[0].mxu0 %v744
      %v836 = vpop.f32.mrb[0].mxu0
      %v837 = vadd.f32 %v582, %v836
      %v838 = vpop.f32.mrb[0].mxu0
      %v839 = vpop.f32.mrb[0].mxu0
      %v840 = vadd.f32 %v585, %v839
      %v841 = vpop.f32.mrb[0].mxu0
      %842 = vmatprep.mubr.bf16.mxu0 0
      %843 = vmatmul.mubr.bf16.gmra.mrb[0].mxu0 %v747
      %v844 = vpop.f32.mrb[0].mxu0
      %v845 = vadd.f32 %v590, %v844
      %v846 = vpop.f32.mrb[0].mxu0
      %v847 = vpop.f32.mrb[0].mxu0
      %v848 = vadd.f32 %v593, %v847
      %v849 = vpop.f32.mrb[0].mxu0
      %850 = vmatprep.mubr.bf16.mxu0 0
      %851 = vmatmul.mubr.bf16.gmra.mrb[0].mxu0 %v750
      %v852 = vpop.f32.mrb[0].mxu0
      %v853 = vadd.f32 %v598, %v852
      %v854 = vpop.f32.mrb[0].mxu0
      %v855 = vpop.f32.mrb[0].mxu0
      %v856 = vadd.f32 %v601, %v855
      %v857 = vpop.f32.mrb[0].mxu0
      %858 = vmatprep.mubr.bf16.mxu0 0
      %859 = vmatmul.mubr.bf16.gmra.mrb[0].mxu0 %v753
      %v860 = vpop.f32.mrb[0].mxu0
      %v861 = vadd.f32 %v606, %v860
      %v862 = vpop.f32.mrb[0].mxu0
      %v863 = vpop.f32.mrb[0].mxu0
      %v864 = vadd.f32 %v609, %v863
      %v865 = vpop.f32.mrb[0].mxu0
      %866 = vmatprep.mubr.bf16.mxu0 0
      %867 = vmatmul.mubr.bf16.gmra.mrb[0].mxu0 %v756
      %v868 = vpop.f32.mrb[0].mxu0
      %v869 = vadd.f32 %v614, %v868
      %v870 = vpop.f32.mrb[0].mxu0
      %v871 = vpop.f32.mrb[0].mxu0
      %v872 = vadd.f32 %v617, %v871
      %v873 = vpop.f32.mrb[0].mxu0
      %874 = vmatprep.mubr.bf16.mxu0 0
      %875 = vmatmul.mubr.bf16.gmra.mrb[0].mxu0 %v759
      %v876 = vpop.f32.mrb[0].mxu0
      %v877 = vadd.f32 %v622, %v876
      %v878 = vpop.f32.mrb[0].mxu0
      %v879 = vpop.f32.mrb[0].mxu0
      %v880 = vadd.f32 %v625, %v879
      %v881 = vpop.f32.mrb[0].mxu0
      %882 = vmatprep.mubr.bf16.mxu0 0
      %883 = vmatmul.mubr.bf16.gmra.mrb[0].mxu0 %v762
      %v884 = vpop.f32.mrb[0].mxu0
      %v885 = vadd.f32 %v630, %v884
      %v886 = vpop.f32.mrb[0].mxu0
      %v887 = vpop.f32.mrb[0].mxu0
      %v888 = vadd.f32 %v633, %v887
      %v889 = vpop.f32.mrb[0].mxu0
      %890 = vmatprep.mubr.bf16.mxu0 0
      %891 = vmatmul.mubr.bf16.gmra.mrb[0].mxu0 %v765
      %v892 = vpop.f32.mrb[0].mxu0
      %v893 = vadd.f32 %v638, %v892
      %v894 = vpop.f32.mrb[0].mxu0
      %v895 = vpop.f32.mrb[0].mxu0
      %v896 = vadd.f32 %v641, %v895
      %v897 = vpop.f32.mrb[0].mxu0
      %898 = vmatprep.mubr.bf16.mxu0 0
      %899 = vmatmul.mubr.bf16.gmra.mrb[0].mxu0 %v768
      %v900 = vpop.f32.mrb[0].mxu0
      %v901 = vadd.f32 %v646, %v900
      %v902 = vpop.f32.mrb[0].mxu0
      %v903 = vpop.f32.mrb[0].mxu0
      %v904 = vadd.f32 %v649, %v903
      %v905 = vpop.f32.mrb[0].mxu0
      %906 = vmatprep.mubr.bf16.mxu0 0
      %907 = vmatmul.mubr.bf16.gmra.mrb[0].mxu0 %v771
      %v908 = vpop.f32.mrb[0].mxu0
      %v909 = vadd.f32 %v654, %v908
      %v910 = vpop.f32.mrb[0].mxu0
      %v911 = vpop.f32.mrb[0].mxu0
      %v912 = vadd.f32 %v657, %v911
      %v913 = vpop.f32.mrb[0].mxu0
      %914 = vmatprep.mubr.bf16.mxu0 0
      %915 = vmatmul.mubr.bf16.gmra.mrb[0].mxu0 %v774
      %v916 = vpop.f32.mrb[0].mxu0
      %v917 = vadd.f32 %v662, %v916
      %v918 = vpop.f32.mrb[0].mxu0
      %v919 = vpop.f32.mrb[0].mxu0
      %v920 = vadd.f32 %v665, %v919
      %v921 = vpop.f32.mrb[0].mxu0
      %922 = vmatprep.mubr.bf16.mxu0 0
      %923 = vmatmul.mubr.bf16.gmra.mrb[0].mxu0 %v777
      %v924 = vpop.f32.mrb[0].mxu0
      %v925 = vadd.f32 %v670, %v924
      %v926 = vpop.f32.mrb[0].mxu0
      %v927 = vpop.f32.mrb[0].mxu0
      %v928 = vadd.f32 %v673, %v927
      %v929 = vpop.f32.mrb[0].mxu0
      %930 = vmatprep.mubr.bf16.mxu0 0
      %931 = vmatmul.mubr.bf16.gmra.mrb[0].mxu0 %v780
      %v932 = vpop.f32.mrb[0].mxu0
      %v933 = vadd.f32 %v678, %v932
      %v934 = vpop.f32.mrb[0].mxu0
      %v935 = vpop.f32.mrb[0].mxu0
      %v936 = vadd.f32 %v681, %v935
      %v937 = vpop.f32.mrb[0].mxu0
      %938 = vmatprep.mubr.bf16.mxu0 0
      %939 = vmatmul.mubr.bf16.gmra.mrb[0].mxu0 %v783
      %v940 = vpop.f32.mrb[0].mxu0
      %v941 = vadd.f32 %v686, %v940
      %v942 = vpop.f32.mrb[0].mxu0
      %v943 = vpop.f32.mrb[0].mxu0
      %v944 = vadd.f32 %v689, %v943
      %v945 = vpop.f32.mrb[0].mxu0
      %946 = vmatprep.mubr.bf16.mxu0 0
      %947 = vmatmul.mubr.bf16.gmra.mrb[0].mxu0 %v786
      %v948 = vpop.f32.mrb[0].mxu0
      %v949 = vadd.f32 %v694, %v948
      %v950 = vpop.f32.mrb[0].mxu0
      %v951 = vpop.f32.mrb[0].mxu0
      %v952 = vadd.f32 %v697, %v951
      %v953 = vpop.f32.mrb[0].mxu0
      %954 = vmatprep.mubr.bf16.mxu0 0
      %955 = vmatmul.mubr.bf16.gmra.mrb[0].mxu0 %v789
      %v956 = vpop.f32.mrb[0].mxu0
      %v957 = vadd.f32 %v702, %v956
      %v958 = vpop.f32.mrb[0].mxu0
      %v959 = vpop.f32.mrb[0].mxu0
      %v960 = vadd.f32 %v705, %v959
      %v961 = vpop.f32.mrb[0].mxu0
      %962 = vmatprep.mubr.bf16.mxu0 0
      %963 = vmatmul.mubr.bf16.gmra.mrb[0].mxu0 %v792
      %v964 = vpop.f32.mrb[0].mxu0
      %v965 = vadd.f32 %v710, %v964
      %v966 = vpop.f32.mrb[0].mxu0
      %v967 = vpop.f32.mrb[0].mxu0
      %v968 = vadd.f32 %v713, %v967
      %v969 = vpop.f32.mrb[0].mxu0
      %970 = vdwg.mxu0
      %v971 = vld [vmem:[%s309 + $0x2] sm:$0xff]
      %v972 = vld [vmem:[%s309 + $0xa] sm:$0xff]
      %v973 = vld [vmem:[%s309 + $0x12] sm:$0xff]
      %v974 = vld [vmem:[%s309 + $0x1a] sm:$0xff]
      %v975 = vld [vmem:[%s309 + $0x22] sm:$0xff]
      %v976 = vld [vmem:[%s309 + $0x2a] sm:$0xff]
      %v977 = vld [vmem:[%s309 + $0x32] sm:$0xff]
      %v978 = vld [vmem:[%s309 + $0x3a] sm:$0xff]
      %v979 = vld [vmem:[%s309 + $0x42] sm:$0xff]
      %v980 = vld [vmem:[%s309 + $0x4a] sm:$0xff]
      %v981 = vld [vmem:[%s309 + $0x52] sm:$0xff]
      %v982 = vld [vmem:[%s309 + $0x5a] sm:$0xff]
      %v983 = vld [vmem:[%s309 + $0x62] sm:$0xff]
      %v984 = vld [vmem:[%s309 + $0x6a] sm:$0xff]
      %v985 = vld [vmem:[%s309 + $0x72] sm:$0xff]
      %v986 = vld [vmem:[%s309 + $0x7a] sm:$0xff]
      %v987 = vld [vmem:[%s309 + $0x82] sm:$0xff]
      %v988 = vld [vmem:[%s309 + $0x8a] sm:$0xff]
      %v989 = vld [vmem:[%s309 + $0x92] sm:$0xff]
      %v990 = vld [vmem:[%s309 + $0x9a] sm:$0xff]
      %v991 = vld [vmem:[%s309 + $0xa2] sm:$0xff]
      %v992 = vld [vmem:[%s309 + $0xaa] sm:$0xff]
      %v993 = vld [vmem:[%s309 + $0xb2] sm:$0xff]
      %v994 = vld [vmem:[%s309 + $0xba] sm:$0xff]
      %v995 = vld [vmem:[%s309 + $0xc2] sm:$0xff]
      %v996 = vld [vmem:[%s309 + $0xca] sm:$0xff]
      %v997 = vld [vmem:[%s309 + $0xd2] sm:$0xff]
      %v998 = vld [vmem:[%s309 + $0xda] sm:$0xff]
      %v999 = vld [vmem:[%s309 + $0xe2] sm:$0xff]
      %v1000 = vld [vmem:[%s309 + $0xea] sm:$0xff]
      %v1001 = vld [vmem:[%s309 + $0xf2] sm:$0xff]
      %v1002 = vld [vmem:[%s309 + $0xfa] sm:$0xff]
      %v1003 = vld [vmem:[%s309 + $0x102] sm:$0xff]
      %v1004 = vld [vmem:[%s309 + $0x10a] sm:$0xff]
      %v1005 = vld [vmem:[%s309 + $0x112] sm:$0xff]
      %v1006 = vld [vmem:[%s309 + $0x11a] sm:$0xff]
      %v1007 = vpack.c.bf16 %v972, %v971
      %v1008 = vpack.c.bf16 %v974, %v973
      %v1009 = vpack.c.bf16 %v976, %v975
      %v1010 = vpack.c.bf16 %v978, %v977
      %v1011 = vpack.c.bf16 %v980, %v979
      %v1012 = vpack.c.bf16 %v982, %v981
      %v1013 = vpack.c.bf16 %v984, %v983
      %v1014 = vpack.c.bf16 %v986, %v985
      %v1015 = vpack.c.bf16 %v988, %v987
      %v1016 = vpack.c.bf16 %v990, %v989
      %v1017 = vpack.c.bf16 %v992, %v991
      %v1018 = vpack.c.bf16 %v994, %v993
      %v1019 = vpack.c.bf16 %v996, %v995
      %v1020 = vpack.c.bf16 %v998, %v997
      %v1021 = vpack.c.bf16 %v1000, %v999
      %v1022 = vpack.c.bf16 %v1002, %v1001
      %v1023 = vpack.c.bf16 %v1004, %v1003
      %v1024 = vpack.c.bf16 %v1006, %v1005
      %s1025 = scalar_lea.vmem %s313, 64
      %v1026 = vld [vmem:[%s1025] sm:$0xf]
      %v1027 = vld [vmem:[%s1025 + $0x4] sm:$0xf]
      %v1028 = vld [vmem:[%s1025 + $0x8] sm:$0xf]
      %v1029 = vld [vmem:[%s1025 + $0xc] sm:$0xf]
      %v1030 = vld [vmem:[%s1025 + $0x10] sm:$0xf]
      %v1031 = vld [vmem:[%s1025 + $0x14] sm:$0xf]
      %v1032 = vld [vmem:[%s1025 + $0x18] sm:$0xf]
      %v1033 = vld [vmem:[%s1025 + $0x1c] sm:$0xf]
      %v1042 = vunpack.c.l.b16 %v1026
      %v1043 = vunpack.c.l.b16 %v1027
      %v1044 = vunpack.c.l.b16 %v1028
      %v1045 = vunpack.c.l.b16 %v1029
      %v1046 = vunpack.c.l.b16 %v1030
      %v1047 = vunpack.c.l.b16 %v1031
      %v1048 = vunpack.c.l.b16 %v1032
      %v1049 = vunpack.c.l.b16 %v1033
      %v1050 = vpack.c.b16 %v1043, %v1042
      %v1051 = vpack.c.b16 %v1045, %v1044
      %v1052 = vpack.c.b16 %v1047, %v1046
      %v1053 = vpack.c.b16 %v1049, %v1048
      %v1059 = vsel %vm484, %v1007, 0
      %v1062 = vsel %vm484, %v1008, 0
      %v1065 = vsel %vm484, %v1009, 0
      %v1068 = vsel %vm484, %v1010, 0
      %v1071 = vsel %vm484, %v1011, 0
      %v1074 = vsel %vm484, %v1012, 0
      %v1077 = vsel %vm484, %v1013, 0
      %v1080 = vsel %vm484, %v1014, 0
      %v1083 = vsel %vm484, %v1015, 0
      %v1086 = vsel %vm484, %v1016, 0
      %v1089 = vsel %vm484, %v1017, 0
      %v1092 = vsel %vm484, %v1018, 0
      %v1095 = vsel %vm484, %v1019, 0
      %v1098 = vsel %vm484, %v1020, 0
      %v1101 = vsel %vm484, %v1021, 0
      %v1104 = vsel %vm484, %v1022, 0
      %v1107 = vsel %vm484, %v1023, 0
      %v1110 = vsel %vm484, %v1024, 0
      %1112 = vmatprep.subr.bf16.mxu0 0
      %1113 = vmatpush1.bf16.msra.mxu0 %v1050
      %1114 = vmatprep.subr.bf16.mxu0 0
      %1115 = vmatpush1.bf16.msra.mxu0 %v1051
      %1116 = vmatprep.subr.bf16.mxu0 0
      %1117 = vmatpush1.bf16.msra.mxu0 %v1052
      %1118 = vmatprep.subr.bf16.mxu0 0
      %1119 = vmatpush1.bf16.msra.mxu0 %v1053
      %1120 = vmatprep.subr.bf16.mxu0 0
      %1121 = vmatpush1.bf16.msra.mxu0 0
      %1122 = vmatprep.subr.bf16.mxu0 0
      %1123 = vmatpush1.bf16.msra.mxu0 0
      %1124 = vmatprep.subr.bf16.mxu0 0
      %1125 = vmatpush1.bf16.msra.mxu0 0
      %1126 = vmatprep.subr.bf16.mxu0 0
      %1127 = vmatpush1.bf16.msra.mxu0 0
      %1128 = vmatprep.subr.bf16.mxu0 0
      %1129 = vmatpush1.bf16.msra.mxu0 0
      %1130 = vmatprep.subr.bf16.mxu0 0
      %1131 = vmatpush1.bf16.msra.mxu0 0
      %1132 = vmatprep.subr.bf16.mxu0 0
      %1133 = vmatpush1.bf16.msra.mxu0 0
      %1134 = vmatprep.subr.bf16.mxu0 0
      %1135 = vmatpush1.bf16.msra.mxu0 0
      %1136 = vmatprep.subr.bf16.mxu0 0
      %1137 = vmatpush1.bf16.msra.mxu0 0
      %1138 = vmatprep.subr.bf16.mxu0 0
      %1139 = vmatpush1.bf16.msra.mxu0 0
      %1140 = vmatprep.subr.bf16.mxu0 0
      %1141 = vmatpush1.bf16.msra.mxu0 0
      %1142 = vmatprep.subr.bf16.mxu0 0
      %1143 = vmatpush1.bf16.msra.mxu0 0
      %1144 = vmatprep.mubr.bf16.mxu0 0
      %1145 = vmatmul.mubr.bf16.gmra.mrb[0].mxu0 %v1059
      %v1146 = vpop.f32.mrb[0].mxu0
      %v1147 = vadd.f32 0.0, %v1146
      %v1148 = vpop.f32.mrb[0].mxu0
      %v1149 = vpop.f32.mrb[0].mxu0
      %v1150 = vadd.f32 0.0, %v1149
      %v1151 = vpop.f32.mrb[0].mxu0
      %1152 = vmatprep.mubr.bf16.mxu0 0
      %1153 = vmatmul.mubr.bf16.gmra.mrb[0].mxu0 %v1062
      %v1154 = vpop.f32.mrb[0].mxu0
      %v1155 = vadd.f32 0.0, %v1154
      %v1156 = vpop.f32.mrb[0].mxu0
      %v1157 = vpop.f32.mrb[0].mxu0
      %v1158 = vadd.f32 0.0, %v1157
      %v1159 = vpop.f32.mrb[0].mxu0
      %1160 = vmatprep.mubr.bf16.mxu0 0
      %1161 = vmatmul.mubr.bf16.gmra.mrb[0].mxu0 %v1065
      %v1162 = vpop.f32.mrb[0].mxu0
      %v1163 = vadd.f32 0.0, %v1162
      %v1164 = vpop.f32.mrb[0].mxu0
      %v1165 = vpop.f32.mrb[0].mxu0
      %v1166 = vadd.f32 0.0, %v1165
      %v1167 = vpop.f32.mrb[0].mxu0
      %1168 = vmatprep.mubr.bf16.mxu0 0
      %1169 = vmatmul.mubr.bf16.gmra.mrb[0].mxu0 %v1068
      %v1170 = vpop.f32.mrb[0].mxu0
      %v1171 = vadd.f32 0.0, %v1170
      %v1172 = vpop.f32.mrb[0].mxu0
      %v1173 = vpop.f32.mrb[0].mxu0
      %v1174 = vadd.f32 0.0, %v1173
      %v1175 = vpop.f32.mrb[0].mxu0
      %1176 = vmatprep.mubr.bf16.mxu0 0
      %1177 = vmatmul.mubr.bf16.gmra.mrb[0].mxu0 %v1071
      %v1178 = vpop.f32.mrb[0].mxu0
      %v1179 = vadd.f32 0.0, %v1178
      %v1180 = vpop.f32.mrb[0].mxu0
      %v1181 = vpop.f32.mrb[0].mxu0
      %v1182 = vadd.f32 0.0, %v1181
      %v1183 = vpop.f32.mrb[0].mxu0
      %1184 = vmatprep.mubr.bf16.mxu0 0
      %1185 = vmatmul.mubr.bf16.gmra.mrb[0].mxu0 %v1074
      %v1186 = vpop.f32.mrb[0].mxu0
      %v1187 = vadd.f32 0.0, %v1186
      %v1188 = vpop.f32.mrb[0].mxu0
      %v1189 = vpop.f32.mrb[0].mxu0
      %v1190 = vadd.f32 0.0, %v1189
      %v1191 = vpop.f32.mrb[0].mxu0
      %1192 = vmatprep.mubr.bf16.mxu0 0
      %1193 = vmatmul.mubr.bf16.gmra.mrb[0].mxu0 %v1077
      %v1194 = vpop.f32.mrb[0].mxu0
      %v1195 = vadd.f32 0.0, %v1194
      %v1196 = vpop.f32.mrb[0].mxu0
      %v1197 = vpop.f32.mrb[0].mxu0
      %v1198 = vadd.f32 0.0, %v1197
      %v1199 = vpop.f32.mrb[0].mxu0
      %1200 = vmatprep.mubr.bf16.mxu0 0
      %1201 = vmatmul.mubr.bf16.gmra.mrb[0].mxu0 %v1080
      %v1202 = vpop.f32.mrb[0].mxu0
      %v1203 = vadd.f32 0.0, %v1202
      %v1204 = vpop.f32.mrb[0].mxu0
      %v1205 = vpop.f32.mrb[0].mxu0
      %v1206 = vadd.f32 0.0, %v1205
      %v1207 = vpop.f32.mrb[0].mxu0
      %1208 = vmatprep.mubr.bf16.mxu0 0
      %1209 = vmatmul.mubr.bf16.gmra.mrb[0].mxu0 %v1083
      %v1210 = vpop.f32.mrb[0].mxu0
      %v1211 = vadd.f32 0.0, %v1210
      %v1212 = vpop.f32.mrb[0].mxu0
      %v1213 = vpop.f32.mrb[0].mxu0
      %v1214 = vadd.f32 0.0, %v1213
      %v1215 = vpop.f32.mrb[0].mxu0
      %1216 = vmatprep.mubr.bf16.mxu0 0
      %1217 = vmatmul.mubr.bf16.gmra.mrb[0].mxu0 %v1086
      %v1218 = vpop.f32.mrb[0].mxu0
      %v1219 = vadd.f32 0.0, %v1218
      %v1220 = vpop.f32.mrb[0].mxu0
      %v1221 = vpop.f32.mrb[0].mxu0
      %v1222 = vadd.f32 0.0, %v1221
      %v1223 = vpop.f32.mrb[0].mxu0
      %1224 = vmatprep.mubr.bf16.mxu0 0
      %1225 = vmatmul.mubr.bf16.gmra.mrb[0].mxu0 %v1089
      %v1226 = vpop.f32.mrb[0].mxu0
      %v1227 = vadd.f32 0.0, %v1226
      %v1228 = vpop.f32.mrb[0].mxu0
      %v1229 = vpop.f32.mrb[0].mxu0
      %v1230 = vadd.f32 0.0, %v1229
      %v1231 = vpop.f32.mrb[0].mxu0
      %1232 = vmatprep.mubr.bf16.mxu0 0
      %1233 = vmatmul.mubr.bf16.gmra.mrb[0].mxu0 %v1092
      %v1234 = vpop.f32.mrb[0].mxu0
      %v1235 = vadd.f32 0.0, %v1234
      %v1236 = vpop.f32.mrb[0].mxu0
      %v1237 = vpop.f32.mrb[0].mxu0
      %v1238 = vadd.f32 0.0, %v1237
      %v1239 = vpop.f32.mrb[0].mxu0
      %1240 = vmatprep.mubr.bf16.mxu0 0
      %1241 = vmatmul.mubr.bf16.gmra.mrb[0].mxu0 %v1095
      %v1242 = vpop.f32.mrb[0].mxu0
      %v1243 = vadd.f32 0.0, %v1242
      %v1244 = vpop.f32.mrb[0].mxu0
      %v1245 = vpop.f32.mrb[0].mxu0
      %v1246 = vadd.f32 0.0, %v1245
      %v1247 = vpop.f32.mrb[0].mxu0
      %1248 = vmatprep.mubr.bf16.mxu0 0
      %1249 = vmatmul.mubr.bf16.gmra.mrb[0].mxu0 %v1098
      %v1250 = vpop.f32.mrb[0].mxu0
      %v1251 = vadd.f32 0.0, %v1250
      %v1252 = vpop.f32.mrb[0].mxu0
      %v1253 = vpop.f32.mrb[0].mxu0
      %v1254 = vadd.f32 0.0, %v1253
      %v1255 = vpop.f32.mrb[0].mxu0
      %1256 = vmatprep.mubr.bf16.mxu0 0
      %1257 = vmatmul.mubr.bf16.gmra.mrb[0].mxu0 %v1101
      %v1258 = vpop.f32.mrb[0].mxu0
      %v1259 = vadd.f32 0.0, %v1258
      %v1260 = vpop.f32.mrb[0].mxu0
      %v1261 = vpop.f32.mrb[0].mxu0
      %v1262 = vadd.f32 0.0, %v1261
      %v1263 = vpop.f32.mrb[0].mxu0
      %1264 = vmatprep.mubr.bf16.mxu0 0
      %1265 = vmatmul.mubr.bf16.gmra.mrb[0].mxu0 %v1104
      %v1266 = vpop.f32.mrb[0].mxu0
      %v1267 = vadd.f32 0.0, %v1266
      %v1268 = vpop.f32.mrb[0].mxu0
      %v1269 = vpop.f32.mrb[0].mxu0
      %v1270 = vadd.f32 0.0, %v1269
      %v1271 = vpop.f32.mrb[0].mxu0
      %1272 = vmatprep.mubr.bf16.mxu0 0
      %1273 = vmatmul.mubr.bf16.gmra.mrb[0].mxu0 %v1107
      %v1274 = vpop.f32.mrb[0].mxu0
      %v1275 = vadd.f32 0.0, %v1274
      %v1276 = vpop.f32.mrb[0].mxu0
      %v1277 = vpop.f32.mrb[0].mxu0
      %v1278 = vadd.f32 0.0, %v1277
      %v1279 = vpop.f32.mrb[0].mxu0
      %1280 = vmatprep.mubr.bf16.mxu0 0
      %1281 = vmatmul.mubr.bf16.gmra.mrb[0].mxu0 %v1110
      %v1282 = vpop.f32.mrb[0].mxu0
      %v1283 = vadd.f32 0.0, %v1282
      %v1284 = vpop.f32.mrb[0].mxu0
      %v1285 = vpop.f32.mrb[0].mxu0
      %v1286 = vadd.f32 0.0, %v1285
      %v1287 = vpop.f32.mrb[0].mxu0
      %1288 = vdwg.mxu0
      %v1289 = vadd.f32 %v829, %v1147
      %v1290 = vadd.f32 %v832, %v1150
      %v1291 = vadd.f32 %v837, %v1155
      %v1292 = vadd.f32 %v840, %v1158
      %v1293 = vadd.f32 %v845, %v1163
      %v1294 = vadd.f32 %v848, %v1166
      %v1295 = vadd.f32 %v853, %v1171
      %v1296 = vadd.f32 %v856, %v1174
      %v1297 = vadd.f32 %v861, %v1179
      %v1298 = vadd.f32 %v864, %v1182
      %v1299 = vadd.f32 %v869, %v1187
      %v1300 = vadd.f32 %v872, %v1190
      %v1301 = vadd.f32 %v877, %v1195
      %v1302 = vadd.f32 %v880, %v1198
      %v1303 = vadd.f32 %v885, %v1203
      %v1304 = vadd.f32 %v888, %v1206
      %v1305 = vadd.f32 %v893, %v1211
      %v1306 = vadd.f32 %v896, %v1214
      %v1307 = vadd.f32 %v901, %v1219
      %v1308 = vadd.f32 %v904, %v1222
      %v1309 = vadd.f32 %v909, %v1227
      %v1310 = vadd.f32 %v912, %v1230
      %v1311 = vadd.f32 %v917, %v1235
      %v1312 = vadd.f32 %v920, %v1238
      %v1313 = vadd.f32 %v925, %v1243
      %v1314 = vadd.f32 %v928, %v1246
      %v1315 = vadd.f32 %v933, %v1251
      %v1316 = vadd.f32 %v936, %v1254
      %v1317 = vadd.f32 %v941, %v1259
      %v1318 = vadd.f32 %v944, %v1262
      %v1319 = vadd.f32 %v949, %v1267
      %v1320 = vadd.f32 %v952, %v1270
      %v1321 = vadd.f32 %v957, %v1275
      %v1322 = vadd.f32 %v960, %v1278
      %v1323 = vadd.f32 %v965, %v1283
      %v1324 = vadd.f32 %v968, %v1286
      %v1325 = vld [vmem:[%s309 + $0x12] sm:$0xff]
      %v1326 = vld [vmem:[%s309 + $0x1a] sm:$0xff]
      %v1327 = vld [vmem:[%s309 + $0x22] sm:$0xff]
      %v1328 = vld [vmem:[%s309 + $0x2a] sm:$0xff]
      %v1329 = vld [vmem:[%s309 + $0x32] sm:$0xff]
      %v1330 = vld [vmem:[%s309 + $0x3a] sm:$0xff]
      %v1331 = vld [vmem:[%s309 + $0x42] sm:$0xff]
      %v1332 = vld [vmem:[%s309 + $0x4a] sm:$0xff]
      %v1333 = vld [vmem:[%s309 + $0x52] sm:$0xff]
      %v1334 = vld [vmem:[%s309 + $0x5a] sm:$0xff]
      %v1335 = vld [vmem:[%s309 + $0x62] sm:$0xff]
      %v1336 = vld [vmem:[%s309 + $0x6a] sm:$0xff]
      %v1337 = vld [vmem:[%s309 + $0x72] sm:$0xff]
      %v1338 = vld [vmem:[%s309 + $0x7a] sm:$0xff]
      %v1339 = vld [vmem:[%s309 + $0x82] sm:$0xff]
      %v1340 = vld [vmem:[%s309 + $0x8a] sm:$0xff]
      %v1341 = vld [vmem:[%s309 + $0x92] sm:$0xff]
      %v1342 = vld [vmem:[%s309 + $0x9a] sm:$0xff]
      %v1343 = vld [vmem:[%s309 + $0xa2] sm:$0xff]
      %v1344 = vld [vmem:[%s309 + $0xaa] sm:$0xff]
      %v1345 = vld [vmem:[%s309 + $0xb2] sm:$0xff]
      %v1346 = vld [vmem:[%s309 + $0xba] sm:$0xff]
      %v1347 = vld [vmem:[%s309 + $0xc2] sm:$0xff]
      %v1348 = vld [vmem:[%s309 + $0xca] sm:$0xff]
      %v1349 = vld [vmem:[%s309 + $0xd2] sm:$0xff]
      %v1350 = vld [vmem:[%s309 + $0xda] sm:$0xff]
      %v1351 = vld [vmem:[%s309 + $0xe2] sm:$0xff]
      %v1352 = vld [vmem:[%s309 + $0xea] sm:$0xff]
      %v1353 = vld [vmem:[%s309 + $0xf2] sm:$0xff]
      %v1354 = vld [vmem:[%s309 + $0xfa] sm:$0xff]
      %v1355 = vld [vmem:[%s309 + $0x102] sm:$0xff]
      %v1356 = vld [vmem:[%s309 + $0x10a] sm:$0xff]
      %v1357 = vld [vmem:[%s309 + $0x112] sm:$0xff]
      %v1358 = vld [vmem:[%s309 + $0x11a] sm:$0xff]
      %v1359 = vld [vmem:[%s309 + $0x122] sm:$0xff]
      %v1360 = vld [vmem:[%s309 + $0x12a] sm:$0xff]
      %v1361 = vpack.c.bf16 %v1326, %v1325
      %v1362 = vpack.c.bf16 %v1328, %v1327
      %v1363 = vpack.c.bf16 %v1330, %v1329
      %v1364 = vpack.c.bf16 %v1332, %v1331
      %v1365 = vpack.c.bf16 %v1334, %v1333
      %v1366 = vpack.c.bf16 %v1336, %v1335
      %v1367 = vpack.c.bf16 %v1338, %v1337
      %v1368 = vpack.c.bf16 %v1340, %v1339
      %v1369 = vpack.c.bf16 %v1342, %v1341
      %v1370 = vpack.c.bf16 %v1344, %v1343
      %v1371 = vpack.c.bf16 %v1346, %v1345
      %v1372 = vpack.c.bf16 %v1348, %v1347
      %v1373 = vpack.c.bf16 %v1350, %v1349
      %v1374 = vpack.c.bf16 %v1352, %v1351
      %v1375 = vpack.c.bf16 %v1354, %v1353
      %v1376 = vpack.c.bf16 %v1356, %v1355
      %v1377 = vpack.c.bf16 %v1358, %v1357
      %v1378 = vpack.c.bf16 %v1360, %v1359
      %s1379 = scalar_lea.vmem %s313, 96
      %v1380 = vld [vmem:[%s1379] sm:$0xf]
      %v1381 = vld [vmem:[%s1379 + $0x4] sm:$0xf]
      %v1382 = vld [vmem:[%s1379 + $0x8] sm:$0xf]
      %v1383 = vld [vmem:[%s1379 + $0xc] sm:$0xf]
      %v1384 = vld [vmem:[%s1379 + $0x10] sm:$0xf]
      %v1385 = vld [vmem:[%s1379 + $0x14] sm:$0xf]
      %v1386 = vld [vmem:[%s1379 + $0x18] sm:$0xf]
      %v1387 = vld [vmem:[%s1379 + $0x1c] sm:$0xf]
      %v1396 = vunpack.c.l.b16 %v1380
      %v1397 = vunpack.c.l.b16 %v1381
      %v1398 = vunpack.c.l.b16 %v1382
      %v1399 = vunpack.c.l.b16 %v1383
      %v1400 = vunpack.c.l.b16 %v1384
      %v1401 = vunpack.c.l.b16 %v1385
      %v1402 = vunpack.c.l.b16 %v1386
      %v1403 = vunpack.c.l.b16 %v1387
      %v1404 = vpack.c.b16 %v1397, %v1396
      %v1405 = vpack.c.b16 %v1399, %v1398
      %v1406 = vpack.c.b16 %v1401, %v1400
      %v1407 = vpack.c.b16 %v1403, %v1402
      %v1413 = vsel %vm484, %v1361, 0
      %v1416 = vsel %vm484, %v1362, 0
      %v1419 = vsel %vm484, %v1363, 0
      %v1422 = vsel %vm484, %v1364, 0
      %v1425 = vsel %vm484, %v1365, 0
      %v1428 = vsel %vm484, %v1366, 0
      %v1431 = vsel %vm484, %v1367, 0
      %v1434 = vsel %vm484, %v1368, 0
      %v1437 = vsel %vm484, %v1369, 0
      %v1440 = vsel %vm484, %v1370, 0
      %v1443 = vsel %vm484, %v1371, 0
      %v1446 = vsel %vm484, %v1372, 0
      %v1449 = vsel %vm484, %v1373, 0
      %v1452 = vsel %vm484, %v1374, 0
      %v1455 = vsel %vm484, %v1375, 0
      %v1458 = vsel %vm484, %v1376, 0
      %v1461 = vsel %vm484, %v1377, 0
      %v1464 = vsel %vm484, %v1378, 0
      %1466 = vmatprep.subr.bf16.mxu0 0
      %1467 = vmatpush1.bf16.msra.mxu0 %v1404
      %1468 = vmatprep.subr.bf16.mxu0 0
      %1469 = vmatpush1.bf16.msra.mxu0 %v1405
      %1470 = vmatprep.subr.bf16.mxu0 0
      %1471 = vmatpush1.bf16.msra.mxu0 %v1406
      %1472 = vmatprep.subr.bf16.mxu0 0
      %1473 = vmatpush1.bf16.msra.mxu0 %v1407
      %1474 = vmatprep.subr.bf16.mxu0 0
      %1475 = vmatpush1.bf16.msra.mxu0 0
      %1476 = vmatprep.subr.bf16.mxu0 0
      %1477 = vmatpush1.bf16.msra.mxu0 0
      %1478 = vmatprep.subr.bf16.mxu0 0
      %1479 = vmatpush1.bf16.msra.mxu0 0
      %1480 = vmatprep.subr.bf16.mxu0 0
      %1481 = vmatpush1.bf16.msra.mxu0 0
      %1482 = vmatprep.subr.bf16.mxu0 0
      %1483 = vmatpush1.bf16.msra.mxu0 0
      %1484 = vmatprep.subr.bf16.mxu0 0
      %1485 = vmatpush1.bf16.msra.mxu0 0
      %1486 = vmatprep.subr.bf16.mxu0 0
      %1487 = vmatpush1.bf16.msra.mxu0 0
      %1488 = vmatprep.subr.bf16.mxu0 0
      %1489 = vmatpush1.bf16.msra.mxu0 0
      %1490 = vmatprep.subr.bf16.mxu0 0
      %1491 = vmatpush1.bf16.msra.mxu0 0
      %1492 = vmatprep.subr.bf16.mxu0 0
      %1493 = vmatpush1.bf16.msra.mxu0 0
      %1494 = vmatprep.subr.bf16.mxu0 0
      %1495 = vmatpush1.bf16.msra.mxu0 0
      %1496 = vmatprep.subr.bf16.mxu0 0
      %1497 = vmatpush1.bf16.msra.mxu0 0
      %1498 = vmatprep.mubr.bf16.mxu0 0
      %1499 = vmatmul.mubr.bf16.gmra.mrb[0].mxu0 %v1413
      %v1500 = vpop.f32.mrb[0].mxu0
      %v1501 = vadd.f32 0.0, %v1500
      %v1502 = vpop.f32.mrb[0].mxu0
      %v1503 = vpop.f32.mrb[0].mxu0
      %v1504 = vadd.f32 0.0, %v1503
      %v1505 = vpop.f32.mrb[0].mxu0
      %1506 = vmatprep.mubr.bf16.mxu0 0
      %1507 = vmatmul.mubr.bf16.gmra.mrb[0].mxu0 %v1416
      %v1508 = vpop.f32.mrb[0].mxu0
      %v1509 = vadd.f32 0.0, %v1508
      %v1510 = vpop.f32.mrb[0].mxu0
      %v1511 = vpop.f32.mrb[0].mxu0
      %v1512 = vadd.f32 0.0, %v1511
      %v1513 = vpop.f32.mrb[0].mxu0
      %1514 = vmatprep.mubr.bf16.mxu0 0
      %1515 = vmatmul.mubr.bf16.gmra.mrb[0].mxu0 %v1419
      %v1516 = vpop.f32.mrb[0].mxu0
      %v1517 = vadd.f32 0.0, %v1516
      %v1518 = vpop.f32.mrb[0].mxu0
      %v1519 = vpop.f32.mrb[0].mxu0
      %v1520 = vadd.f32 0.0, %v1519
      %v1521 = vpop.f32.mrb[0].mxu0
      %1522 = vmatprep.mubr.bf16.mxu0 0
      %1523 = vmatmul.mubr.bf16.gmra.mrb[0].mxu0 %v1422
      %v1524 = vpop.f32.mrb[0].mxu0
      %v1525 = vadd.f32 0.0, %v1524
      %v1526 = vpop.f32.mrb[0].mxu0
      %v1527 = vpop.f32.mrb[0].mxu0
      %v1528 = vadd.f32 0.0, %v1527
      %v1529 = vpop.f32.mrb[0].mxu0
      %1530 = vmatprep.mubr.bf16.mxu0 0
      %1531 = vmatmul.mubr.bf16.gmra.mrb[0].mxu0 %v1425
      %v1532 = vpop.f32.mrb[0].mxu0
      %v1533 = vadd.f32 0.0, %v1532
      %v1534 = vpop.f32.mrb[0].mxu0
      %v1535 = vpop.f32.mrb[0].mxu0
      %v1536 = vadd.f32 0.0, %v1535
      %v1537 = vpop.f32.mrb[0].mxu0
      %1538 = vmatprep.mubr.bf16.mxu0 0
      %1539 = vmatmul.mubr.bf16.gmra.mrb[0].mxu0 %v1428
      %v1540 = vpop.f32.mrb[0].mxu0
      %v1541 = vadd.f32 0.0, %v1540
      %v1542 = vpop.f32.mrb[0].mxu0
      %v1543 = vpop.f32.mrb[0].mxu0
      %v1544 = vadd.f32 0.0, %v1543
      %v1545 = vpop.f32.mrb[0].mxu0
      %1546 = vmatprep.mubr.bf16.mxu0 0
      %1547 = vmatmul.mubr.bf16.gmra.mrb[0].mxu0 %v1431
      %v1548 = vpop.f32.mrb[0].mxu0
      %v1549 = vadd.f32 0.0, %v1548
      %v1550 = vpop.f32.mrb[0].mxu0
      %v1551 = vpop.f32.mrb[0].mxu0
      %v1552 = vadd.f32 0.0, %v1551
      %v1553 = vpop.f32.mrb[0].mxu0
      %1554 = vmatprep.mubr.bf16.mxu0 0
      %1555 = vmatmul.mubr.bf16.gmra.mrb[0].mxu0 %v1434
      %v1556 = vpop.f32.mrb[0].mxu0
      %v1557 = vadd.f32 0.0, %v1556
      %v1558 = vpop.f32.mrb[0].mxu0
      %v1559 = vpop.f32.mrb[0].mxu0
      %v1560 = vadd.f32 0.0, %v1559
      %v1561 = vpop.f32.mrb[0].mxu0
      %1562 = vmatprep.mubr.bf16.mxu0 0
      %1563 = vmatmul.mubr.bf16.gmra.mrb[0].mxu0 %v1437
      %v1564 = vpop.f32.mrb[0].mxu0
      %v1565 = vadd.f32 0.0, %v1564
      %v1566 = vpop.f32.mrb[0].mxu0
      %v1567 = vpop.f32.mrb[0].mxu0
      %v1568 = vadd.f32 0.0, %v1567
      %v1569 = vpop.f32.mrb[0].mxu0
      %1570 = vmatprep.mubr.bf16.mxu0 0
      %1571 = vmatmul.mubr.bf16.gmra.mrb[0].mxu0 %v1440
      %v1572 = vpop.f32.mrb[0].mxu0
      %v1573 = vadd.f32 0.0, %v1572
      %v1574 = vpop.f32.mrb[0].mxu0
      %v1575 = vpop.f32.mrb[0].mxu0
      %v1576 = vadd.f32 0.0, %v1575
      %v1577 = vpop.f32.mrb[0].mxu0
      %1578 = vmatprep.mubr.bf16.mxu0 0
      %1579 = vmatmul.mubr.bf16.gmra.mrb[0].mxu0 %v1443
      %v1580 = vpop.f32.mrb[0].mxu0
      %v1581 = vadd.f32 0.0, %v1580
      %v1582 = vpop.f32.mrb[0].mxu0
      %v1583 = vpop.f32.mrb[0].mxu0
      %v1584 = vadd.f32 0.0, %v1583
      %v1585 = vpop.f32.mrb[0].mxu0
      %1586 = vmatprep.mubr.bf16.mxu0 0
      %1587 = vmatmul.mubr.bf16.gmra.mrb[0].mxu0 %v1446
      %v1588 = vpop.f32.mrb[0].mxu0
      %v1589 = vadd.f32 0.0, %v1588
      %v1590 = vpop.f32.mrb[0].mxu0
      %v1591 = vpop.f32.mrb[0].mxu0
      %v1592 = vadd.f32 0.0, %v1591
      %v1593 = vpop.f32.mrb[0].mxu0
      %1594 = vmatprep.mubr.bf16.mxu0 0
      %1595 = vmatmul.mubr.bf16.gmra.mrb[0].mxu0 %v1449
      %v1596 = vpop.f32.mrb[0].mxu0
      %v1597 = vadd.f32 0.0, %v1596
      %v1598 = vpop.f32.mrb[0].mxu0
      %v1599 = vpop.f32.mrb[0].mxu0
      %v1600 = vadd.f32 0.0, %v1599
      %v1601 = vpop.f32.mrb[0].mxu0
      %1602 = vmatprep.mubr.bf16.mxu0 0
      %1603 = vmatmul.mubr.bf16.gmra.mrb[0].mxu0 %v1452
      %v1604 = vpop.f32.mrb[0].mxu0
      %v1605 = vadd.f32 0.0, %v1604
      %v1606 = vpop.f32.mrb[0].mxu0
      %v1607 = vpop.f32.mrb[0].mxu0
      %v1608 = vadd.f32 0.0, %v1607
      %v1609 = vpop.f32.mrb[0].mxu0
      %1610 = vmatprep.mubr.bf16.mxu0 0
      %1611 = vmatmul.mubr.bf16.gmra.mrb[0].mxu0 %v1455
      %v1612 = vpop.f32.mrb[0].mxu0
      %v1613 = vadd.f32 0.0, %v1612
      %v1614 = vpop.f32.mrb[0].mxu0
      %v1615 = vpop.f32.mrb[0].mxu0
      %v1616 = vadd.f32 0.0, %v1615
      %v1617 = vpop.f32.mrb[0].mxu0
      %1618 = vmatprep.mubr.bf16.mxu0 0
      %1619 = vmatmul.mubr.bf16.gmra.mrb[0].mxu0 %v1458
      %v1620 = vpop.f32.mrb[0].mxu0
      %v1621 = vadd.f32 0.0, %v1620
      %v1622 = vpop.f32.mrb[0].mxu0
      %v1623 = vpop.f32.mrb[0].mxu0
      %v1624 = vadd.f32 0.0, %v1623
      %v1625 = vpop.f32.mrb[0].mxu0
      %1626 = vmatprep.mubr.bf16.mxu0 0
      %1627 = vmatmul.mubr.bf16.gmra.mrb[0].mxu0 %v1461
      %v1628 = vpop.f32.mrb[0].mxu0
      %v1629 = vadd.f32 0.0, %v1628
      %v1630 = vpop.f32.mrb[0].mxu0
      %v1631 = vpop.f32.mrb[0].mxu0
      %v1632 = vadd.f32 0.0, %v1631
      %v1633 = vpop.f32.mrb[0].mxu0
      %1634 = vmatprep.mubr.bf16.mxu0 0
      %1635 = vmatmul.mubr.bf16.gmra.mrb[0].mxu0 %v1464
      %v1636 = vpop.f32.mrb[0].mxu0
      %v1637 = vadd.f32 0.0, %v1636
      %v1638 = vpop.f32.mrb[0].mxu0
      %v1639 = vpop.f32.mrb[0].mxu0
      %v1640 = vadd.f32 0.0, %v1639
      %v1641 = vpop.f32.mrb[0].mxu0
      %1642 = vdwg.mxu0
      %v1643 = vadd.f32 %v1289, %v1501
      %v1644 = vadd.f32 %v1290, %v1504
      %v1645 = vadd.f32 %v1291, %v1509
      %v1646 = vadd.f32 %v1292, %v1512
      %v1647 = vadd.f32 %v1293, %v1517
      %v1648 = vadd.f32 %v1294, %v1520
      %v1649 = vadd.f32 %v1295, %v1525
      %v1650 = vadd.f32 %v1296, %v1528
      %v1651 = vadd.f32 %v1297, %v1533
      %v1652 = vadd.f32 %v1298, %v1536
      %v1653 = vadd.f32 %v1299, %v1541
      %v1654 = vadd.f32 %v1300, %v1544
      %v1655 = vadd.f32 %v1301, %v1549
      %v1656 = vadd.f32 %v1302, %v1552
      %v1657 = vadd.f32 %v1303, %v1557
      %v1658 = vadd.f32 %v1304, %v1560
      %v1659 = vadd.f32 %v1305, %v1565
      %v1660 = vadd.f32 %v1306, %v1568
      %v1661 = vadd.f32 %v1307, %v1573
      %v1662 = vadd.f32 %v1308, %v1576
      %v1663 = vadd.f32 %v1309, %v1581
      %v1664 = vadd.f32 %v1310, %v1584
      %v1665 = vadd.f32 %v1311, %v1589
      %v1666 = vadd.f32 %v1312, %v1592
      %v1667 = vadd.f32 %v1313, %v1597
      %v1668 = vadd.f32 %v1314, %v1600
      %v1669 = vadd.f32 %v1315, %v1605
      %v1670 = vadd.f32 %v1316, %v1608
      %v1671 = vadd.f32 %v1317, %v1613
      %v1672 = vadd.f32 %v1318, %v1616
      %v1673 = vadd.f32 %v1319, %v1621
      %v1674 = vadd.f32 %v1320, %v1624
      %v1675 = vadd.f32 %v1321, %v1629
      %v1676 = vadd.f32 %v1322, %v1632
      %v1677 = vadd.f32 %v1323, %v1637
      %v1678 = vadd.f32 %v1324, %v1640
      %v1679 = vld [vmem:[%s309 + $0x13] sm:$0xff]
      %v1680 = vld [vmem:[%s309 + $0x1b] sm:$0xff]
      %v1681 = vld [vmem:[%s309 + $0x23] sm:$0xff]
      %v1682 = vld [vmem:[%s309 + $0x2b] sm:$0xff]
      %v1683 = vld [vmem:[%s309 + $0x33] sm:$0xff]
      %v1684 = vld [vmem:[%s309 + $0x3b] sm:$0xff]
      %v1685 = vld [vmem:[%s309 + $0x43] sm:$0xff]
      %v1686 = vld [vmem:[%s309 + $0x4b] sm:$0xff]
      %v1687 = vld [vmem:[%s309 + $0x53] sm:$0xff]
      %v1688 = vld [vmem:[%s309 + $0x5b] sm:$0xff]
      %v1689 = vld [vmem:[%s309 + $0x63] sm:$0xff]
      %v1690 = vld [vmem:[%s309 + $0x6b] sm:$0xff]
      %v1691 = vld [vmem:[%s309 + $0x73] sm:$0xff]
      %v1692 = vld [vmem:[%s309 + $0x7b] sm:$0xff]
      %v1693 = vld [vmem:[%s309 + $0x83] sm:$0xff]
      %v1694 = vld [vmem:[%s309 + $0x8b] sm:$0xff]
      %v1695 = vld [vmem:[%s309 + $0x93] sm:$0xff]
      %v1696 = vld [vmem:[%s309 + $0x9b] sm:$0xff]
      %v1697 = vld [vmem:[%s309 + $0xa3] sm:$0xff]
      %v1698 = vld [vmem:[%s309 + $0xab] sm:$0xff]
      %v1699 = vld [vmem:[%s309 + $0xb3] sm:$0xff]
      %v1700 = vld [vmem:[%s309 + $0xbb] sm:$0xff]
      %v1701 = vld [vmem:[%s309 + $0xc3] sm:$0xff]
      %v1702 = vld [vmem:[%s309 + $0xcb] sm:$0xff]
      %v1703 = vld [vmem:[%s309 + $0xd3] sm:$0xff]
      %v1704 = vld [vmem:[%s309 + $0xdb] sm:$0xff]
      %v1705 = vld [vmem:[%s309 + $0xe3] sm:$0xff]
      %v1706 = vld [vmem:[%s309 + $0xeb] sm:$0xff]
      %v1707 = vld [vmem:[%s309 + $0xf3] sm:$0xff]
      %v1708 = vld [vmem:[%s309 + $0xfb] sm:$0xff]
      %v1709 = vld [vmem:[%s309 + $0x103] sm:$0xff]
      %v1710 = vld [vmem:[%s309 + $0x10b] sm:$0xff]
      %v1711 = vld [vmem:[%s309 + $0x113] sm:$0xff]
      %v1712 = vld [vmem:[%s309 + $0x11b] sm:$0xff]
      %v1713 = vld [vmem:[%s309 + $0x123] sm:$0xff]
      %v1714 = vld [vmem:[%s309 + $0x12b] sm:$0xff]
      %v1715 = vpack.c.bf16 %v1680, %v1679
      %v1716 = vpack.c.bf16 %v1682, %v1681
      %v1717 = vpack.c.bf16 %v1684, %v1683
      %v1718 = vpack.c.bf16 %v1686, %v1685
      %v1719 = vpack.c.bf16 %v1688, %v1687
      %v1720 = vpack.c.bf16 %v1690, %v1689
      %v1721 = vpack.c.bf16 %v1692, %v1691
      %v1722 = vpack.c.bf16 %v1694, %v1693
      %v1723 = vpack.c.bf16 %v1696, %v1695
      %v1724 = vpack.c.bf16 %v1698, %v1697
      %v1725 = vpack.c.bf16 %v1700, %v1699
      %v1726 = vpack.c.bf16 %v1702, %v1701
      %v1727 = vpack.c.bf16 %v1704, %v1703
      %v1728 = vpack.c.bf16 %v1706, %v1705
      %v1729 = vpack.c.bf16 %v1708, %v1707
      %v1730 = vpack.c.bf16 %v1710, %v1709
      %v1731 = vpack.c.bf16 %v1712, %v1711
      %v1732 = vpack.c.bf16 %v1714, %v1713
      %s1733 = scalar_lea.vmem %s313, 128
      %v1734 = vld [vmem:[%s1733] sm:$0xf]
      %v1735 = vld [vmem:[%s1733 + $0x4] sm:$0xf]
      %v1736 = vld [vmem:[%s1733 + $0x8] sm:$0xf]
      %v1737 = vld [vmem:[%s1733 + $0xc] sm:$0xf]
      %v1738 = vld [vmem:[%s1733 + $0x10] sm:$0xf]
      %v1739 = vld [vmem:[%s1733 + $0x14] sm:$0xf]
      %v1740 = vld [vmem:[%s1733 + $0x18] sm:$0xf]
      %v1741 = vld [vmem:[%s1733 + $0x1c] sm:$0xf]
      %v1750 = vunpack.c.l.b16 %v1734
      %v1751 = vunpack.c.l.b16 %v1735
      %v1752 = vunpack.c.l.b16 %v1736
      %v1753 = vunpack.c.l.b16 %v1737
      %v1754 = vunpack.c.l.b16 %v1738
      %v1755 = vunpack.c.l.b16 %v1739
      %v1756 = vunpack.c.l.b16 %v1740
      %v1757 = vunpack.c.l.b16 %v1741
      %v1758 = vpack.c.b16 %v1751, %v1750
      %v1759 = vpack.c.b16 %v1753, %v1752
      %v1760 = vpack.c.b16 %v1755, %v1754
      %v1761 = vpack.c.b16 %v1757, %v1756
      %v1767 = vsel %vm484, %v1715, 0
      %v1770 = vsel %vm484, %v1716, 0
      %v1773 = vsel %vm484, %v1717, 0
      %v1776 = vsel %vm484, %v1718, 0
      %v1779 = vsel %vm484, %v1719, 0
      %v1782 = vsel %vm484, %v1720, 0
      %v1785 = vsel %vm484, %v1721, 0
      %v1788 = vsel %vm484, %v1722, 0
      %v1791 = vsel %vm484, %v1723, 0
      %v1794 = vsel %vm484, %v1724, 0
      %v1797 = vsel %vm484, %v1725, 0
      %v1800 = vsel %vm484, %v1726, 0
      %v1803 = vsel %vm484, %v1727, 0
      %v1806 = vsel %vm484, %v1728, 0
      %v1809 = vsel %vm484, %v1729, 0
      %v1812 = vsel %vm484, %v1730, 0
      %v1815 = vsel %vm484, %v1731, 0
      %v1818 = vsel %vm484, %v1732, 0
      %1820 = vmatprep.subr.bf16.mxu0 0
      %1821 = vmatpush1.bf16.msra.mxu0 %v1758
      %1822 = vmatprep.subr.bf16.mxu0 0
      %1823 = vmatpush1.bf16.msra.mxu0 %v1759
      %1824 = vmatprep.subr.bf16.mxu0 0
      %1825 = vmatpush1.bf16.msra.mxu0 %v1760
      %1826 = vmatprep.subr.bf16.mxu0 0
      %1827 = vmatpush1.bf16.msra.mxu0 %v1761
      %1828 = vmatprep.subr.bf16.mxu0 0
      %1829 = vmatpush1.bf16.msra.mxu0 0
      %1830 = vmatprep.subr.bf16.mxu0 0
      %1831 = vmatpush1.bf16.msra.mxu0 0
      %1832 = vmatprep.subr.bf16.mxu0 0
      %1833 = vmatpush1.bf16.msra.mxu0 0
      %1834 = vmatprep.subr.bf16.mxu0 0
      %1835 = vmatpush1.bf16.msra.mxu0 0
      %1836 = vmatprep.subr.bf16.mxu0 0
      %1837 = vmatpush1.bf16.msra.mxu0 0
      %1838 = vmatprep.subr.bf16.mxu0 0
      %1839 = vmatpush1.bf16.msra.mxu0 0
      %1840 = vmatprep.subr.bf16.mxu0 0
      %1841 = vmatpush1.bf16.msra.mxu0 0
      %1842 = vmatprep.subr.bf16.mxu0 0
      %1843 = vmatpush1.bf16.msra.mxu0 0
      %1844 = vmatprep.subr.bf16.mxu0 0
      %1845 = vmatpush1.bf16.msra.mxu0 0
      %1846 = vmatprep.subr.bf16.mxu0 0
      %1847 = vmatpush1.bf16.msra.mxu0 0
      %1848 = vmatprep.subr.bf16.mxu0 0
      %1849 = vmatpush1.bf16.msra.mxu0 0
      %1850 = vmatprep.subr.bf16.mxu0 0
      %1851 = vmatpush1.bf16.msra.mxu0 0
      %1852 = vmatprep.mubr.bf16.mxu0 0
      %1853 = vmatmul.mubr.bf16.gmra.mrb[0].mxu0 %v1767
      %v1854 = vpop.f32.mrb[0].mxu0
      %v1855 = vadd.f32 0.0, %v1854
      %v1856 = vpop.f32.mrb[0].mxu0
      %v1857 = vpop.f32.mrb[0].mxu0
      %v1858 = vadd.f32 0.0, %v1857
      %v1859 = vpop.f32.mrb[0].mxu0
      %1860 = vmatprep.mubr.bf16.mxu0 0
      %1861 = vmatmul.mubr.bf16.gmra.mrb[0].mxu0 %v1770
      %v1862 = vpop.f32.mrb[0].mxu0
      %v1863 = vadd.f32 0.0, %v1862
      %v1864 = vpop.f32.mrb[0].mxu0
      %v1865 = vpop.f32.mrb[0].mxu0
      %v1866 = vadd.f32 0.0, %v1865
      %v1867 = vpop.f32.mrb[0].mxu0
      %1868 = vmatprep.mubr.bf16.mxu0 0
      %1869 = vmatmul.mubr.bf16.gmra.mrb[0].mxu0 %v1773
      %v1870 = vpop.f32.mrb[0].mxu0
      %v1871 = vadd.f32 0.0, %v1870
      %v1872 = vpop.f32.mrb[0].mxu0
      %v1873 = vpop.f32.mrb[0].mxu0
      %v1874 = vadd.f32 0.0, %v1873
      %v1875 = vpop.f32.mrb[0].mxu0
      %1876 = vmatprep.mubr.bf16.mxu0 0
      %1877 = vmatmul.mubr.bf16.gmra.mrb[0].mxu0 %v1776
      %v1878 = vpop.f32.mrb[0].mxu0
      %v1879 = vadd.f32 0.0, %v1878
      %v1880 = vpop.f32.mrb[0].mxu0
      %v1881 = vpop.f32.mrb[0].mxu0
      %v1882 = vadd.f32 0.0, %v1881
      %v1883 = vpop.f32.mrb[0].mxu0
      %1884 = vmatprep.mubr.bf16.mxu0 0
      %1885 = vmatmul.mubr.bf16.gmra.mrb[0].mxu0 %v1779
      %v1886 = vpop.f32.mrb[0].mxu0
      %v1887 = vadd.f32 0.0, %v1886
      %v1888 = vpop.f32.mrb[0].mxu0
      %v1889 = vpop.f32.mrb[0].mxu0
      %v1890 = vadd.f32 0.0, %v1889
      %v1891 = vpop.f32.mrb[0].mxu0
      %1892 = vmatprep.mubr.bf16.mxu0 0
      %1893 = vmatmul.mubr.bf16.gmra.mrb[0].mxu0 %v1782
      %v1894 = vpop.f32.mrb[0].mxu0
      %v1895 = vadd.f32 0.0, %v1894
      %v1896 = vpop.f32.mrb[0].mxu0
      %v1897 = vpop.f32.mrb[0].mxu0
      %v1898 = vadd.f32 0.0, %v1897
      %v1899 = vpop.f32.mrb[0].mxu0
      %1900 = vmatprep.mubr.bf16.mxu0 0
      %1901 = vmatmul.mubr.bf16.gmra.mrb[0].mxu0 %v1785
      %v1902 = vpop.f32.mrb[0].mxu0
      %v1903 = vadd.f32 0.0, %v1902
      %v1904 = vpop.f32.mrb[0].mxu0
      %v1905 = vpop.f32.mrb[0].mxu0
      %v1906 = vadd.f32 0.0, %v1905
      %v1907 = vpop.f32.mrb[0].mxu0
      %1908 = vmatprep.mubr.bf16.mxu0 0
      %1909 = vmatmul.mubr.bf16.gmra.mrb[0].mxu0 %v1788
      %v1910 = vpop.f32.mrb[0].mxu0
      %v1911 = vadd.f32 0.0, %v1910
      %v1912 = vpop.f32.mrb[0].mxu0
      %v1913 = vpop.f32.mrb[0].mxu0
      %v1914 = vadd.f32 0.0, %v1913
      %v1915 = vpop.f32.mrb[0].mxu0
      %1916 = vmatprep.mubr.bf16.mxu0 0
      %1917 = vmatmul.mubr.bf16.gmra.mrb[0].mxu0 %v1791
      %v1918 = vpop.f32.mrb[0].mxu0
      %v1919 = vadd.f32 0.0, %v1918
      %v1920 = vpop.f32.mrb[0].mxu0
      %v1921 = vpop.f32.mrb[0].mxu0
      %v1922 = vadd.f32 0.0, %v1921
      %v1923 = vpop.f32.mrb[0].mxu0
      %1924 = vmatprep.mubr.bf16.mxu0 0
      %1925 = vmatmul.mubr.bf16.gmra.mrb[0].mxu0 %v1794
      %v1926 = vpop.f32.mrb[0].mxu0
      %v1927 = vadd.f32 0.0, %v1926
      %v1928 = vpop.f32.mrb[0].mxu0
      %v1929 = vpop.f32.mrb[0].mxu0
      %v1930 = vadd.f32 0.0, %v1929
      %v1931 = vpop.f32.mrb[0].mxu0
      %1932 = vmatprep.mubr.bf16.mxu0 0
      %1933 = vmatmul.mubr.bf16.gmra.mrb[0].mxu0 %v1797
      %v1934 = vpop.f32.mrb[0].mxu0
      %v1935 = vadd.f32 0.0, %v1934
      %v1936 = vpop.f32.mrb[0].mxu0
      %v1937 = vpop.f32.mrb[0].mxu0
      %v1938 = vadd.f32 0.0, %v1937
      %v1939 = vpop.f32.mrb[0].mxu0
      %1940 = vmatprep.mubr.bf16.mxu0 0
      %1941 = vmatmul.mubr.bf16.gmra.mrb[0].mxu0 %v1800
      %v1942 = vpop.f32.mrb[0].mxu0
      %v1943 = vadd.f32 0.0, %v1942
      %v1944 = vpop.f32.mrb[0].mxu0
      %v1945 = vpop.f32.mrb[0].mxu0
      %v1946 = vadd.f32 0.0, %v1945
      %v1947 = vpop.f32.mrb[0].mxu0
      %1948 = vmatprep.mubr.bf16.mxu0 0
      %1949 = vmatmul.mubr.bf16.gmra.mrb[0].mxu0 %v1803
      %v1950 = vpop.f32.mrb[0].mxu0
      %v1951 = vadd.f32 0.0, %v1950
      %v1952 = vpop.f32.mrb[0].mxu0
      %v1953 = vpop.f32.mrb[0].mxu0
      %v1954 = vadd.f32 0.0, %v1953
      %v1955 = vpop.f32.mrb[0].mxu0
      %1956 = vmatprep.mubr.bf16.mxu0 0
      %1957 = vmatmul.mubr.bf16.gmra.mrb[0].mxu0 %v1806
      %v1958 = vpop.f32.mrb[0].mxu0
      %v1959 = vadd.f32 0.0, %v1958
      %v1960 = vpop.f32.mrb[0].mxu0
      %v1961 = vpop.f32.mrb[0].mxu0
      %v1962 = vadd.f32 0.0, %v1961
      %v1963 = vpop.f32.mrb[0].mxu0
      %1964 = vmatprep.mubr.bf16.mxu0 0
      %1965 = vmatmul.mubr.bf16.gmra.mrb[0].mxu0 %v1809
      %v1966 = vpop.f32.mrb[0].mxu0
      %v1967 = vadd.f32 0.0, %v1966
      %v1968 = vpop.f32.mrb[0].mxu0
      %v1969 = vpop.f32.mrb[0].mxu0
      %v1970 = vadd.f32 0.0, %v1969
      %v1971 = vpop.f32.mrb[0].mxu0
      %1972 = vmatprep.mubr.bf16.mxu0 0
      %1973 = vmatmul.mubr.bf16.gmra.mrb[0].mxu0 %v1812
      %v1974 = vpop.f32.mrb[0].mxu0
      %v1975 = vadd.f32 0.0, %v1974
      %v1976 = vpop.f32.mrb[0].mxu0
      %v1977 = vpop.f32.mrb[0].mxu0
      %v1978 = vadd.f32 0.0, %v1977
      %v1979 = vpop.f32.mrb[0].mxu0
      %1980 = vmatprep.mubr.bf16.mxu0 0
      %1981 = vmatmul.mubr.bf16.gmra.mrb[0].mxu0 %v1815
      %v1982 = vpop.f32.mrb[0].mxu0
      %v1983 = vadd.f32 0.0, %v1982
      %v1984 = vpop.f32.mrb[0].mxu0
      %v1985 = vpop.f32.mrb[0].mxu0
      %v1986 = vadd.f32 0.0, %v1985
      %v1987 = vpop.f32.mrb[0].mxu0
      %1988 = vmatprep.mubr.bf16.mxu0 0
      %1989 = vmatmul.mubr.bf16.gmra.mrb[0].mxu0 %v1818
      %v1990 = vpop.f32.mrb[0].mxu0
      %v1991 = vadd.f32 0.0, %v1990
      %v1992 = vpop.f32.mrb[0].mxu0
      %v1993 = vpop.f32.mrb[0].mxu0
      %v1994 = vadd.f32 0.0, %v1993
      %v1995 = vpop.f32.mrb[0].mxu0
      %1996 = vdwg.mxu0
      %v1997 = vadd.f32 %v1643, %v1855
      %v1998 = vadd.f32 %v1644, %v1858
      %v1999 = vadd.f32 %v1645, %v1863
      %v2000 = vadd.f32 %v1646, %v1866
      %v2001 = vadd.f32 %v1647, %v1871
      %v2002 = vadd.f32 %v1648, %v1874
      %v2003 = vadd.f32 %v1649, %v1879
      %v2004 = vadd.f32 %v1650, %v1882
      %v2005 = vadd.f32 %v1651, %v1887
      %v2006 = vadd.f32 %v1652, %v1890
      %v2007 = vadd.f32 %v1653, %v1895
      %v2008 = vadd.f32 %v1654, %v1898
      %v2009 = vadd.f32 %v1655, %v1903
      %v2010 = vadd.f32 %v1656, %v1906
      %v2011 = vadd.f32 %v1657, %v1911
      %v2012 = vadd.f32 %v1658, %v1914
      %v2013 = vadd.f32 %v1659, %v1919
      %v2014 = vadd.f32 %v1660, %v1922
      %v2015 = vadd.f32 %v1661, %v1927
      %v2016 = vadd.f32 %v1662, %v1930
      %v2017 = vadd.f32 %v1663, %v1935
      %v2018 = vadd.f32 %v1664, %v1938
      %v2019 = vadd.f32 %v1665, %v1943
      %v2020 = vadd.f32 %v1666, %v1946
      %v2021 = vadd.f32 %v1667, %v1951
      %v2022 = vadd.f32 %v1668, %v1954
      %v2023 = vadd.f32 %v1669, %v1959
      %v2024 = vadd.f32 %v1670, %v1962
      %v2025 = vadd.f32 %v1671, %v1967
      %v2026 = vadd.f32 %v1672, %v1970
      %v2027 = vadd.f32 %v1673, %v1975
      %v2028 = vadd.f32 %v1674, %v1978
      %v2029 = vadd.f32 %v1675, %v1983
      %v2030 = vadd.f32 %v1676, %v1986
      %v2031 = vadd.f32 %v1677, %v1991
      %v2032 = vadd.f32 %v1678, %v1994
      %v2033 = vld [vmem:[%s309 + $0x14] sm:$0xff]
      %v2034 = vld [vmem:[%s309 + $0x1c] sm:$0xff]
      %v2035 = vld [vmem:[%s309 + $0x24] sm:$0xff]
      %v2036 = vld [vmem:[%s309 + $0x2c] sm:$0xff]
      %v2037 = vld [vmem:[%s309 + $0x34] sm:$0xff]
      %v2038 = vld [vmem:[%s309 + $0x3c] sm:$0xff]
      %v2039 = vld [vmem:[%s309 + $0x44] sm:$0xff]
      %v2040 = vld [vmem:[%s309 + $0x4c] sm:$0xff]
      %v2041 = vld [vmem:[%s309 + $0x54] sm:$0xff]
      %v2042 = vld [vmem:[%s309 + $0x5c] sm:$0xff]
      %v2043 = vld [vmem:[%s309 + $0x64] sm:$0xff]
      %v2044 = vld [vmem:[%s309 + $0x6c] sm:$0xff]
      %v2045 = vld [vmem:[%s309 + $0x74] sm:$0xff]
      %v2046 = vld [vmem:[%s309 + $0x7c] sm:$0xff]
      %v2047 = vld [vmem:[%s309 + $0x84] sm:$0xff]
      %v2048 = vld [vmem:[%s309 + $0x8c] sm:$0xff]
      %v2049 = vld [vmem:[%s309 + $0x94] sm:$0xff]
      %v2050 = vld [vmem:[%s309 + $0x9c] sm:$0xff]
      %v2051 = vld [vmem:[%s309 + $0xa4] sm:$0xff]
      %v2052 = vld [vmem:[%s309 + $0xac] sm:$0xff]
      %v2053 = vld [vmem:[%s309 + $0xb4] sm:$0xff]
      %v2054 = vld [vmem:[%s309 + $0xbc] sm:$0xff]
      %v2055 = vld [vmem:[%s309 + $0xc4] sm:$0xff]
      %v2056 = vld [vmem:[%s309 + $0xcc] sm:$0xff]
      %v2057 = vld [vmem:[%s309 + $0xd4] sm:$0xff]
      %v2058 = vld [vmem:[%s309 + $0xdc] sm:$0xff]
      %v2059 = vld [vmem:[%s309 + $0xe4] sm:$0xff]
      %v2060 = vld [vmem:[%s309 + $0xec] sm:$0xff]
      %v2061 = vld [vmem:[%s309 + $0xf4] sm:$0xff]
      %v2062 = vld [vmem:[%s309 + $0xfc] sm:$0xff]
      %v2063 = vld [vmem:[%s309 + $0x104] sm:$0xff]
      %v2064 = vld [vmem:[%s309 + $0x10c] sm:$0xff]
      %v2065 = vld [vmem:[%s309 + $0x114] sm:$0xff]
      %v2066 = vld [vmem:[%s309 + $0x11c] sm:$0xff]
      %v2067 = vld [vmem:[%s309 + $0x124] sm:$0xff]
      %v2068 = vld [vmem:[%s309 + $0x12c] sm:$0xff]
      %v2069 = vpack.c.bf16 %v2034, %v2033
      %v2070 = vpack.c.bf16 %v2036, %v2035
      %v2071 = vpack.c.bf16 %v2038, %v2037
      %v2072 = vpack.c.bf16 %v2040, %v2039
      %v2073 = vpack.c.bf16 %v2042, %v2041
      %v2074 = vpack.c.bf16 %v2044, %v2043
      %v2075 = vpack.c.bf16 %v2046, %v2045
      %v2076 = vpack.c.bf16 %v2048, %v2047
      %v2077 = vpack.c.bf16 %v2050, %v2049
      %v2078 = vpack.c.bf16 %v2052, %v2051
      %v2079 = vpack.c.bf16 %v2054, %v2053
      %v2080 = vpack.c.bf16 %v2056, %v2055
      %v2081 = vpack.c.bf16 %v2058, %v2057
      %v2082 = vpack.c.bf16 %v2060, %v2059
      %v2083 = vpack.c.bf16 %v2062, %v2061
      %v2084 = vpack.c.bf16 %v2064, %v2063
      %v2085 = vpack.c.bf16 %v2066, %v2065
      %v2086 = vpack.c.bf16 %v2068, %v2067
      %s2087 = scalar_lea.vmem %s313, 160
      %v2088 = vld [vmem:[%s2087] sm:$0xf]
      %v2089 = vld [vmem:[%s2087 + $0x4] sm:$0xf]
      %v2090 = vld [vmem:[%s2087 + $0x8] sm:$0xf]
      %v2091 = vld [vmem:[%s2087 + $0xc] sm:$0xf]
      %v2092 = vld [vmem:[%s2087 + $0x10] sm:$0xf]
      %v2093 = vld [vmem:[%s2087 + $0x14] sm:$0xf]
      %v2094 = vld [vmem:[%s2087 + $0x18] sm:$0xf]
      %v2095 = vld [vmem:[%s2087 + $0x1c] sm:$0xf]
      %v2104 = vunpack.c.l.b16 %v2088
      %v2105 = vunpack.c.l.b16 %v2089
      %v2106 = vunpack.c.l.b16 %v2090
      %v2107 = vunpack.c.l.b16 %v2091
      %v2108 = vunpack.c.l.b16 %v2092
      %v2109 = vunpack.c.l.b16 %v2093
      %v2110 = vunpack.c.l.b16 %v2094
      %v2111 = vunpack.c.l.b16 %v2095
      %v2112 = vpack.c.b16 %v2105, %v2104
      %v2113 = vpack.c.b16 %v2107, %v2106
      %v2114 = vpack.c.b16 %v2109, %v2108
      %v2115 = vpack.c.b16 %v2111, %v2110
      %v2121 = vsel %vm484, %v2069, 0
      %v2124 = vsel %vm484, %v2070, 0
      %v2127 = vsel %vm484, %v2071, 0
      %v2130 = vsel %vm484, %v2072, 0
      %v2133 = vsel %vm484, %v2073, 0
      %v2136 = vsel %vm484, %v2074, 0
      %v2139 = vsel %vm484, %v2075, 0
      %v2142 = vsel %vm484, %v2076, 0
      %v2145 = vsel %vm484, %v2077, 0
      %v2148 = vsel %vm484, %v2078, 0
      %v2151 = vsel %vm484, %v2079, 0
      %v2154 = vsel %vm484, %v2080, 0
      %v2157 = vsel %vm484, %v2081, 0
      %v2160 = vsel %vm484, %v2082, 0
      %v2163 = vsel %vm484, %v2083, 0
      %v2166 = vsel %vm484, %v2084, 0
      %v2169 = vsel %vm484, %v2085, 0
      %v2172 = vsel %vm484, %v2086, 0
      %2174 = vmatprep.subr.bf16.mxu0 0
      %2175 = vmatpush1.bf16.msra.mxu0 %v2112
      %2176 = vmatprep.subr.bf16.mxu0 0
      %2177 = vmatpush1.bf16.msra.mxu0 %v2113
      %2178 = vmatprep.subr.bf16.mxu0 0
      %2179 = vmatpush1.bf16.msra.mxu0 %v2114
      %2180 = vmatprep.subr.bf16.mxu0 0
      %2181 = vmatpush1.bf16.msra.mxu0 %v2115
      %2182 = vmatprep.subr.bf16.mxu0 0
      %2183 = vmatpush1.bf16.msra.mxu0 0
      %2184 = vmatprep.subr.bf16.mxu0 0
      %2185 = vmatpush1.bf16.msra.mxu0 0
      %2186 = vmatprep.subr.bf16.mxu0 0
      %2187 = vmatpush1.bf16.msra.mxu0 0
      %2188 = vmatprep.subr.bf16.mxu0 0
      %2189 = vmatpush1.bf16.msra.mxu0 0
      %2190 = vmatprep.subr.bf16.mxu0 0
      %2191 = vmatpush1.bf16.msra.mxu0 0
      %2192 = vmatprep.subr.bf16.mxu0 0
      %2193 = vmatpush1.bf16.msra.mxu0 0
      %2194 = vmatprep.subr.bf16.mxu0 0
      %2195 = vmatpush1.bf16.msra.mxu0 0
      %2196 = vmatprep.subr.bf16.mxu0 0
      %2197 = vmatpush1.bf16.msra.mxu0 0
      %2198 = vmatprep.subr.bf16.mxu0 0
      %2199 = vmatpush1.bf16.msra.mxu0 0
      %2200 = vmatprep.subr.bf16.mxu0 0
      %2201 = vmatpush1.bf16.msra.mxu0 0
      %2202 = vmatprep.subr.bf16.mxu0 0
      %2203 = vmatpush1.bf16.msra.mxu0 0
      %2204 = vmatprep.subr.bf16.mxu0 0
      %2205 = vmatpush1.bf16.msra.mxu0 0
      %2206 = vmatprep.mubr.bf16.mxu0 0
      %2207 = vmatmul.mubr.bf16.gmra.mrb[0].mxu0 %v2121
      %v2208 = vpop.f32.mrb[0].mxu0
      %v2209 = vadd.f32 0.0, %v2208
      %v2210 = vpop.f32.mrb[0].mxu0
      %v2211 = vpop.f32.mrb[0].mxu0
      %v2212 = vadd.f32 0.0, %v2211
      %v2213 = vpop.f32.mrb[0].mxu0
      %2214 = vmatprep.mubr.bf16.mxu0 0
      %2215 = vmatmul.mubr.bf16.gmra.mrb[0].mxu0 %v2124
      %v2216 = vpop.f32.mrb[0].mxu0
      %v2217 = vadd.f32 0.0, %v2216
      %v2218 = vpop.f32.mrb[0].mxu0
      %v2219 = vpop.f32.mrb[0].mxu0
      %v2220 = vadd.f32 0.0, %v2219
      %v2221 = vpop.f32.mrb[0].mxu0
      %2222 = vmatprep.mubr.bf16.mxu0 0
      %2223 = vmatmul.mubr.bf16.gmra.mrb[0].mxu0 %v2127
      %v2224 = vpop.f32.mrb[0].mxu0
      %v2225 = vadd.f32 0.0, %v2224
      %v2226 = vpop.f32.mrb[0].mxu0
      %v2227 = vpop.f32.mrb[0].mxu0
      %v2228 = vadd.f32 0.0, %v2227
      %v2229 = vpop.f32.mrb[0].mxu0
      %2230 = vmatprep.mubr.bf16.mxu0 0
      %2231 = vmatmul.mubr.bf16.gmra.mrb[0].mxu0 %v2130
      %v2232 = vpop.f32.mrb[0].mxu0
      %v2233 = vadd.f32 0.0, %v2232
      %v2234 = vpop.f32.mrb[0].mxu0
      %v2235 = vpop.f32.mrb[0].mxu0
      %v2236 = vadd.f32 0.0, %v2235
      %v2237 = vpop.f32.mrb[0].mxu0
      %2238 = vmatprep.mubr.bf16.mxu0 0
      %2239 = vmatmul.mubr.bf16.gmra.mrb[0].mxu0 %v2133
      %v2240 = vpop.f32.mrb[0].mxu0
      %v2241 = vadd.f32 0.0, %v2240
      %v2242 = vpop.f32.mrb[0].mxu0
      %v2243 = vpop.f32.mrb[0].mxu0
      %v2244 = vadd.f32 0.0, %v2243
      %v2245 = vpop.f32.mrb[0].mxu0
      %2246 = vmatprep.mubr.bf16.mxu0 0
      %2247 = vmatmul.mubr.bf16.gmra.mrb[0].mxu0 %v2136
      %v2248 = vpop.f32.mrb[0].mxu0
      %v2249 = vadd.f32 0.0, %v2248
      %v2250 = vpop.f32.mrb[0].mxu0
      %v2251 = vpop.f32.mrb[0].mxu0
      %v2252 = vadd.f32 0.0, %v2251
      %v2253 = vpop.f32.mrb[0].mxu0
      %2254 = vmatprep.mubr.bf16.mxu0 0
      %2255 = vmatmul.mubr.bf16.gmra.mrb[0].mxu0 %v2139
      %v2256 = vpop.f32.mrb[0].mxu0
      %v2257 = vadd.f32 0.0, %v2256
      %v2258 = vpop.f32.mrb[0].mxu0
      %v2259 = vpop.f32.mrb[0].mxu0
      %v2260 = vadd.f32 0.0, %v2259
      %v2261 = vpop.f32.mrb[0].mxu0
      %2262 = vmatprep.mubr.bf16.mxu0 0
      %2263 = vmatmul.mubr.bf16.gmra.mrb[0].mxu0 %v2142
      %v2264 = vpop.f32.mrb[0].mxu0
      %v2265 = vadd.f32 0.0, %v2264
      %v2266 = vpop.f32.mrb[0].mxu0
      %v2267 = vpop.f32.mrb[0].mxu0
      %v2268 = vadd.f32 0.0, %v2267
      %v2269 = vpop.f32.mrb[0].mxu0
      %2270 = vmatprep.mubr.bf16.mxu0 0
      %2271 = vmatmul.mubr.bf16.gmra.mrb[0].mxu0 %v2145
      %v2272 = vpop.f32.mrb[0].mxu0
      %v2273 = vadd.f32 0.0, %v2272
      %v2274 = vpop.f32.mrb[0].mxu0
      %v2275 = vpop.f32.mrb[0].mxu0
      %v2276 = vadd.f32 0.0, %v2275
      %v2277 = vpop.f32.mrb[0].mxu0
      %2278 = vmatprep.mubr.bf16.mxu0 0
      %2279 = vmatmul.mubr.bf16.gmra.mrb[0].mxu0 %v2148
      %v2280 = vpop.f32.mrb[0].mxu0
      %v2281 = vadd.f32 0.0, %v2280
      %v2282 = vpop.f32.mrb[0].mxu0
      %v2283 = vpop.f32.mrb[0].mxu0
      %v2284 = vadd.f32 0.0, %v2283
      %v2285 = vpop.f32.mrb[0].mxu0
      %2286 = vmatprep.mubr.bf16.mxu0 0
      %2287 = vmatmul.mubr.bf16.gmra.mrb[0].mxu0 %v2151
      %v2288 = vpop.f32.mrb[0].mxu0
      %v2289 = vadd.f32 0.0, %v2288
      %v2290 = vpop.f32.mrb[0].mxu0
      %v2291 = vpop.f32.mrb[0].mxu0
      %v2292 = vadd.f32 0.0, %v2291
      %v2293 = vpop.f32.mrb[0].mxu0
      %2294 = vmatprep.mubr.bf16.mxu0 0
      %2295 = vmatmul.mubr.bf16.gmra.mrb[0].mxu0 %v2154
      %v2296 = vpop.f32.mrb[0].mxu0
      %v2297 = vadd.f32 0.0, %v2296
      %v2298 = vpop.f32.mrb[0].mxu0
      %v2299 = vpop.f32.mrb[0].mxu0
      %v2300 = vadd.f32 0.0, %v2299
      %v2301 = vpop.f32.mrb[0].mxu0
      %2302 = vmatprep.mubr.bf16.mxu0 0
      %2303 = vmatmul.mubr.bf16.gmra.mrb[0].mxu0 %v2157
      %v2304 = vpop.f32.mrb[0].mxu0
      %v2305 = vadd.f32 0.0, %v2304
      %v2306 = vpop.f32.mrb[0].mxu0
      %v2307 = vpop.f32.mrb[0].mxu0
      %v2308 = vadd.f32 0.0, %v2307
      %v2309 = vpop.f32.mrb[0].mxu0
      %2310 = vmatprep.mubr.bf16.mxu0 0
      %2311 = vmatmul.mubr.bf16.gmra.mrb[0].mxu0 %v2160
      %v2312 = vpop.f32.mrb[0].mxu0
      %v2313 = vadd.f32 0.0, %v2312
      %v2314 = vpop.f32.mrb[0].mxu0
      %v2315 = vpop.f32.mrb[0].mxu0
      %v2316 = vadd.f32 0.0, %v2315
      %v2317 = vpop.f32.mrb[0].mxu0
      %2318 = vmatprep.mubr.bf16.mxu0 0
      %2319 = vmatmul.mubr.bf16.gmra.mrb[0].mxu0 %v2163
      %v2320 = vpop.f32.mrb[0].mxu0
      %v2321 = vadd.f32 0.0, %v2320
      %v2322 = vpop.f32.mrb[0].mxu0
      %v2323 = vpop.f32.mrb[0].mxu0
      %v2324 = vadd.f32 0.0, %v2323
      %v2325 = vpop.f32.mrb[0].mxu0
      %2326 = vmatprep.mubr.bf16.mxu0 0
      %2327 = vmatmul.mubr.bf16.gmra.mrb[0].mxu0 %v2166
      %v2328 = vpop.f32.mrb[0].mxu0
      %v2329 = vadd.f32 0.0, %v2328
      %v2330 = vpop.f32.mrb[0].mxu0
      %v2331 = vpop.f32.mrb[0].mxu0
      %v2332 = vadd.f32 0.0, %v2331
      %v2333 = vpop.f32.mrb[0].mxu0
      %2334 = vmatprep.mubr.bf16.mxu0 0
      %2335 = vmatmul.mubr.bf16.gmra.mrb[0].mxu0 %v2169
      %v2336 = vpop.f32.mrb[0].mxu0
      %v2337 = vadd.f32 0.0, %v2336
      %v2338 = vpop.f32.mrb[0].mxu0
      %v2339 = vpop.f32.mrb[0].mxu0
      %v2340 = vadd.f32 0.0, %v2339
      %v2341 = vpop.f32.mrb[0].mxu0
      %2342 = vmatprep.mubr.bf16.mxu0 0
      %2343 = vmatmul.mubr.bf16.gmra.mrb[0].mxu0 %v2172
      %v2344 = vpop.f32.mrb[0].mxu0
      %v2345 = vadd.f32 0.0, %v2344
      %v2346 = vpop.f32.mrb[0].mxu0
      %v2347 = vpop.f32.mrb[0].mxu0
      %v2348 = vadd.f32 0.0, %v2347
      %v2349 = vpop.f32.mrb[0].mxu0
      %2350 = vdwg.mxu0
      %v2351 = vadd.f32 %v1997, %v2209
      %v2352 = vadd.f32 %v1998, %v2212
      %v2353 = vadd.f32 %v1999, %v2217
      %v2354 = vadd.f32 %v2000, %v2220
      %v2355 = vadd.f32 %v2001, %v2225
      %v2356 = vadd.f32 %v2002, %v2228
      %v2357 = vadd.f32 %v2003, %v2233
      %v2358 = vadd.f32 %v2004, %v2236
      %v2359 = vadd.f32 %v2005, %v2241
      %v2360 = vadd.f32 %v2006, %v2244
      %v2361 = vadd.f32 %v2007, %v2249
      %v2362 = vadd.f32 %v2008, %v2252
      %v2363 = vadd.f32 %v2009, %v2257
      %v2364 = vadd.f32 %v2010, %v2260
      %v2365 = vadd.f32 %v2011, %v2265
      %v2366 = vadd.f32 %v2012, %v2268
      %v2367 = vadd.f32 %v2013, %v2273
      %v2368 = vadd.f32 %v2014, %v2276
      %v2369 = vadd.f32 %v2015, %v2281
      %v2370 = vadd.f32 %v2016, %v2284
      %v2371 = vadd.f32 %v2017, %v2289
      %v2372 = vadd.f32 %v2018, %v2292
      %v2373 = vadd.f32 %v2019, %v2297
      %v2374 = vadd.f32 %v2020, %v2300
      %v2375 = vadd.f32 %v2021, %v2305
      %v2376 = vadd.f32 %v2022, %v2308
      %v2377 = vadd.f32 %v2023, %v2313
      %v2378 = vadd.f32 %v2024, %v2316
      %v2379 = vadd.f32 %v2025, %v2321
      %v2380 = vadd.f32 %v2026, %v2324
      %v2381 = vadd.f32 %v2027, %v2329
      %v2382 = vadd.f32 %v2028, %v2332
      %v2383 = vadd.f32 %v2029, %v2337
      %v2384 = vadd.f32 %v2030, %v2340
      %v2385 = vadd.f32 %v2031, %v2345
      %v2386 = vadd.f32 %v2032, %v2348
      %v2387 = vld [vmem:[%s309 + $0x24] sm:$0xff]
      %v2388 = vld [vmem:[%s309 + $0x2c] sm:$0xff]
      %v2389 = vld [vmem:[%s309 + $0x34] sm:$0xff]
      %v2390 = vld [vmem:[%s309 + $0x3c] sm:$0xff]
      %v2391 = vld [vmem:[%s309 + $0x44] sm:$0xff]
      %v2392 = vld [vmem:[%s309 + $0x4c] sm:$0xff]
      %v2393 = vld [vmem:[%s309 + $0x54] sm:$0xff]
      %v2394 = vld [vmem:[%s309 + $0x5c] sm:$0xff]
      %v2395 = vld [vmem:[%s309 + $0x64] sm:$0xff]
      %v2396 = vld [vmem:[%s309 + $0x6c] sm:$0xff]
      %v2397 = vld [vmem:[%s309 + $0x74] sm:$0xff]
      %v2398 = vld [vmem:[%s309 + $0x7c] sm:$0xff]
      %v2399 = vld [vmem:[%s309 + $0x84] sm:$0xff]
      %v2400 = vld [vmem:[%s309 + $0x8c] sm:$0xff]
      %v2401 = vld [vmem:[%s309 + $0x94] sm:$0xff]
      %v2402 = vld [vmem:[%s309 + $0x9c] sm:$0xff]
      %v2403 = vld [vmem:[%s309 + $0xa4] sm:$0xff]
      %v2404 = vld [vmem:[%s309 + $0xac] sm:$0xff]
      %v2405 = vld [vmem:[%s309 + $0xb4] sm:$0xff]
      %v2406 = vld [vmem:[%s309 + $0xbc] sm:$0xff]
      %v2407 = vld [vmem:[%s309 + $0xc4] sm:$0xff]
      %v2408 = vld [vmem:[%s309 + $0xcc] sm:$0xff]
      %v2409 = vld [vmem:[%s309 + $0xd4] sm:$0xff]
      %v2410 = vld [vmem:[%s309 + $0xdc] sm:$0xff]
      %v2411 = vld [vmem:[%s309 + $0xe4] sm:$0xff]
      %v2412 = vld [vmem:[%s309 + $0xec] sm:$0xff]
      %v2413 = vld [vmem:[%s309 + $0xf4] sm:$0xff]
      %v2414 = vld [vmem:[%s309 + $0xfc] sm:$0xff]
      %v2415 = vld [vmem:[%s309 + $0x104] sm:$0xff]
      %v2416 = vld [vmem:[%s309 + $0x10c] sm:$0xff]
      %v2417 = vld [vmem:[%s309 + $0x114] sm:$0xff]
      %v2418 = vld [vmem:[%s309 + $0x11c] sm:$0xff]
      %v2419 = vld [vmem:[%s309 + $0x124] sm:$0xff]
      %v2420 = vld [vmem:[%s309 + $0x12c] sm:$0xff]
      %v2421 = vld [vmem:[%s309 + $0x134] sm:$0xff]
      %v2422 = vld [vmem:[%s309 + $0x13c] sm:$0xff]
      %v2423 = vpack.c.bf16 %v2388, %v2387
      %v2424 = vpack.c.bf16 %v2390, %v2389
      %v2425 = vpack.c.bf16 %v2392, %v2391
      %v2426 = vpack.c.bf16 %v2394, %v2393
      %v2427 = vpack.c.bf16 %v2396, %v2395
      %v2428 = vpack.c.bf16 %v2398, %v2397
      %v2429 = vpack.c.bf16 %v2400, %v2399
      %v2430 = vpack.c.bf16 %v2402, %v2401
      %v2431 = vpack.c.bf16 %v2404, %v2403
      %v2432 = vpack.c.bf16 %v2406, %v2405
      %v2433 = vpack.c.bf16 %v2408, %v2407
      %v2434 = vpack.c.bf16 %v2410, %v2409
      %v2435 = vpack.c.bf16 %v2412, %v2411
      %v2436 = vpack.c.bf16 %v2414, %v2413
      %v2437 = vpack.c.bf16 %v2416, %v2415
      %v2438 = vpack.c.bf16 %v2418, %v2417
      %v2439 = vpack.c.bf16 %v2420, %v2419
      %v2440 = vpack.c.bf16 %v2422, %v2421
      %s2441 = scalar_lea.vmem %s313, 192
      %v2442 = vld [vmem:[%s2441] sm:$0xf]
      %v2443 = vld [vmem:[%s2441 + $0x4] sm:$0xf]
      %v2444 = vld [vmem:[%s2441 + $0x8] sm:$0xf]
      %v2445 = vld [vmem:[%s2441 + $0xc] sm:$0xf]
      %v2446 = vld [vmem:[%s2441 + $0x10] sm:$0xf]
      %v2447 = vld [vmem:[%s2441 + $0x14] sm:$0xf]
      %v2448 = vld [vmem:[%s2441 + $0x18] sm:$0xf]
      %v2449 = vld [vmem:[%s2441 + $0x1c] sm:$0xf]
      %v2458 = vunpack.c.l.b16 %v2442
      %v2459 = vunpack.c.l.b16 %v2443
      %v2460 = vunpack.c.l.b16 %v2444
      %v2461 = vunpack.c.l.b16 %v2445
      %v2462 = vunpack.c.l.b16 %v2446
      %v2463 = vunpack.c.l.b16 %v2447
      %v2464 = vunpack.c.l.b16 %v2448
      %v2465 = vunpack.c.l.b16 %v2449
      %v2466 = vpack.c.b16 %v2459, %v2458
      %v2467 = vpack.c.b16 %v2461, %v2460
      %v2468 = vpack.c.b16 %v2463, %v2462
      %v2469 = vpack.c.b16 %v2465, %v2464
      %v2475 = vsel %vm484, %v2423, 0
      %v2478 = vsel %vm484, %v2424, 0
      %v2481 = vsel %vm484, %v2425, 0
      %v2484 = vsel %vm484, %v2426, 0
      %v2487 = vsel %vm484, %v2427, 0
      %v2490 = vsel %vm484, %v2428, 0
      %v2493 = vsel %vm484, %v2429, 0
      %v2496 = vsel %vm484, %v2430, 0
      %v2499 = vsel %vm484, %v2431, 0
      %v2502 = vsel %vm484, %v2432, 0
      %v2505 = vsel %vm484, %v2433, 0
      %v2508 = vsel %vm484, %v2434, 0
      %v2511 = vsel %vm484, %v2435, 0
      %v2514 = vsel %vm484, %v2436, 0
      %v2517 = vsel %vm484, %v2437, 0
      %v2520 = vsel %vm484, %v2438, 0
      %v2523 = vsel %vm484, %v2439, 0
      %v2526 = vsel %vm484, %v2440, 0
      %2528 = vmatprep.subr.bf16.mxu0 0
      %2529 = vmatpush1.bf16.msra.mxu0 %v2466
      %2530 = vmatprep.subr.bf16.mxu0 0
      %2531 = vmatpush1.bf16.msra.mxu0 %v2467
      %2532 = vmatprep.subr.bf16.mxu0 0
      %2533 = vmatpush1.bf16.msra.mxu0 %v2468
      %2534 = vmatprep.subr.bf16.mxu0 0
      %2535 = vmatpush1.bf16.msra.mxu0 %v2469
      %2536 = vmatprep.subr.bf16.mxu0 0
      %2537 = vmatpush1.bf16.msra.mxu0 0
      %2538 = vmatprep.subr.bf16.mxu0 0
      %2539 = vmatpush1.bf16.msra.mxu0 0
      %2540 = vmatprep.subr.bf16.mxu0 0
      %2541 = vmatpush1.bf16.msra.mxu0 0
      %2542 = vmatprep.subr.bf16.mxu0 0
      %2543 = vmatpush1.bf16.msra.mxu0 0
      %2544 = vmatprep.subr.bf16.mxu0 0
      %2545 = vmatpush1.bf16.msra.mxu0 0
      %2546 = vmatprep.subr.bf16.mxu0 0
      %2547 = vmatpush1.bf16.msra.mxu0 0
      %2548 = vmatprep.subr.bf16.mxu0 0
      %2549 = vmatpush1.bf16.msra.mxu0 0
      %2550 = vmatprep.subr.bf16.mxu0 0
      %2551 = vmatpush1.bf16.msra.mxu0 0
      %2552 = vmatprep.subr.bf16.mxu0 0
      %2553 = vmatpush1.bf16.msra.mxu0 0
      %2554 = vmatprep.subr.bf16.mxu0 0
      %2555 = vmatpush1.bf16.msra.mxu0 0
      %2556 = vmatprep.subr.bf16.mxu0 0
      %2557 = vmatpush1.bf16.msra.mxu0 0
      %2558 = vmatprep.subr.bf16.mxu0 0
      %2559 = vmatpush1.bf16.msra.mxu0 0
      %2560 = vmatprep.mubr.bf16.mxu0 0
      %2561 = vmatmul.mubr.bf16.gmra.mrb[0].mxu0 %v2475
      %v2562 = vpop.f32.mrb[0].mxu0
      %v2563 = vadd.f32 0.0, %v2562
      %v2564 = vpop.f32.mrb[0].mxu0
      %v2565 = vpop.f32.mrb[0].mxu0
      %v2566 = vadd.f32 0.0, %v2565
      %v2567 = vpop.f32.mrb[0].mxu0
      %2568 = vmatprep.mubr.bf16.mxu0 0
      %2569 = vmatmul.mubr.bf16.gmra.mrb[0].mxu0 %v2478
      %v2570 = vpop.f32.mrb[0].mxu0
      %v2571 = vadd.f32 0.0, %v2570
      %v2572 = vpop.f32.mrb[0].mxu0
      %v2573 = vpop.f32.mrb[0].mxu0
      %v2574 = vadd.f32 0.0, %v2573
      %v2575 = vpop.f32.mrb[0].mxu0
      %2576 = vmatprep.mubr.bf16.mxu0 0
      %2577 = vmatmul.mubr.bf16.gmra.mrb[0].mxu0 %v2481
      %v2578 = vpop.f32.mrb[0].mxu0
      %v2579 = vadd.f32 0.0, %v2578
      %v2580 = vpop.f32.mrb[0].mxu0
      %v2581 = vpop.f32.mrb[0].mxu0
      %v2582 = vadd.f32 0.0, %v2581
      %v2583 = vpop.f32.mrb[0].mxu0
      %2584 = vmatprep.mubr.bf16.mxu0 0
      %2585 = vmatmul.mubr.bf16.gmra.mrb[0].mxu0 %v2484
      %v2586 = vpop.f32.mrb[0].mxu0
      %v2587 = vadd.f32 0.0, %v2586
      %v2588 = vpop.f32.mrb[0].mxu0
      %v2589 = vpop.f32.mrb[0].mxu0
      %v2590 = vadd.f32 0.0, %v2589
      %v2591 = vpop.f32.mrb[0].mxu0
      %2592 = vmatprep.mubr.bf16.mxu0 0
      %2593 = vmatmul.mubr.bf16.gmra.mrb[0].mxu0 %v2487
      %v2594 = vpop.f32.mrb[0].mxu0
      %v2595 = vadd.f32 0.0, %v2594
      %v2596 = vpop.f32.mrb[0].mxu0
      %v2597 = vpop.f32.mrb[0].mxu0
      %v2598 = vadd.f32 0.0, %v2597
      %v2599 = vpop.f32.mrb[0].mxu0
      %2600 = vmatprep.mubr.bf16.mxu0 0
      %2601 = vmatmul.mubr.bf16.gmra.mrb[0].mxu0 %v2490
      %v2602 = vpop.f32.mrb[0].mxu0
      %v2603 = vadd.f32 0.0, %v2602
      %v2604 = vpop.f32.mrb[0].mxu0
      %v2605 = vpop.f32.mrb[0].mxu0
      %v2606 = vadd.f32 0.0, %v2605
      %v2607 = vpop.f32.mrb[0].mxu0
      %2608 = vmatprep.mubr.bf16.mxu0 0
      %2609 = vmatmul.mubr.bf16.gmra.mrb[0].mxu0 %v2493
      %v2610 = vpop.f32.mrb[0].mxu0
      %v2611 = vadd.f32 0.0, %v2610
      %v2612 = vpop.f32.mrb[0].mxu0
      %v2613 = vpop.f32.mrb[0].mxu0
      %v2614 = vadd.f32 0.0, %v2613
      %v2615 = vpop.f32.mrb[0].mxu0
      %2616 = vmatprep.mubr.bf16.mxu0 0
      %2617 = vmatmul.mubr.bf16.gmra.mrb[0].mxu0 %v2496
      %v2618 = vpop.f32.mrb[0].mxu0
      %v2619 = vadd.f32 0.0, %v2618
      %v2620 = vpop.f32.mrb[0].mxu0
      %v2621 = vpop.f32.mrb[0].mxu0
      %v2622 = vadd.f32 0.0, %v2621
      %v2623 = vpop.f32.mrb[0].mxu0
      %2624 = vmatprep.mubr.bf16.mxu0 0
      %2625 = vmatmul.mubr.bf16.gmra.mrb[0].mxu0 %v2499
      %v2626 = vpop.f32.mrb[0].mxu0
      %v2627 = vadd.f32 0.0, %v2626
      %v2628 = vpop.f32.mrb[0].mxu0
      %v2629 = vpop.f32.mrb[0].mxu0
      %v2630 = vadd.f32 0.0, %v2629
      %v2631 = vpop.f32.mrb[0].mxu0
      %2632 = vmatprep.mubr.bf16.mxu0 0
      %2633 = vmatmul.mubr.bf16.gmra.mrb[0].mxu0 %v2502
      %v2634 = vpop.f32.mrb[0].mxu0
      %v2635 = vadd.f32 0.0, %v2634
      %v2636 = vpop.f32.mrb[0].mxu0
      %v2637 = vpop.f32.mrb[0].mxu0
      %v2638 = vadd.f32 0.0, %v2637
      %v2639 = vpop.f32.mrb[0].mxu0
      %2640 = vmatprep.mubr.bf16.mxu0 0
      %2641 = vmatmul.mubr.bf16.gmra.mrb[0].mxu0 %v2505
      %v2642 = vpop.f32.mrb[0].mxu0
      %v2643 = vadd.f32 0.0, %v2642
      %v2644 = vpop.f32.mrb[0].mxu0
      %v2645 = vpop.f32.mrb[0].mxu0
      %v2646 = vadd.f32 0.0, %v2645
      %v2647 = vpop.f32.mrb[0].mxu0
      %2648 = vmatprep.mubr.bf16.mxu0 0
      %2649 = vmatmul.mubr.bf16.gmra.mrb[0].mxu0 %v2508
      %v2650 = vpop.f32.mrb[0].mxu0
      %v2651 = vadd.f32 0.0, %v2650
      %v2652 = vpop.f32.mrb[0].mxu0
      %v2653 = vpop.f32.mrb[0].mxu0
      %v2654 = vadd.f32 0.0, %v2653
      %v2655 = vpop.f32.mrb[0].mxu0
      %2656 = vmatprep.mubr.bf16.mxu0 0
      %2657 = vmatmul.mubr.bf16.gmra.mrb[0].mxu0 %v2511
      %v2658 = vpop.f32.mrb[0].mxu0
      %v2659 = vadd.f32 0.0, %v2658
      %v2660 = vpop.f32.mrb[0].mxu0
      %v2661 = vpop.f32.mrb[0].mxu0
      %v2662 = vadd.f32 0.0, %v2661
      %v2663 = vpop.f32.mrb[0].mxu0
      %2664 = vmatprep.mubr.bf16.mxu0 0
      %2665 = vmatmul.mubr.bf16.gmra.mrb[0].mxu0 %v2514
      %v2666 = vpop.f32.mrb[0].mxu0
      %v2667 = vadd.f32 0.0, %v2666
      %v2668 = vpop.f32.mrb[0].mxu0
      %v2669 = vpop.f32.mrb[0].mxu0
      %v2670 = vadd.f32 0.0, %v2669
      %v2671 = vpop.f32.mrb[0].mxu0
      %2672 = vmatprep.mubr.bf16.mxu0 0
      %2673 = vmatmul.mubr.bf16.gmra.mrb[0].mxu0 %v2517
      %v2674 = vpop.f32.mrb[0].mxu0
      %v2675 = vadd.f32 0.0, %v2674
      %v2676 = vpop.f32.mrb[0].mxu0
      %v2677 = vpop.f32.mrb[0].mxu0
      %v2678 = vadd.f32 0.0, %v2677
      %v2679 = vpop.f32.mrb[0].mxu0
      %2680 = vmatprep.mubr.bf16.mxu0 0
      %2681 = vmatmul.mubr.bf16.gmra.mrb[0].mxu0 %v2520
      %v2682 = vpop.f32.mrb[0].mxu0
      %v2683 = vadd.f32 0.0, %v2682
      %v2684 = vpop.f32.mrb[0].mxu0
      %v2685 = vpop.f32.mrb[0].mxu0
      %v2686 = vadd.f32 0.0, %v2685
      %v2687 = vpop.f32.mrb[0].mxu0
      %2688 = vmatprep.mubr.bf16.mxu0 0
      %2689 = vmatmul.mubr.bf16.gmra.mrb[0].mxu0 %v2523
      %v2690 = vpop.f32.mrb[0].mxu0
      %v2691 = vadd.f32 0.0, %v2690
      %v2692 = vpop.f32.mrb[0].mxu0
      %v2693 = vpop.f32.mrb[0].mxu0
      %v2694 = vadd.f32 0.0, %v2693
      %v2695 = vpop.f32.mrb[0].mxu0
      %2696 = vmatprep.mubr.bf16.mxu0 0
      %2697 = vmatmul.mubr.bf16.gmra.mrb[0].mxu0 %v2526
      %v2698 = vpop.f32.mrb[0].mxu0
      %v2699 = vadd.f32 0.0, %v2698
      %v2700 = vpop.f32.mrb[0].mxu0
      %v2701 = vpop.f32.mrb[0].mxu0
      %v2702 = vadd.f32 0.0, %v2701
      %v2703 = vpop.f32.mrb[0].mxu0
      %2704 = vdwg.mxu0
      %v2705 = vadd.f32 %v2351, %v2563
      %v2706 = vadd.f32 %v2352, %v2566
      %v2707 = vadd.f32 %v2353, %v2571
      %v2708 = vadd.f32 %v2354, %v2574
      %v2709 = vadd.f32 %v2355, %v2579
      %v2710 = vadd.f32 %v2356, %v2582
      %v2711 = vadd.f32 %v2357, %v2587
      %v2712 = vadd.f32 %v2358, %v2590
      %v2713 = vadd.f32 %v2359, %v2595
      %v2714 = vadd.f32 %v2360, %v2598
      %v2715 = vadd.f32 %v2361, %v2603
      %v2716 = vadd.f32 %v2362, %v2606
      %v2717 = vadd.f32 %v2363, %v2611
      %v2718 = vadd.f32 %v2364, %v2614
      %v2719 = vadd.f32 %v2365, %v2619
      %v2720 = vadd.f32 %v2366, %v2622
      %v2721 = vadd.f32 %v2367, %v2627
      %v2722 = vadd.f32 %v2368, %v2630
      %v2723 = vadd.f32 %v2369, %v2635
      %v2724 = vadd.f32 %v2370, %v2638
      %v2725 = vadd.f32 %v2371, %v2643
      %v2726 = vadd.f32 %v2372, %v2646
      %v2727 = vadd.f32 %v2373, %v2651
      %v2728 = vadd.f32 %v2374, %v2654
      %v2729 = vadd.f32 %v2375, %v2659
      %v2730 = vadd.f32 %v2376, %v2662
      %v2731 = vadd.f32 %v2377, %v2667
      %v2732 = vadd.f32 %v2378, %v2670
      %v2733 = vadd.f32 %v2379, %v2675
      %v2734 = vadd.f32 %v2380, %v2678
      %v2735 = vadd.f32 %v2381, %v2683
      %v2736 = vadd.f32 %v2382, %v2686
      %v2737 = vadd.f32 %v2383, %v2691
      %v2738 = vadd.f32 %v2384, %v2694
      %v2739 = vadd.f32 %v2385, %v2699
      %v2740 = vadd.f32 %v2386, %v2702
      %v2741 = vld [vmem:[%s309 + $0x25] sm:$0xff]
      %v2742 = vld [vmem:[%s309 + $0x2d] sm:$0xff]
      %v2743 = vld [vmem:[%s309 + $0x35] sm:$0xff]
      %v2744 = vld [vmem:[%s309 + $0x3d] sm:$0xff]
      %v2745 = vld [vmem:[%s309 + $0x45] sm:$0xff]
      %v2746 = vld [vmem:[%s309 + $0x4d] sm:$0xff]
      %v2747 = vld [vmem:[%s309 + $0x55] sm:$0xff]
      %v2748 = vld [vmem:[%s309 + $0x5d] sm:$0xff]
      %v2749 = vld [vmem:[%s309 + $0x65] sm:$0xff]
      %v2750 = vld [vmem:[%s309 + $0x6d] sm:$0xff]
      %v2751 = vld [vmem:[%s309 + $0x75] sm:$0xff]
      %v2752 = vld [vmem:[%s309 + $0x7d] sm:$0xff]
      %v2753 = vld [vmem:[%s309 + $0x85] sm:$0xff]
      %v2754 = vld [vmem:[%s309 + $0x8d] sm:$0xff]
      %v2755 = vld [vmem:[%s309 + $0x95] sm:$0xff]
      %v2756 = vld [vmem:[%s309 + $0x9d] sm:$0xff]
      %v2757 = vld [vmem:[%s309 + $0xa5] sm:$0xff]
      %v2758 = vld [vmem:[%s309 + $0xad] sm:$0xff]
      %v2759 = vld [vmem:[%s309 + $0xb5] sm:$0xff]
      %v2760 = vld [vmem:[%s309 + $0xbd] sm:$0xff]
      %v2761 = vld [vmem:[%s309 + $0xc5] sm:$0xff]
      %v2762 = vld [vmem:[%s309 + $0xcd] sm:$0xff]
      %v2763 = vld [vmem:[%s309 + $0xd5] sm:$0xff]
      %v2764 = vld [vmem:[%s309 + $0xdd] sm:$0xff]
      %v2765 = vld [vmem:[%s309 + $0xe5] sm:$0xff]
      %v2766 = vld [vmem:[%s309 + $0xed] sm:$0xff]
      %v2767 = vld [vmem:[%s309 + $0xf5] sm:$0xff]
      %v2768 = vld [vmem:[%s309 + $0xfd] sm:$0xff]
      %v2769 = vld [vmem:[%s309 + $0x105] sm:$0xff]
      %v2770 = vld [vmem:[%s309 + $0x10d] sm:$0xff]
      %v2771 = vld [vmem:[%s309 + $0x115] sm:$0xff]
      %v2772 = vld [vmem:[%s309 + $0x11d] sm:$0xff]
      %v2773 = vld [vmem:[%s309 + $0x125] sm:$0xff]
      %v2774 = vld [vmem:[%s309 + $0x12d] sm:$0xff]
      %v2775 = vld [vmem:[%s309 + $0x135] sm:$0xff]
      %v2776 = vld [vmem:[%s309 + $0x13d] sm:$0xff]
      %v2777 = vpack.c.bf16 %v2742, %v2741
      %v2778 = vpack.c.bf16 %v2744, %v2743
      %v2779 = vpack.c.bf16 %v2746, %v2745
      %v2780 = vpack.c.bf16 %v2748, %v2747
      %v2781 = vpack.c.bf16 %v2750, %v2749
      %v2782 = vpack.c.bf16 %v2752, %v2751
      %v2783 = vpack.c.bf16 %v2754, %v2753
      %v2784 = vpack.c.bf16 %v2756, %v2755
      %v2785 = vpack.c.bf16 %v2758, %v2757
      %v2786 = vpack.c.bf16 %v2760, %v2759
      %v2787 = vpack.c.bf16 %v2762, %v2761
      %v2788 = vpack.c.bf16 %v2764, %v2763
      %v2789 = vpack.c.bf16 %v2766, %v2765
      %v2790 = vpack.c.bf16 %v2768, %v2767
      %v2791 = vpack.c.bf16 %v2770, %v2769
      %v2792 = vpack.c.bf16 %v2772, %v2771
      %v2793 = vpack.c.bf16 %v2774, %v2773
      %v2794 = vpack.c.bf16 %v2776, %v2775
      %s2795 = scalar_lea.vmem %s313, 224
      %v2796 = vld [vmem:[%s2795] sm:$0xf]
      %v2797 = vld [vmem:[%s2795 + $0x4] sm:$0xf]
      %v2798 = vld [vmem:[%s2795 + $0x8] sm:$0xf]
      %v2799 = vld [vmem:[%s2795 + $0xc] sm:$0xf]
      %v2800 = vld [vmem:[%s2795 + $0x10] sm:$0xf]
      %v2801 = vld [vmem:[%s2795 + $0x14] sm:$0xf]
      %v2802 = vld [vmem:[%s2795 + $0x18] sm:$0xf]
      %v2803 = vld [vmem:[%s2795 + $0x1c] sm:$0xf]
      %v2812 = vunpack.c.l.b16 %v2796
      %v2813 = vunpack.c.l.b16 %v2797
      %v2814 = vunpack.c.l.b16 %v2798
      %v2815 = vunpack.c.l.b16 %v2799
      %v2816 = vunpack.c.l.b16 %v2800
      %v2817 = vunpack.c.l.b16 %v2801
      %v2818 = vunpack.c.l.b16 %v2802
      %v2819 = vunpack.c.l.b16 %v2803
      %v2820 = vpack.c.b16 %v2813, %v2812
      %v2821 = vpack.c.b16 %v2815, %v2814
      %v2822 = vpack.c.b16 %v2817, %v2816
      %v2823 = vpack.c.b16 %v2819, %v2818
      %v2829 = vsel %vm484, %v2777, 0
      %v2832 = vsel %vm484, %v2778, 0
      %v2835 = vsel %vm484, %v2779, 0
      %v2838 = vsel %vm484, %v2780, 0
      %v2841 = vsel %vm484, %v2781, 0
      %v2844 = vsel %vm484, %v2782, 0
      %v2847 = vsel %vm484, %v2783, 0
      %v2850 = vsel %vm484, %v2784, 0
      %v2853 = vsel %vm484, %v2785, 0
      %v2856 = vsel %vm484, %v2786, 0
      %v2859 = vsel %vm484, %v2787, 0
      %v2862 = vsel %vm484, %v2788, 0
      %v2865 = vsel %vm484, %v2789, 0
      %v2868 = vsel %vm484, %v2790, 0
      %v2871 = vsel %vm484, %v2791, 0
      %v2874 = vsel %vm484, %v2792, 0
      %v2877 = vsel %vm484, %v2793, 0
      %v2880 = vsel %vm484, %v2794, 0
      %2882 = vmatprep.subr.bf16.mxu0 0
      %2883 = vmatpush1.bf16.msra.mxu0 %v2820
      %2884 = vmatprep.subr.bf16.mxu0 0
      %2885 = vmatpush1.bf16.msra.mxu0 %v2821
      %2886 = vmatprep.subr.bf16.mxu0 0
      %2887 = vmatpush1.bf16.msra.mxu0 %v2822
      %2888 = vmatprep.subr.bf16.mxu0 0
      %2889 = vmatpush1.bf16.msra.mxu0 %v2823
      %2890 = vmatprep.subr.bf16.mxu0 0
      %2891 = vmatpush1.bf16.msra.mxu0 0
      %2892 = vmatprep.subr.bf16.mxu0 0
      %2893 = vmatpush1.bf16.msra.mxu0 0
      %2894 = vmatprep.subr.bf16.mxu0 0
      %2895 = vmatpush1.bf16.msra.mxu0 0
      %2896 = vmatprep.subr.bf16.mxu0 0
      %2897 = vmatpush1.bf16.msra.mxu0 0
      %2898 = vmatprep.subr.bf16.mxu0 0
      %2899 = vmatpush1.bf16.msra.mxu0 0
      %2900 = vmatprep.subr.bf16.mxu0 0
      %2901 = vmatpush1.bf16.msra.mxu0 0
      %2902 = vmatprep.subr.bf16.mxu0 0
      %2903 = vmatpush1.bf16.msra.mxu0 0
      %2904 = vmatprep.subr.bf16.mxu0 0
      %2905 = vmatpush1.bf16.msra.mxu0 0
      %2906 = vmatprep.subr.bf16.mxu0 0
      %2907 = vmatpush1.bf16.msra.mxu0 0
      %2908 = vmatprep.subr.bf16.mxu0 0
      %2909 = vmatpush1.bf16.msra.mxu0 0
      %2910 = vmatprep.subr.bf16.mxu0 0
      %2911 = vmatpush1.bf16.msra.mxu0 0
      %2912 = vmatprep.subr.bf16.mxu0 0
      %2913 = vmatpush1.bf16.msra.mxu0 0
      %2914 = vmatprep.mubr.bf16.mxu0 0
      %2915 = vmatmul.mubr.bf16.gmra.mrb[0].mxu0 %v2829
      %v2916 = vpop.f32.mrb[0].mxu0
      %v2917 = vadd.f32 0.0, %v2916
      %v2918 = vpop.f32.mrb[0].mxu0
      %v2919 = vpop.f32.mrb[0].mxu0
      %v2920 = vadd.f32 0.0, %v2919
      %v2921 = vpop.f32.mrb[0].mxu0
      %2922 = vmatprep.mubr.bf16.mxu0 0
      %2923 = vmatmul.mubr.bf16.gmra.mrb[0].mxu0 %v2832
      %v2924 = vpop.f32.mrb[0].mxu0
      %v2925 = vadd.f32 0.0, %v2924
      %v2926 = vpop.f32.mrb[0].mxu0
      %v2927 = vpop.f32.mrb[0].mxu0
      %v2928 = vadd.f32 0.0, %v2927
      %v2929 = vpop.f32.mrb[0].mxu0
      %2930 = vmatprep.mubr.bf16.mxu0 0
      %2931 = vmatmul.mubr.bf16.gmra.mrb[0].mxu0 %v2835
      %v2932 = vpop.f32.mrb[0].mxu0
      %v2933 = vadd.f32 0.0, %v2932
      %v2934 = vpop.f32.mrb[0].mxu0
      %v2935 = vpop.f32.mrb[0].mxu0
      %v2936 = vadd.f32 0.0, %v2935
      %v2937 = vpop.f32.mrb[0].mxu0
      %2938 = vmatprep.mubr.bf16.mxu0 0
      %2939 = vmatmul.mubr.bf16.gmra.mrb[0].mxu0 %v2838
      %v2940 = vpop.f32.mrb[0].mxu0
      %v2941 = vadd.f32 0.0, %v2940
      %v2942 = vpop.f32.mrb[0].mxu0
      %v2943 = vpop.f32.mrb[0].mxu0
      %v2944 = vadd.f32 0.0, %v2943
      %v2945 = vpop.f32.mrb[0].mxu0
      %2946 = vmatprep.mubr.bf16.mxu0 0
      %2947 = vmatmul.mubr.bf16.gmra.mrb[0].mxu0 %v2841
      %v2948 = vpop.f32.mrb[0].mxu0
      %v2949 = vadd.f32 0.0, %v2948
      %v2950 = vpop.f32.mrb[0].mxu0
      %v2951 = vpop.f32.mrb[0].mxu0
      %v2952 = vadd.f32 0.0, %v2951
      %v2953 = vpop.f32.mrb[0].mxu0
      %2954 = vmatprep.mubr.bf16.mxu0 0
      %2955 = vmatmul.mubr.bf16.gmra.mrb[0].mxu0 %v2844
      %v2956 = vpop.f32.mrb[0].mxu0
      %v2957 = vadd.f32 0.0, %v2956
      %v2958 = vpop.f32.mrb[0].mxu0
      %v2959 = vpop.f32.mrb[0].mxu0
      %v2960 = vadd.f32 0.0, %v2959
      %v2961 = vpop.f32.mrb[0].mxu0
      %2962 = vmatprep.mubr.bf16.mxu0 0
      %2963 = vmatmul.mubr.bf16.gmra.mrb[0].mxu0 %v2847
      %v2964 = vpop.f32.mrb[0].mxu0
      %v2965 = vadd.f32 0.0, %v2964
      %v2966 = vpop.f32.mrb[0].mxu0
      %v2967 = vpop.f32.mrb[0].mxu0
      %v2968 = vadd.f32 0.0, %v2967
      %v2969 = vpop.f32.mrb[0].mxu0
      %2970 = vmatprep.mubr.bf16.mxu0 0
      %2971 = vmatmul.mubr.bf16.gmra.mrb[0].mxu0 %v2850
      %v2972 = vpop.f32.mrb[0].mxu0
      %v2973 = vadd.f32 0.0, %v2972
      %v2974 = vpop.f32.mrb[0].mxu0
      %v2975 = vpop.f32.mrb[0].mxu0
      %v2976 = vadd.f32 0.0, %v2975
      %v2977 = vpop.f32.mrb[0].mxu0
      %2978 = vmatprep.mubr.bf16.mxu0 0
      %2979 = vmatmul.mubr.bf16.gmra.mrb[0].mxu0 %v2853
      %v2980 = vpop.f32.mrb[0].mxu0
      %v2981 = vadd.f32 0.0, %v2980
      %v2982 = vpop.f32.mrb[0].mxu0
      %v2983 = vpop.f32.mrb[0].mxu0
      %v2984 = vadd.f32 0.0, %v2983
      %v2985 = vpop.f32.mrb[0].mxu0
      %2986 = vmatprep.mubr.bf16.mxu0 0
      %2987 = vmatmul.mubr.bf16.gmra.mrb[0].mxu0 %v2856
      %v2988 = vpop.f32.mrb[0].mxu0
      %v2989 = vadd.f32 0.0, %v2988
      %v2990 = vpop.f32.mrb[0].mxu0
      %v2991 = vpop.f32.mrb[0].mxu0
      %v2992 = vadd.f32 0.0, %v2991
      %v2993 = vpop.f32.mrb[0].mxu0
      %2994 = vmatprep.mubr.bf16.mxu0 0
      %2995 = vmatmul.mubr.bf16.gmra.mrb[0].mxu0 %v2859
      %v2996 = vpop.f32.mrb[0].mxu0
      %v2997 = vadd.f32 0.0, %v2996
      %v2998 = vpop.f32.mrb[0].mxu0
      %v2999 = vpop.f32.mrb[0].mxu0
      %v3000 = vadd.f32 0.0, %v2999
      %v3001 = vpop.f32.mrb[0].mxu0
      %3002 = vmatprep.mubr.bf16.mxu0 0
      %3003 = vmatmul.mubr.bf16.gmra.mrb[0].mxu0 %v2862
      %v3004 = vpop.f32.mrb[0].mxu0
      %v3005 = vadd.f32 0.0, %v3004
      %v3006 = vpop.f32.mrb[0].mxu0
      %v3007 = vpop.f32.mrb[0].mxu0
      %v3008 = vadd.f32 0.0, %v3007
      %v3009 = vpop.f32.mrb[0].mxu0
      %3010 = vmatprep.mubr.bf16.mxu0 0
      %3011 = vmatmul.mubr.bf16.gmra.mrb[0].mxu0 %v2865
      %v3012 = vpop.f32.mrb[0].mxu0
      %v3013 = vadd.f32 0.0, %v3012
      %v3014 = vpop.f32.mrb[0].mxu0
      %v3015 = vpop.f32.mrb[0].mxu0
      %v3016 = vadd.f32 0.0, %v3015
      %v3017 = vpop.f32.mrb[0].mxu0
      %3018 = vmatprep.mubr.bf16.mxu0 0
      %3019 = vmatmul.mubr.bf16.gmra.mrb[0].mxu0 %v2868
      %v3020 = vpop.f32.mrb[0].mxu0
      %v3021 = vadd.f32 0.0, %v3020
      %v3022 = vpop.f32.mrb[0].mxu0
      %v3023 = vpop.f32.mrb[0].mxu0
      %v3024 = vadd.f32 0.0, %v3023
      %v3025 = vpop.f32.mrb[0].mxu0
      %3026 = vmatprep.mubr.bf16.mxu0 0
      %3027 = vmatmul.mubr.bf16.gmra.mrb[0].mxu0 %v2871
      %v3028 = vpop.f32.mrb[0].mxu0
      %v3029 = vadd.f32 0.0, %v3028
      %v3030 = vpop.f32.mrb[0].mxu0
      %v3031 = vpop.f32.mrb[0].mxu0
      %v3032 = vadd.f32 0.0, %v3031
      %v3033 = vpop.f32.mrb[0].mxu0
      %3034 = vmatprep.mubr.bf16.mxu0 0
      %3035 = vmatmul.mubr.bf16.gmra.mrb[0].mxu0 %v2874
      %v3036 = vpop.f32.mrb[0].mxu0
      %v3037 = vadd.f32 0.0, %v3036
      %v3038 = vpop.f32.mrb[0].mxu0
      %v3039 = vpop.f32.mrb[0].mxu0
      %v3040 = vadd.f32 0.0, %v3039
      %v3041 = vpop.f32.mrb[0].mxu0
      %3042 = vmatprep.mubr.bf16.mxu0 0
      %3043 = vmatmul.mubr.bf16.gmra.mrb[0].mxu0 %v2877
      %v3044 = vpop.f32.mrb[0].mxu0
      %v3045 = vadd.f32 0.0, %v3044
      %v3046 = vpop.f32.mrb[0].mxu0
      %v3047 = vpop.f32.mrb[0].mxu0
      %v3048 = vadd.f32 0.0, %v3047
      %v3049 = vpop.f32.mrb[0].mxu0
      %3050 = vmatprep.mubr.bf16.mxu0 0
      %3051 = vmatmul.mubr.bf16.gmra.mrb[0].mxu0 %v2880
      %v3052 = vpop.f32.mrb[0].mxu0
      %v3053 = vadd.f32 0.0, %v3052
      %v3054 = vpop.f32.mrb[0].mxu0
      %v3055 = vpop.f32.mrb[0].mxu0
      %v3056 = vadd.f32 0.0, %v3055
      %v3057 = vpop.f32.mrb[0].mxu0
      %3058 = vdwg.mxu0
      %v3059 = vadd.f32 %v2705, %v2917
      %v3060 = vadd.f32 %v2706, %v2920
      %v3061 = vadd.f32 %v2707, %v2925
      %v3062 = vadd.f32 %v2708, %v2928
      %v3063 = vadd.f32 %v2709, %v2933
      %v3064 = vadd.f32 %v2710, %v2936
      %v3065 = vadd.f32 %v2711, %v2941
      %v3066 = vadd.f32 %v2712, %v2944
      %v3067 = vadd.f32 %v2713, %v2949
      %v3068 = vadd.f32 %v2714, %v2952
      %v3069 = vadd.f32 %v2715, %v2957
      %v3070 = vadd.f32 %v2716, %v2960
      %v3071 = vadd.f32 %v2717, %v2965
      %v3072 = vadd.f32 %v2718, %v2968
      %v3073 = vadd.f32 %v2719, %v2973
      %v3074 = vadd.f32 %v2720, %v2976
      %v3075 = vadd.f32 %v2721, %v2981
      %v3076 = vadd.f32 %v2722, %v2984
      %v3077 = vadd.f32 %v2723, %v2989
      %v3078 = vadd.f32 %v2724, %v2992
      %v3079 = vadd.f32 %v2725, %v2997
      %v3080 = vadd.f32 %v2726, %v3000
      %v3081 = vadd.f32 %v2727, %v3005
      %v3082 = vadd.f32 %v2728, %v3008
      %v3083 = vadd.f32 %v2729, %v3013
      %v3084 = vadd.f32 %v2730, %v3016
      %v3085 = vadd.f32 %v2731, %v3021
      %v3086 = vadd.f32 %v2732, %v3024
      %v3087 = vadd.f32 %v2733, %v3029
      %v3088 = vadd.f32 %v2734, %v3032
      %v3089 = vadd.f32 %v2735, %v3037
      %v3090 = vadd.f32 %v2736, %v3040
      %v3091 = vadd.f32 %v2737, %v3045
      %v3092 = vadd.f32 %v2738, %v3048
      %v3093 = vadd.f32 %v2739, %v3053
      %v3094 = vadd.f32 %v2740, %v3056
      %v3095 = vld [vmem:[%s309 + $0x26] sm:$0xff]
      %v3096 = vld [vmem:[%s309 + $0x2e] sm:$0xff]
      %v3097 = vld [vmem:[%s309 + $0x36] sm:$0xff]
      %v3098 = vld [vmem:[%s309 + $0x3e] sm:$0xff]
      %v3099 = vld [vmem:[%s309 + $0x46] sm:$0xff]
      %v3100 = vld [vmem:[%s309 + $0x4e] sm:$0xff]
      %v3101 = vld [vmem:[%s309 + $0x56] sm:$0xff]
      %v3102 = vld [vmem:[%s309 + $0x5e] sm:$0xff]
      %v3103 = vld [vmem:[%s309 + $0x66] sm:$0xff]
      %v3104 = vld [vmem:[%s309 + $0x6e] sm:$0xff]
      %v3105 = vld [vmem:[%s309 + $0x76] sm:$0xff]
      %v3106 = vld [vmem:[%s309 + $0x7e] sm:$0xff]
      %v3107 = vld [vmem:[%s309 + $0x86] sm:$0xff]
      %v3108 = vld [vmem:[%s309 + $0x8e] sm:$0xff]
      %v3109 = vld [vmem:[%s309 + $0x96] sm:$0xff]
      %v3110 = vld [vmem:[%s309 + $0x9e] sm:$0xff]
      %v3111 = vld [vmem:[%s309 + $0xa6] sm:$0xff]
      %v3112 = vld [vmem:[%s309 + $0xae] sm:$0xff]
      %v3113 = vld [vmem:[%s309 + $0xb6] sm:$0xff]
      %v3114 = vld [vmem:[%s309 + $0xbe] sm:$0xff]
      %v3115 = vld [vmem:[%s309 + $0xc6] sm:$0xff]
      %v3116 = vld [vmem:[%s309 + $0xce] sm:$0xff]
      %v3117 = vld [vmem:[%s309 + $0xd6] sm:$0xff]
      %v3118 = vld [vmem:[%s309 + $0xde] sm:$0xff]
      %v3119 = vld [vmem:[%s309 + $0xe6] sm:$0xff]
      %v3120 = vld [vmem:[%s309 + $0xee] sm:$0xff]
      %v3121 = vld [vmem:[%s309 + $0xf6] sm:$0xff]
      %v3122 = vld [vmem:[%s309 + $0xfe] sm:$0xff]
      %v3123 = vld [vmem:[%s309 + $0x106] sm:$0xff]
      %v3124 = vld [vmem:[%s309 + $0x10e] sm:$0xff]
      %v3125 = vld [vmem:[%s309 + $0x116] sm:$0xff]
      %v3126 = vld [vmem:[%s309 + $0x11e] sm:$0xff]
      %v3127 = vld [vmem:[%s309 + $0x126] sm:$0xff]
      %v3128 = vld [vmem:[%s309 + $0x12e] sm:$0xff]
      %v3129 = vld [vmem:[%s309 + $0x136] sm:$0xff]
      %v3130 = vld [vmem:[%s309 + $0x13e] sm:$0xff]
      %v3131 = vpack.c.bf16 %v3096, %v3095
      %v3132 = vpack.c.bf16 %v3098, %v3097
      %v3133 = vpack.c.bf16 %v3100, %v3099
      %v3134 = vpack.c.bf16 %v3102, %v3101
      %v3135 = vpack.c.bf16 %v3104, %v3103
      %v3136 = vpack.c.bf16 %v3106, %v3105
      %v3137 = vpack.c.bf16 %v3108, %v3107
      %v3138 = vpack.c.bf16 %v3110, %v3109
      %v3139 = vpack.c.bf16 %v3112, %v3111
      %v3140 = vpack.c.bf16 %v3114, %v3113
      %v3141 = vpack.c.bf16 %v3116, %v3115
      %v3142 = vpack.c.bf16 %v3118, %v3117
      %v3143 = vpack.c.bf16 %v3120, %v3119
      %v3144 = vpack.c.bf16 %v3122, %v3121
      %v3145 = vpack.c.bf16 %v3124, %v3123
      %v3146 = vpack.c.bf16 %v3126, %v3125
      %v3147 = vpack.c.bf16 %v3128, %v3127
      %v3148 = vpack.c.bf16 %v3130, %v3129
      %s3149 = scalar_lea.vmem %s313, 256
      %v3150 = vld [vmem:[%s3149] sm:$0xf]
      %v3151 = vld [vmem:[%s3149 + $0x4] sm:$0xf]
      %v3152 = vld [vmem:[%s3149 + $0x8] sm:$0xf]
      %v3153 = vld [vmem:[%s3149 + $0xc] sm:$0xf]
      %v3154 = vld [vmem:[%s3149 + $0x10] sm:$0xf]
      %v3155 = vld [vmem:[%s3149 + $0x14] sm:$0xf]
      %v3156 = vld [vmem:[%s3149 + $0x18] sm:$0xf]
      %v3157 = vld [vmem:[%s3149 + $0x1c] sm:$0xf]
      %v3166 = vunpack.c.l.b16 %v3150
      %v3167 = vunpack.c.l.b16 %v3151
      %v3168 = vunpack.c.l.b16 %v3152
      %v3169 = vunpack.c.l.b16 %v3153
      %v3170 = vunpack.c.l.b16 %v3154
      %v3171 = vunpack.c.l.b16 %v3155
      %v3172 = vunpack.c.l.b16 %v3156
      %v3173 = vunpack.c.l.b16 %v3157
      %v3174 = vpack.c.b16 %v3167, %v3166
      %v3175 = vpack.c.b16 %v3169, %v3168
      %v3176 = vpack.c.b16 %v3171, %v3170
      %v3177 = vpack.c.b16 %v3173, %v3172
      %v3183 = vsel %vm484, %v3131, 0
      %v3186 = vsel %vm484, %v3132, 0
      %v3189 = vsel %vm484, %v3133, 0
      %v3192 = vsel %vm484, %v3134, 0
      %v3195 = vsel %vm484, %v3135, 0
      %v3198 = vsel %vm484, %v3136, 0
      %v3201 = vsel %vm484, %v3137, 0
      %v3204 = vsel %vm484, %v3138, 0
      %v3207 = vsel %vm484, %v3139, 0
      %v3210 = vsel %vm484, %v3140, 0
      %v3213 = vsel %vm484, %v3141, 0
      %v3216 = vsel %vm484, %v3142, 0
      %v3219 = vsel %vm484, %v3143, 0
      %v3222 = vsel %vm484, %v3144, 0
      %v3225 = vsel %vm484, %v3145, 0
      %v3228 = vsel %vm484, %v3146, 0
      %v3231 = vsel %vm484, %v3147, 0
      %v3234 = vsel %vm484, %v3148, 0
      %3236 = vmatprep.subr.bf16.mxu0 0
      %3237 = vmatpush1.bf16.msra.mxu0 %v3174
      %3238 = vmatprep.subr.bf16.mxu0 0
      %3239 = vmatpush1.bf16.msra.mxu0 %v3175
      %3240 = vmatprep.subr.bf16.mxu0 0
      %3241 = vmatpush1.bf16.msra.mxu0 %v3176
      %3242 = vmatprep.subr.bf16.mxu0 0
      %3243 = vmatpush1.bf16.msra.mxu0 %v3177
      %3244 = vmatprep.subr.bf16.mxu0 0
      %3245 = vmatpush1.bf16.msra.mxu0 0
      %3246 = vmatprep.subr.bf16.mxu0 0
      %3247 = vmatpush1.bf16.msra.mxu0 0
      %3248 = vmatprep.subr.bf16.mxu0 0
      %3249 = vmatpush1.bf16.msra.mxu0 0
      %3250 = vmatprep.subr.bf16.mxu0 0
      %3251 = vmatpush1.bf16.msra.mxu0 0
      %3252 = vmatprep.subr.bf16.mxu0 0
      %3253 = vmatpush1.bf16.msra.mxu0 0
      %3254 = vmatprep.subr.bf16.mxu0 0
      %3255 = vmatpush1.bf16.msra.mxu0 0
      %3256 = vmatprep.subr.bf16.mxu0 0
      %3257 = vmatpush1.bf16.msra.mxu0 0
      %3258 = vmatprep.subr.bf16.mxu0 0
      %3259 = vmatpush1.bf16.msra.mxu0 0
      %3260 = vmatprep.subr.bf16.mxu0 0
      %3261 = vmatpush1.bf16.msra.mxu0 0
      %3262 = vmatprep.subr.bf16.mxu0 0
      %3263 = vmatpush1.bf16.msra.mxu0 0
      %3264 = vmatprep.subr.bf16.mxu0 0
      %3265 = vmatpush1.bf16.msra.mxu0 0
      %3266 = vmatprep.subr.bf16.mxu0 0
      %3267 = vmatpush1.bf16.msra.mxu0 0
      %3268 = vmatprep.mubr.bf16.mxu0 0
      %3269 = vmatmul.mubr.bf16.gmra.mrb[0].mxu0 %v3183
      %v3270 = vpop.f32.mrb[0].mxu0
      %v3271 = vadd.f32 0.0, %v3270
      %v3272 = vpop.f32.mrb[0].mxu0
      %v3273 = vpop.f32.mrb[0].mxu0
      %v3274 = vadd.f32 0.0, %v3273
      %v3275 = vpop.f32.mrb[0].mxu0
      %3276 = vmatprep.mubr.bf16.mxu0 0
      %3277 = vmatmul.mubr.bf16.gmra.mrb[0].mxu0 %v3186
      %v3278 = vpop.f32.mrb[0].mxu0
      %v3279 = vadd.f32 0.0, %v3278
      %v3280 = vpop.f32.mrb[0].mxu0
      %v3281 = vpop.f32.mrb[0].mxu0
      %v3282 = vadd.f32 0.0, %v3281
      %v3283 = vpop.f32.mrb[0].mxu0
      %3284 = vmatprep.mubr.bf16.mxu0 0
      %3285 = vmatmul.mubr.bf16.gmra.mrb[0].mxu0 %v3189
      %v3286 = vpop.f32.mrb[0].mxu0
      %v3287 = vadd.f32 0.0, %v3286
      %v3288 = vpop.f32.mrb[0].mxu0
      %v3289 = vpop.f32.mrb[0].mxu0
      %v3290 = vadd.f32 0.0, %v3289
      %v3291 = vpop.f32.mrb[0].mxu0
      %3292 = vmatprep.mubr.bf16.mxu0 0
      %3293 = vmatmul.mubr.bf16.gmra.mrb[0].mxu0 %v3192
      %v3294 = vpop.f32.mrb[0].mxu0
      %v3295 = vadd.f32 0.0, %v3294
      %v3296 = vpop.f32.mrb[0].mxu0
      %v3297 = vpop.f32.mrb[0].mxu0
      %v3298 = vadd.f32 0.0, %v3297
      %v3299 = vpop.f32.mrb[0].mxu0
      %3300 = vmatprep.mubr.bf16.mxu0 0
      %3301 = vmatmul.mubr.bf16.gmra.mrb[0].mxu0 %v3195
      %v3302 = vpop.f32.mrb[0].mxu0
      %v3303 = vadd.f32 0.0, %v3302
      %v3304 = vpop.f32.mrb[0].mxu0
      %v3305 = vpop.f32.mrb[0].mxu0
      %v3306 = vadd.f32 0.0, %v3305
      %v3307 = vpop.f32.mrb[0].mxu0
      %3308 = vmatprep.mubr.bf16.mxu0 0
      %3309 = vmatmul.mubr.bf16.gmra.mrb[0].mxu0 %v3198
      %v3310 = vpop.f32.mrb[0].mxu0
      %v3311 = vadd.f32 0.0, %v3310
      %v3312 = vpop.f32.mrb[0].mxu0
      %v3313 = vpop.f32.mrb[0].mxu0
      %v3314 = vadd.f32 0.0, %v3313
      %v3315 = vpop.f32.mrb[0].mxu0
      %3316 = vmatprep.mubr.bf16.mxu0 0
      %3317 = vmatmul.mubr.bf16.gmra.mrb[0].mxu0 %v3201
      %v3318 = vpop.f32.mrb[0].mxu0
      %v3319 = vadd.f32 0.0, %v3318
      %v3320 = vpop.f32.mrb[0].mxu0
      %v3321 = vpop.f32.mrb[0].mxu0
      %v3322 = vadd.f32 0.0, %v3321
      %v3323 = vpop.f32.mrb[0].mxu0
      %3324 = vmatprep.mubr.bf16.mxu0 0
      %3325 = vmatmul.mubr.bf16.gmra.mrb[0].mxu0 %v3204
      %v3326 = vpop.f32.mrb[0].mxu0
      %v3327 = vadd.f32 0.0, %v3326
      %v3328 = vpop.f32.mrb[0].mxu0
      %v3329 = vpop.f32.mrb[0].mxu0
      %v3330 = vadd.f32 0.0, %v3329
      %v3331 = vpop.f32.mrb[0].mxu0
      %3332 = vmatprep.mubr.bf16.mxu0 0
      %3333 = vmatmul.mubr.bf16.gmra.mrb[0].mxu0 %v3207
      %v3334 = vpop.f32.mrb[0].mxu0
      %v3335 = vadd.f32 0.0, %v3334
      %v3336 = vpop.f32.mrb[0].mxu0
      %v3337 = vpop.f32.mrb[0].mxu0
      %v3338 = vadd.f32 0.0, %v3337
      %v3339 = vpop.f32.mrb[0].mxu0
      %3340 = vmatprep.mubr.bf16.mxu0 0
      %3341 = vmatmul.mubr.bf16.gmra.mrb[0].mxu0 %v3210
      %v3342 = vpop.f32.mrb[0].mxu0
      %v3343 = vadd.f32 0.0, %v3342
      %v3344 = vpop.f32.mrb[0].mxu0
      %v3345 = vpop.f32.mrb[0].mxu0
      %v3346 = vadd.f32 0.0, %v3345
      %v3347 = vpop.f32.mrb[0].mxu0
      %3348 = vmatprep.mubr.bf16.mxu0 0
      %3349 = vmatmul.mubr.bf16.gmra.mrb[0].mxu0 %v3213
      %v3350 = vpop.f32.mrb[0].mxu0
      %v3351 = vadd.f32 0.0, %v3350
      %v3352 = vpop.f32.mrb[0].mxu0
      %v3353 = vpop.f32.mrb[0].mxu0
      %v3354 = vadd.f32 0.0, %v3353
      %v3355 = vpop.f32.mrb[0].mxu0
      %3356 = vmatprep.mubr.bf16.mxu0 0
      %3357 = vmatmul.mubr.bf16.gmra.mrb[0].mxu0 %v3216
      %v3358 = vpop.f32.mrb[0].mxu0
      %v3359 = vadd.f32 0.0, %v3358
      %v3360 = vpop.f32.mrb[0].mxu0
      %v3361 = vpop.f32.mrb[0].mxu0
      %v3362 = vadd.f32 0.0, %v3361
      %v3363 = vpop.f32.mrb[0].mxu0
      %3364 = vmatprep.mubr.bf16.mxu0 0
      %3365 = vmatmul.mubr.bf16.gmra.mrb[0].mxu0 %v3219
      %v3366 = vpop.f32.mrb[0].mxu0
      %v3367 = vadd.f32 0.0, %v3366
      %v3368 = vpop.f32.mrb[0].mxu0
      %v3369 = vpop.f32.mrb[0].mxu0
      %v3370 = vadd.f32 0.0, %v3369
      %v3371 = vpop.f32.mrb[0].mxu0
      %3372 = vmatprep.mubr.bf16.mxu0 0
      %3373 = vmatmul.mubr.bf16.gmra.mrb[0].mxu0 %v3222
      %v3374 = vpop.f32.mrb[0].mxu0
      %v3375 = vadd.f32 0.0, %v3374
      %v3376 = vpop.f32.mrb[0].mxu0
      %v3377 = vpop.f32.mrb[0].mxu0
      %v3378 = vadd.f32 0.0, %v3377
      %v3379 = vpop.f32.mrb[0].mxu0
      %3380 = vmatprep.mubr.bf16.mxu0 0
      %3381 = vmatmul.mubr.bf16.gmra.mrb[0].mxu0 %v3225
      %v3382 = vpop.f32.mrb[0].mxu0
      %v3383 = vadd.f32 0.0, %v3382
      %v3384 = vpop.f32.mrb[0].mxu0
      %v3385 = vpop.f32.mrb[0].mxu0
      %v3386 = vadd.f32 0.0, %v3385
      %v3387 = vpop.f32.mrb[0].mxu0
      %3388 = vmatprep.mubr.bf16.mxu0 0
      %3389 = vmatmul.mubr.bf16.gmra.mrb[0].mxu0 %v3228
      %v3390 = vpop.f32.mrb[0].mxu0
      %v3391 = vadd.f32 0.0, %v3390
      %v3392 = vpop.f32.mrb[0].mxu0
      %v3393 = vpop.f32.mrb[0].mxu0
      %v3394 = vadd.f32 0.0, %v3393
      %v3395 = vpop.f32.mrb[0].mxu0
      %3396 = vmatprep.mubr.bf16.mxu0 0
      %3397 = vmatmul.mubr.bf16.gmra.mrb[0].mxu0 %v3231
      %v3398 = vpop.f32.mrb[0].mxu0
      %v3399 = vadd.f32 0.0, %v3398
      %v3400 = vpop.f32.mrb[0].mxu0
      %v3401 = vpop.f32.mrb[0].mxu0
      %v3402 = vadd.f32 0.0, %v3401
      %v3403 = vpop.f32.mrb[0].mxu0
      %3404 = vmatprep.mubr.bf16.mxu0 0
      %3405 = vmatmul.mubr.bf16.gmra.mrb[0].mxu0 %v3234
      %v3406 = vpop.f32.mrb[0].mxu0
      %v3407 = vadd.f32 0.0, %v3406
      %v3408 = vpop.f32.mrb[0].mxu0
      %v3409 = vpop.f32.mrb[0].mxu0
      %v3410 = vadd.f32 0.0, %v3409
      %v3411 = vpop.f32.mrb[0].mxu0
      %3412 = vdwg.mxu0
      %v3413 = vadd.f32 %v3059, %v3271
      %v3414 = vadd.f32 %v3060, %v3274
      %v3415 = vadd.f32 %v3061, %v3279
      %v3416 = vadd.f32 %v3062, %v3282
      %v3417 = vadd.f32 %v3063, %v3287
      %v3418 = vadd.f32 %v3064, %v3290
      %v3419 = vadd.f32 %v3065, %v3295
      %v3420 = vadd.f32 %v3066, %v3298
      %v3421 = vadd.f32 %v3067, %v3303
      %v3422 = vadd.f32 %v3068, %v3306
      %v3423 = vadd.f32 %v3069, %v3311
      %v3424 = vadd.f32 %v3070, %v3314
      %v3425 = vadd.f32 %v3071, %v3319
      %v3426 = vadd.f32 %v3072, %v3322
      %v3427 = vadd.f32 %v3073, %v3327
      %v3428 = vadd.f32 %v3074, %v3330
      %v3429 = vadd.f32 %v3075, %v3335
      %v3430 = vadd.f32 %v3076, %v3338
      %v3431 = vadd.f32 %v3077, %v3343
      %v3432 = vadd.f32 %v3078, %v3346
      %v3433 = vadd.f32 %v3079, %v3351
      %v3434 = vadd.f32 %v3080, %v3354
      %v3435 = vadd.f32 %v3081, %v3359
      %v3436 = vadd.f32 %v3082, %v3362
      %v3437 = vadd.f32 %v3083, %v3367
      %v3438 = vadd.f32 %v3084, %v3370
      %v3439 = vadd.f32 %v3085, %v3375
      %v3440 = vadd.f32 %v3086, %v3378
      %v3441 = vadd.f32 %v3087, %v3383
      %v3442 = vadd.f32 %v3088, %v3386
      %v3443 = vadd.f32 %v3089, %v3391
      %v3444 = vadd.f32 %v3090, %v3394
      %v3445 = vadd.f32 %v3091, %v3399
      %v3446 = vadd.f32 %v3092, %v3402
      %v3447 = vadd.f32 %v3093, %v3407
      %v3448 = vadd.f32 %v3094, %v3410
      %v3449 = vld [vmem:[%s316] sm:$0x1]
      %v3451 = vlaneseq
      %v3452 = vshrl.u32 %v3451, 7
      %v3453 = vsub.s32 0, %v3452
      %v3454 = vrot.slane %v3449, %v3453
      %v3456 = vmul.f32 %v3413, %v3454
      %v3457 = vmul.f32 %v3414, %v3454
      %v3458 = vmul.f32 %v3415, %v3454
      %v3459 = vmul.f32 %v3416, %v3454
      %v3460 = vmul.f32 %v3417, %v3454
      %v3461 = vmul.f32 %v3418, %v3454
      %v3462 = vmul.f32 %v3419, %v3454
      %v3463 = vmul.f32 %v3420, %v3454
      %v3464 = vmul.f32 %v3421, %v3454
      %v3465 = vmul.f32 %v3422, %v3454
      %v3466 = vmul.f32 %v3423, %v3454
      %v3467 = vmul.f32 %v3424, %v3454
      %v3468 = vmul.f32 %v3425, %v3454
      %v3469 = vmul.f32 %v3426, %v3454
      %v3470 = vmul.f32 %v3427, %v3454
      %v3471 = vmul.f32 %v3428, %v3454
      %v3472 = vmul.f32 %v3429, %v3454
      %v3473 = vmul.f32 %v3430, %v3454
      %v3474 = vmul.f32 %v3431, %v3454
      %v3475 = vmul.f32 %v3432, %v3454
      %v3476 = vmul.f32 %v3433, %v3454
      %v3477 = vmul.f32 %v3434, %v3454
      %v3478 = vmul.f32 %v3435, %v3454
      %v3479 = vmul.f32 %v3436, %v3454
      %v3480 = vmul.f32 %v3437, %v3454
      %v3481 = vmul.f32 %v3438, %v3454
      %v3482 = vmul.f32 %v3439, %v3454
      %v3483 = vmul.f32 %v3440, %v3454
      %v3484 = vmul.f32 %v3441, %v3454
      %v3485 = vmul.f32 %v3442, %v3454
      %v3486 = vmul.f32 %v3443, %v3454
      %v3487 = vmul.f32 %v3444, %v3454
      %v3488 = vmul.f32 %v3445, %v3454
      %v3489 = vmul.f32 %v3446, %v3454
      %v3490 = vmul.f32 %v3447, %v3454
      %v3491 = vmul.f32 %v3448, %v3454
      %v3492 = vld [vmem:[%s319] sm:$0x1]
      %v3494 = vlaneseq
      %v3495 = vshrl.u32 %v3494, 7
      %v3496 = vsub.s32 0, %v3495
      %v3497 = vrot.slane %v3492, %v3496
      %v3499 = vadd.f32 %v3456, %v3497
      %v3500 = vadd.f32 %v3457, %v3497
      %v3501 = vadd.f32 %v3458, %v3497
      %v3502 = vadd.f32 %v3459, %v3497
      %v3503 = vadd.f32 %v3460, %v3497
      %v3504 = vadd.f32 %v3461, %v3497
      %v3505 = vadd.f32 %v3462, %v3497
      %v3506 = vadd.f32 %v3463, %v3497
      %v3507 = vadd.f32 %v3464, %v3497
      %v3508 = vadd.f32 %v3465, %v3497
      %v3509 = vadd.f32 %v3466, %v3497
      %v3510 = vadd.f32 %v3467, %v3497
      %v3511 = vadd.f32 %v3468, %v3497
      %v3512 = vadd.f32 %v3469, %v3497
      %v3513 = vadd.f32 %v3470, %v3497
      %v3514 = vadd.f32 %v3471, %v3497
      %v3515 = vadd.f32 %v3472, %v3497
      %v3516 = vadd.f32 %v3473, %v3497
      %v3517 = vadd.f32 %v3474, %v3497
      %v3518 = vadd.f32 %v3475, %v3497
      %v3519 = vadd.f32 %v3476, %v3497
      %v3520 = vadd.f32 %v3477, %v3497
      %v3521 = vadd.f32 %v3478, %v3497
      %v3522 = vadd.f32 %v3479, %v3497
      %v3523 = vadd.f32 %v3480, %v3497
      %v3524 = vadd.f32 %v3481, %v3497
      %v3525 = vadd.f32 %v3482, %v3497
      %v3526 = vadd.f32 %v3483, %v3497
      %v3527 = vadd.f32 %v3484, %v3497
      %v3528 = vadd.f32 %v3485, %v3497
      %v3529 = vadd.f32 %v3486, %v3497
      %v3530 = vadd.f32 %v3487, %v3497
      %v3531 = vadd.f32 %v3488, %v3497
      %v3532 = vadd.f32 %v3489, %v3497
      %v3533 = vadd.f32 %v3490, %v3497
      %v3534 = vadd.f32 %v3491, %v3497
      %v3535 = vmax.f32 %v3499, 0.0
      %v3536 = vmax.f32 %v3500, 0.0
      %v3537 = vmax.f32 %v3501, 0.0
      %v3538 = vmax.f32 %v3502, 0.0
      %v3539 = vmax.f32 %v3503, 0.0
      %v3540 = vmax.f32 %v3504, 0.0
      %v3541 = vmax.f32 %v3505, 0.0
      %v3542 = vmax.f32 %v3506, 0.0
      %v3543 = vmax.f32 %v3507, 0.0
      %v3544 = vmax.f32 %v3508, 0.0
      %v3545 = vmax.f32 %v3509, 0.0
      %v3546 = vmax.f32 %v3510, 0.0
      %v3547 = vmax.f32 %v3511, 0.0
      %v3548 = vmax.f32 %v3512, 0.0
      %v3549 = vmax.f32 %v3513, 0.0
      %v3550 = vmax.f32 %v3514, 0.0
      %v3551 = vmax.f32 %v3515, 0.0
      %v3552 = vmax.f32 %v3516, 0.0
      %v3553 = vmax.f32 %v3517, 0.0
      %v3554 = vmax.f32 %v3518, 0.0
      %v3555 = vmax.f32 %v3519, 0.0
      %v3556 = vmax.f32 %v3520, 0.0
      %v3557 = vmax.f32 %v3521, 0.0
      %v3558 = vmax.f32 %v3522, 0.0
      %v3559 = vmax.f32 %v3523, 0.0
      %v3560 = vmax.f32 %v3524, 0.0
      %v3561 = vmax.f32 %v3525, 0.0
      %v3562 = vmax.f32 %v3526, 0.0
      %v3563 = vmax.f32 %v3527, 0.0
      %v3564 = vmax.f32 %v3528, 0.0
      %v3565 = vmax.f32 %v3529, 0.0
      %v3566 = vmax.f32 %v3530, 0.0
      %v3567 = vmax.f32 %v3531, 0.0
      %v3568 = vmax.f32 %v3532, 0.0
      %v3569 = vmax.f32 %v3533, 0.0
      %v3570 = vmax.f32 %v3534, 0.0
      %v3571 = vld [vmem:[%s4] sm:$0xff]
      %v3572 = vld [vmem:[%s4 + $0x8] sm:$0xff]
      %v3573 = vld [vmem:[%s4 + $0x10] sm:$0xff]
      %v3574 = vld [vmem:[%s4 + $0x18] sm:$0xff]
      %v3575 = vld [vmem:[%s4 + $0x20] sm:$0xff]
      %v3576 = vld [vmem:[%s4 + $0x28] sm:$0xff]
      %v3577 = vld [vmem:[%s4 + $0x30] sm:$0xff]
      %v3578 = vld [vmem:[%s4 + $0x38] sm:$0xff]
      %v3579 = vld [vmem:[%s4 + $0x40] sm:$0xff]
      %v3580 = vld [vmem:[%s4 + $0x48] sm:$0xff]
      %v3581 = vld [vmem:[%s4 + $0x50] sm:$0xff]
      %v3582 = vld [vmem:[%s4 + $0x58] sm:$0xff]
      %v3583 = vld [vmem:[%s4 + $0x60] sm:$0xff]
      %v3584 = vld [vmem:[%s4 + $0x68] sm:$0xff]
      %v3585 = vld [vmem:[%s4 + $0x70] sm:$0xff]
      %v3586 = vld [vmem:[%s4 + $0x78] sm:$0xff]
      %v3587 = vld [vmem:[%s4 + $0x80] sm:$0xff]
      %v3588 = vld [vmem:[%s4 + $0x88] sm:$0xff]
      %v3589 = vld [vmem:[%s4 + $0x90] sm:$0xff]
      %v3590 = vld [vmem:[%s4 + $0x98] sm:$0xff]
      %v3591 = vld [vmem:[%s4 + $0xa0] sm:$0xff]
      %v3592 = vld [vmem:[%s4 + $0xa8] sm:$0xff]
      %v3593 = vld [vmem:[%s4 + $0xb0] sm:$0xff]
      %v3594 = vld [vmem:[%s4 + $0xb8] sm:$0xff]
      %v3595 = vld [vmem:[%s4 + $0xc0] sm:$0xff]
      %v3596 = vld [vmem:[%s4 + $0xc8] sm:$0xff]
      %v3597 = vld [vmem:[%s4 + $0xd0] sm:$0xff]
      %v3598 = vld [vmem:[%s4 + $0xd8] sm:$0xff]
      %v3599 = vld [vmem:[%s4 + $0xe0] sm:$0xff]
      %v3600 = vld [vmem:[%s4 + $0xe8] sm:$0xff]
      %v3601 = vld [vmem:[%s4 + $0xf0] sm:$0xff]
      %v3602 = vld [vmem:[%s4 + $0xf8] sm:$0xff]
      %v3603 = vld [vmem:[%s4 + $0x100] sm:$0xff]
      %v3604 = vld [vmem:[%s4 + $0x108] sm:$0xff]
      %v3605 = vld [vmem:[%s4 + $0x110] sm:$0xff]
      %v3606 = vld [vmem:[%s4 + $0x118] sm:$0xff]
      %3608 = vset.pattern.permute.xlu0 0
      %3609 = vperm.xlu0 %3608, %v3571
      %v3610 = vpop.permute.xlu0 %3609
      %3613 = vset.pattern.permute.xlu0 0
      %3614 = vperm.xlu0 %3613, %v3572
      %v3615 = vpop.permute.xlu0 %3614
      %3618 = vset.pattern.permute.xlu0 0
      %3619 = vperm.xlu0 %3618, %v3573
      %v3620 = vpop.permute.xlu0 %3619
      %3623 = vset.pattern.permute.xlu0 0
      %3624 = vperm.xlu0 %3623, %v3574
      %v3625 = vpop.permute.xlu0 %3624
      %3628 = vset.pattern.permute.xlu0 0
      %3629 = vperm.xlu0 %3628, %v3575
      %v3630 = vpop.permute.xlu0 %3629
      %3633 = vset.pattern.permute.xlu0 0
      %3634 = vperm.xlu0 %3633, %v3576
      %v3635 = vpop.permute.xlu0 %3634
      %3638 = vset.pattern.permute.xlu0 0
      %3639 = vperm.xlu0 %3638, %v3577
      %v3640 = vpop.permute.xlu0 %3639
      %3643 = vset.pattern.permute.xlu0 0
      %3644 = vperm.xlu0 %3643, %v3578
      %v3645 = vpop.permute.xlu0 %3644
      %3648 = vset.pattern.permute.xlu0 0
      %3649 = vperm.xlu0 %3648, %v3579
      %v3650 = vpop.permute.xlu0 %3649
      %3653 = vset.pattern.permute.xlu0 0
      %3654 = vperm.xlu0 %3653, %v3580
      %v3655 = vpop.permute.xlu0 %3654
      %3658 = vset.pattern.permute.xlu0 0
      %3659 = vperm.xlu0 %3658, %v3581
      %v3660 = vpop.permute.xlu0 %3659
      %3663 = vset.pattern.permute.xlu0 0
      %3664 = vperm.xlu0 %3663, %v3582
      %v3665 = vpop.permute.xlu0 %3664
      %3668 = vset.pattern.permute.xlu0 0
      %3669 = vperm.xlu0 %3668, %v3583
      %v3670 = vpop.permute.xlu0 %3669
      %3673 = vset.pattern.permute.xlu0 0
      %3674 = vperm.xlu0 %3673, %v3584
      %v3675 = vpop.permute.xlu0 %3674
      %3678 = vset.pattern.permute.xlu0 0
      %3679 = vperm.xlu0 %3678, %v3585
      %v3680 = vpop.permute.xlu0 %3679
      %3683 = vset.pattern.permute.xlu0 0
      %3684 = vperm.xlu0 %3683, %v3586
      %v3685 = vpop.permute.xlu0 %3684
      %3688 = vset.pattern.permute.xlu0 0
      %3689 = vperm.xlu0 %3688, %v3587
      %v3690 = vpop.permute.xlu0 %3689
      %3693 = vset.pattern.permute.xlu0 0
      %3694 = vperm.xlu0 %3693, %v3588
      %v3695 = vpop.permute.xlu0 %3694
      %3698 = vset.pattern.permute.xlu0 0
      %3699 = vperm.xlu0 %3698, %v3589
      %v3700 = vpop.permute.xlu0 %3699
      %3703 = vset.pattern.permute.xlu0 0
      %3704 = vperm.xlu0 %3703, %v3590
      %v3705 = vpop.permute.xlu0 %3704
      %3708 = vset.pattern.permute.xlu0 0
      %3709 = vperm.xlu0 %3708, %v3591
      %v3710 = vpop.permute.xlu0 %3709
      %3713 = vset.pattern.permute.xlu0 0
      %3714 = vperm.xlu0 %3713, %v3592
      %v3715 = vpop.permute.xlu0 %3714
      %3718 = vset.pattern.permute.xlu0 0
      %3719 = vperm.xlu0 %3718, %v3593
      %v3720 = vpop.permute.xlu0 %3719
      %3723 = vset.pattern.permute.xlu0 0
      %3724 = vperm.xlu0 %3723, %v3594
      %v3725 = vpop.permute.xlu0 %3724
      %3728 = vset.pattern.permute.xlu0 0
      %3729 = vperm.xlu0 %3728, %v3595
      %v3730 = vpop.permute.xlu0 %3729
      %3733 = vset.pattern.permute.xlu0 0
      %3734 = vperm.xlu0 %3733, %v3596
      %v3735 = vpop.permute.xlu0 %3734
      %3738 = vset.pattern.permute.xlu0 0
      %3739 = vperm.xlu0 %3738, %v3597
      %v3740 = vpop.permute.xlu0 %3739
      %3743 = vset.pattern.permute.xlu0 0
      %3744 = vperm.xlu0 %3743, %v3598
      %v3745 = vpop.permute.xlu0 %3744
      %3748 = vset.pattern.permute.xlu0 0
      %3749 = vperm.xlu0 %3748, %v3599
      %v3750 = vpop.permute.xlu0 %3749
      %3753 = vset.pattern.permute.xlu0 0
      %3754 = vperm.xlu0 %3753, %v3600
      %v3755 = vpop.permute.xlu0 %3754
      %3758 = vset.pattern.permute.xlu0 0
      %3759 = vperm.xlu0 %3758, %v3601
      %v3760 = vpop.permute.xlu0 %3759
      %3763 = vset.pattern.permute.xlu0 0
      %3764 = vperm.xlu0 %3763, %v3602
      %v3765 = vpop.permute.xlu0 %3764
      %3768 = vset.pattern.permute.xlu0 0
      %3769 = vperm.xlu0 %3768, %v3603
      %v3770 = vpop.permute.xlu0 %3769
      %3773 = vset.pattern.permute.xlu0 0
      %3774 = vperm.xlu0 %3773, %v3604
      %v3775 = vpop.permute.xlu0 %3774
      %3778 = vset.pattern.permute.xlu0 0
      %3779 = vperm.xlu0 %3778, %v3605
      %v3780 = vpop.permute.xlu0 %3779
      %3783 = vset.pattern.permute.xlu0 0
      %3784 = vperm.xlu0 %3783, %v3606
      %v3785 = vpop.permute.xlu0 %3784
      %v3787 = vmul.f32 %v3535, %v3610
      %v3788 = vmul.f32 %v3536, %v3615
      %v3789 = vmul.f32 %v3537, %v3620
      %v3790 = vmul.f32 %v3538, %v3625
      %v3791 = vmul.f32 %v3539, %v3630
      %v3792 = vmul.f32 %v3540, %v3635
      %v3793 = vmul.f32 %v3541, %v3640
      %v3794 = vmul.f32 %v3542, %v3645
      %v3795 = vmul.f32 %v3543, %v3650
      %v3796 = vmul.f32 %v3544, %v3655
      %v3797 = vmul.f32 %v3545, %v3660
      %v3798 = vmul.f32 %v3546, %v3665
      %v3799 = vmul.f32 %v3547, %v3670
      %v3800 = vmul.f32 %v3548, %v3675
      %v3801 = vmul.f32 %v3549, %v3680
      %v3802 = vmul.f32 %v3550, %v3685
      %v3803 = vmul.f32 %v3551, %v3690
      %v3804 = vmul.f32 %v3552, %v3695
      %v3805 = vmul.f32 %v3553, %v3700
      %v3806 = vmul.f32 %v3554, %v3705
      %v3807 = vmul.f32 %v3555, %v3710
      %v3808 = vmul.f32 %v3556, %v3715
      %v3809 = vmul.f32 %v3557, %v3720
      %v3810 = vmul.f32 %v3558, %v3725
      %v3811 = vmul.f32 %v3559, %v3730
      %v3812 = vmul.f32 %v3560, %v3735
      %v3813 = vmul.f32 %v3561, %v3740
      %v3814 = vmul.f32 %v3562, %v3745
      %v3815 = vmul.f32 %v3563, %v3750
      %v3816 = vmul.f32 %v3564, %v3755
      %v3817 = vmul.f32 %v3565, %v3760
      %v3818 = vmul.f32 %v3566, %v3765
      %v3819 = vmul.f32 %v3567, %v3770
      %v3820 = vmul.f32 %v3568, %v3775
      %v3821 = vmul.f32 %v3569, %v3780
      %v3822 = vmul.f32 %v3570, %v3785
      %v3823 = vpack.c.bf16 %v3788, %v3787
      %v3824 = vpack.c.bf16 %v3790, %v3789
      %v3825 = vpack.c.bf16 %v3792, %v3791
      %v3826 = vpack.c.bf16 %v3794, %v3793
      %v3827 = vpack.c.bf16 %v3796, %v3795
      %v3828 = vpack.c.bf16 %v3798, %v3797
      %v3829 = vpack.c.bf16 %v3800, %v3799
      %v3830 = vpack.c.bf16 %v3802, %v3801
      %v3831 = vpack.c.bf16 %v3804, %v3803
      %v3832 = vpack.c.bf16 %v3806, %v3805
      %v3833 = vpack.c.bf16 %v3808, %v3807
      %v3834 = vpack.c.bf16 %v3810, %v3809
      %v3835 = vpack.c.bf16 %v3812, %v3811
      %v3836 = vpack.c.bf16 %v3814, %v3813
      %v3837 = vpack.c.bf16 %v3816, %v3815
      %v3838 = vpack.c.bf16 %v3818, %v3817
      %v3839 = vpack.c.bf16 %v3820, %v3819
      %v3840 = vpack.c.bf16 %v3822, %v3821
      %v3859 = vunpack.c.l.b16 %v3823
      %v3860 = vunpack.c.h.b16 %v3823
      %v3861 = vunpack.c.l.b16 %v3824
      %v3862 = vunpack.c.h.b16 %v3824
      %v3863 = vunpack.c.l.b16 %v3825
      %v3864 = vunpack.c.h.b16 %v3825
      %v3865 = vunpack.c.l.b16 %v3826
      %v3866 = vunpack.c.h.b16 %v3826
      %v3867 = vunpack.c.l.b16 %v3827
      %v3868 = vunpack.c.h.b16 %v3827
      %v3869 = vunpack.c.l.b16 %v3828
      %v3870 = vunpack.c.h.b16 %v3828
      %v3871 = vunpack.c.l.b16 %v3829
      %v3872 = vunpack.c.h.b16 %v3829
      %v3873 = vunpack.c.l.b16 %v3830
      %v3874 = vunpack.c.h.b16 %v3830
      %v3875 = vunpack.c.l.b16 %v3831
      %v3876 = vunpack.c.h.b16 %v3831
      %v3877 = vunpack.c.l.b16 %v3832
      %v3878 = vunpack.c.h.b16 %v3832
      %v3879 = vunpack.c.l.b16 %v3833
      %v3880 = vunpack.c.h.b16 %v3833
      %v3881 = vunpack.c.l.b16 %v3834
      %v3882 = vunpack.c.h.b16 %v3834
      %v3883 = vunpack.c.l.b16 %v3835
      %v3884 = vunpack.c.h.b16 %v3835
      %v3885 = vunpack.c.l.b16 %v3836
      %v3886 = vunpack.c.h.b16 %v3836
      %v3887 = vunpack.c.l.b16 %v3837
      %v3888 = vunpack.c.h.b16 %v3837
      %v3889 = vunpack.c.l.b16 %v3838
      %v3890 = vunpack.c.h.b16 %v3838
      %v3891 = vunpack.c.l.b16 %v3839
      %v3892 = vunpack.c.h.b16 %v3839
      %v3893 = vunpack.c.l.b16 %v3840
      %v3894 = vunpack.c.h.b16 %v3840
      %v3895 = vpack.c.b16 %v3859, %v3859
      %v3896 = vpack.c.b16 %v3860, %v3860
      %v3897 = vpack.c.b16 %v3861, %v3861
      %v3898 = vpack.c.b16 %v3862, %v3862
      %v3899 = vpack.c.b16 %v3863, %v3863
      %v3900 = vpack.c.b16 %v3864, %v3864
      %v3901 = vpack.c.b16 %v3865, %v3865
      %v3902 = vpack.c.b16 %v3866, %v3866
      %v3903 = vpack.c.b16 %v3867, %v3867
      %v3904 = vpack.c.b16 %v3868, %v3868
      %v3905 = vpack.c.b16 %v3869, %v3869
      %v3906 = vpack.c.b16 %v3870, %v3870
      %v3907 = vpack.c.b16 %v3871, %v3871
      %v3908 = vpack.c.b16 %v3872, %v3872
      %v3909 = vpack.c.b16 %v3873, %v3873
      %v3910 = vpack.c.b16 %v3874, %v3874
      %v3911 = vpack.c.b16 %v3875, %v3875
      %v3912 = vpack.c.b16 %v3876, %v3876
      %v3913 = vpack.c.b16 %v3877, %v3877
      %v3914 = vpack.c.b16 %v3878, %v3878
      %v3915 = vpack.c.b16 %v3879, %v3879
      %v3916 = vpack.c.b16 %v3880, %v3880
      %v3917 = vpack.c.b16 %v3881, %v3881
      %v3918 = vpack.c.b16 %v3882, %v3882
      %v3919 = vpack.c.b16 %v3883, %v3883
      %v3920 = vpack.c.b16 %v3884, %v3884
      %v3921 = vpack.c.b16 %v3885, %v3885
      %v3922 = vpack.c.b16 %v3886, %v3886
      %v3923 = vpack.c.b16 %v3887, %v3887
      %v3924 = vpack.c.b16 %v3888, %v3888
      %v3925 = vpack.c.b16 %v3889, %v3889
      %v3926 = vpack.c.b16 %v3890, %v3890
      %v3927 = vpack.c.b16 %v3891, %v3891
      %v3928 = vpack.c.b16 %v3892, %v3892
      %v3929 = vpack.c.b16 %v3893, %v3893
      %v3930 = vpack.c.b16 %v3894, %v3894
      %3967 = vst [vmem:[%s327] sm:$0xf] %v3895
      %3968 = vst [vmem:[%s327 + $0x4] sm:$0xf] %v3896
      %3969 = vst [vmem:[%s327 + $0x8] sm:$0xf] %v3897
      %3970 = vst [vmem:[%s327 + $0xc] sm:$0xf] %v3898
      %3971 = vst [vmem:[%s327 + $0x10] sm:$0xf] %v3899
      %3972 = vst [vmem:[%s327 + $0x14] sm:$0xf] %v3900
      %3973 = vst [vmem:[%s327 + $0x18] sm:$0xf] %v3901
      %3974 = vst [vmem:[%s327 + $0x1c] sm:$0xf] %v3902
      %3975 = vst [vmem:[%s327 + $0x20] sm:$0xf] %v3903
      %3976 = vst [vmem:[%s327 + $0x24] sm:$0xf] %v3904
      %3977 = vst [vmem:[%s327 + $0x28] sm:$0xf] %v3905
      %3978 = vst [vmem:[%s327 + $0x2c] sm:$0xf] %v3906
      %3979 = vst [vmem:[%s327 + $0x30] sm:$0xf] %v3907
      %3980 = vst [vmem:[%s327 + $0x34] sm:$0xf] %v3908
      %3981 = vst [vmem:[%s327 + $0x38] sm:$0xf] %v3909
      %3982 = vst [vmem:[%s327 + $0x3c] sm:$0xf] %v3910
      %3983 = vst [vmem:[%s327 + $0x40] sm:$0xf] %v3911
      %3984 = vst [vmem:[%s327 + $0x44] sm:$0xf] %v3912
      %3985 = vst [vmem:[%s327 + $0x48] sm:$0xf] %v3913
      %3986 = vst [vmem:[%s327 + $0x4c] sm:$0xf] %v3914
      %3987 = vst [vmem:[%s327 + $0x50] sm:$0xf] %v3915
      %3988 = vst [vmem:[%s327 + $0x54] sm:$0xf] %v3916
      %3989 = vst [vmem:[%s327 + $0x58] sm:$0xf] %v3917
      %3990 = vst [vmem:[%s327 + $0x5c] sm:$0xf] %v3918
      %3991 = vst [vmem:[%s327 + $0x60] sm:$0xf] %v3919
      %3992 = vst [vmem:[%s327 + $0x64] sm:$0xf] %v3920
      %3993 = vst [vmem:[%s327 + $0x68] sm:$0xf] %v3921
      %3994 = vst [vmem:[%s327 + $0x6c] sm:$0xf] %v3922
      %3995 = vst [vmem:[%s327 + $0x70] sm:$0xf] %v3923
      %3996 = vst [vmem:[%s327 + $0x74] sm:$0xf] %v3924
      %3997 = vst [vmem:[%s327 + $0x78] sm:$0xf] %v3925
      %3998 = vst [vmem:[%s327 + $0x7c] sm:$0xf] %v3926
      %3999 = vst [vmem:[%s327 + $0x80] sm:$0xf] %v3927
      %4000 = vst [vmem:[%s327 + $0x84] sm:$0xf] %v3928
      %4001 = vst [vmem:[%s327 + $0x88] sm:$0xf] %v3929
      %4002 = vst [vmem:[%s327 + $0x8c] sm:$0xf] %v3930
      %v4003 = vadd.f32 %v3787, %v3788
      %v4004 = vadd.f32 %v4003, %v3789
      %v4005 = vadd.f32 %v4004, %v3790
      %v4006 = vadd.f32 %v4005, %v3791
      %v4007 = vadd.f32 %v4006, %v3792
      %v4008 = vadd.f32 %v4007, %v3793
      %v4009 = vadd.f32 %v4008, %v3794
      %v4010 = vadd.f32 %v4009, %v3795
      %v4011 = vadd.f32 %v4010, %v3796
      %v4012 = vadd.f32 %v4011, %v3797
      %v4013 = vadd.f32 %v4012, %v3798
      %v4014 = vadd.f32 %v4013, %v3799
      %v4015 = vadd.f32 %v4014, %v3800
      %v4016 = vadd.f32 %v4015, %v3801
      %v4017 = vadd.f32 %v4016, %v3802
      %v4018 = vadd.f32 %v4017, %v3803
      %v4019 = vadd.f32 %v4018, %v3804
      %v4020 = vadd.f32 %v4019, %v3805
      %v4021 = vadd.f32 %v4020, %v3806
      %v4022 = vadd.f32 %v4021, %v3807
      %v4023 = vadd.f32 %v4022, %v3808
      %v4024 = vadd.f32 %v4023, %v3809
      %v4025 = vadd.f32 %v4024, %v3810
      %v4026 = vadd.f32 %v4025, %v3811
      %v4027 = vadd.f32 %v4026, %v3812
      %v4028 = vadd.f32 %v4027, %v3813
      %v4029 = vadd.f32 %v4028, %v3814
      %v4030 = vadd.f32 %v4029, %v3815
      %v4031 = vadd.f32 %v4030, %v3816
      %v4032 = vadd.f32 %v4031, %v3817
      %v4033 = vadd.f32 %v4032, %v3818
      %v4034 = vadd.f32 %v4033, %v3819
      %v4035 = vadd.f32 %v4034, %v3820
      %v4036 = vadd.f32 %v4035, %v3821
      %v4037 = vadd.f32 %v4036, %v3822
      %v4038 = vrot.slane %v4037, 4
      %v4039 = vadd.f32 %v4037, %v4038
      %v4040 = vrot.slane %v4039, 2
      %v4041 = vadd.f32 %v4039, %v4040
      %v4042 = vrot.slane %v4041, 1
      %v4043 = vadd.f32 %v4041, %v4042
      %4044 = vst [vmem:[%s333] sm:$0x1] %v4043
      %p4045 = scmp.lt.s32.totalorder %s22, 1
      %s4046 = scalar_select %p4045, %s22, 1
      %p4047 = scmp.lt.s32.totalorder %s23, 0
      %s4048 = scalar_select %p4047, %s23, 0
      %s4049 = smul.addr %s4046, 36
      %s4050 = sadd.s32 %s4048, %s4049
      %s4051 = smul.addr %s4050, 4
      %s4052 = scalar_lea.vmem %s5, %s4051
      %p4053 = scmp.lt.s32.totalorder %s22, 1
      %s4054 = scalar_select %p4053, %s22, 1
      %p4055 = scmp.lt.s32.totalorder %s23, 0
      %s4056 = scalar_select %p4055, %s23, 0
      %s4057 = sadd.s32 %s4056, %s4054
      %s4058 = scalar_lea.vmem %s6, %s4057
      // Predicated region
      $region41: #{arm_forward.2} parent=39 // pred_check
        %p4059 = pneg %p175
      $region42: #{arm_forward.2} parent=39 // pred_check_branch
        %4061 = sbr.rel (%p4059) target = $region44
      $region43: #{arm_forward.2} parent=39 // pred_region
        _
      $region44: #{arm_forward.2} parent=39 // pred_fallthru
        _
      // Predicated region
      $region45: #{arm_forward.2} parent=39 // pred_check
        %p4062 = pneg %p203
      $region46: #{arm_forward.2} parent=39 // pred_check_branch
        %4064 = sbr.rel (%p4062) target = $region48
      $region47: #{arm_forward.2} parent=39 // pred_region
        _
      $region48: #{arm_forward.2} parent=39 // pred_fallthru
        _
    $region40: #{arm_forward.2} parent=5 // pred_fallthru
      _
    %p4065 = scmp.le.s32.totalorder 2, %s13
    // Predicated region
    $region49: #{arm_forward.2} parent=5 // pred_check
      %p4066 = pneg %p4065
    $region50: #{arm_forward.2} parent=5 // pred_check_branch
      %4068 = sbr.rel (%p4066) target = $region52
    $region51: #{arm_forward.2} parent=5 // pred_region
      %s4069 = ssub.s32 %s13, 2
      // Predicated region
      $region53: #{arm_forward.2} parent=51 // pred_check
        %p4070 = pneg %p181
      $region54: #{arm_forward.2} parent=51 // pred_check_branch
        %4072 = sbr.rel (%p4070) target = $region56
      $region55: #{arm_forward.2} parent=51 // pred_region
        %p4073 = scmp.lt.s32.totalorder %s24, 1
        %s4074 = scalar_select %p4073, %s24, 1
        %p4075 = scmp.lt.s32.totalorder %s25, 0
        %s4076 = scalar_select %p4075, %s25, 0
        %s4077 = smul.addr %s4074, 36
        %s4078 = sadd.s32 %s4076, %s4077
        %s4079 = smul.addr %s4078, 4
        %s4080 = scalar_lea.vmem %s5, %s4079
      $region56: #{arm_forward.2} parent=51 // pred_fallthru
        _
      // Predicated region
      $region57: #{arm_forward.2} parent=51 // pred_check
        %p4081 = pneg %p209
      $region58: #{arm_forward.2} parent=51 // pred_check_branch
        %4083 = sbr.rel (%p4081) target = $region60
      $region59: #{arm_forward.2} parent=51 // pred_region
        %p4084 = scmp.lt.s32.totalorder %s24, 1
        %s4085 = scalar_select %p4084, %s24, 1
        %p4086 = scmp.lt.s32.totalorder %s25, 0
        %s4087 = scalar_select %p4086, %s25, 0
        %s4088 = sadd.s32 %s4087, %s4085
        %s4089 = scalar_lea.vmem %s6, %s4088
      $region60: #{arm_forward.2} parent=51 // pred_fallthru
        _
    $region52: #{arm_forward.2} parent=5 // pred_fallthru
      _
  $region6: #{arm_forward.2} parent=0 // loop_footer
    %s17 = sadd.s32 1, %s13
  $region7: #{arm_forward.2} parent=0 // loop_footer_branch
    %12 = sbr.rel target = $region3
  $region8: #{arm_forward.2} parent=0 // loop_exit
    _

</llo_original>
